<compile_context>
chip_gen: v7x
topology: tpu7x:2x2x1
jax: 0.10.0
libtpu: 0.0.40
codegen_flags: <defaults>
</compile_context>

<pallas_src>
import math
import functools

import jax
import jax.numpy as jnp
from jax import lax
from jax.experimental import pallas as pl
from jax.experimental.pallas import tpu as pltpu


def _layer_norm(x, w, b, eps=1e-5):
    mu = jnp.mean(x, axis=-1, keepdims=True)
    xc = x - mu
    var = jnp.mean(xc * xc, axis=-1, keepdims=True)
    return xc * lax.rsqrt(var + eps) * w + b


# ------------------------- fused transformer kernel -------------------------
def transformer_kernel(x_ref,
                       wqkv_ref, bqkv_ref, wo_ref, bo_ref,
                       ln1w_ref, ln1b_ref,
                       w1_ref, b1_ref, w2_ref, b2_ref,
                       ln2w_ref, ln2b_ref,
                       wout_ref, bout_ref,
                       o_ref, *, num_heads, num_layers):
    Bt, S, D = x_ref.shape
    M = Bt * S
    dh = D // num_heads
    scale = 1.0 / math.sqrt(dh)

    x = x_ref[...].reshape(M, D).astype(jnp.float32)          # (M, D), all batch rows in M

    for l in range(num_layers):                                # static unroll (L is small)
        # ---- fused QKV projection: one lane-dense bf16 MXU matmul ----
        qkv = jnp.dot(x.astype(jnp.bfloat16), wqkv_ref[l],
                      preferred_element_type=jnp.float32) + bqkv_ref[l]      # (M, 3D) f32
        q = qkv[:, :D].reshape(Bt, S, D)                       # 128-lane aligned slices
        k = qkv[:, D:2 * D].reshape(Bt, S, D)
        v = qkv[:, 2 * D:].reshape(Bt, S, D)

        # ---- attention scores / context are inherently per-head (tiny (S,S) tiles) ----
        ctx_heads = []
        for h in range(num_heads):                             # static unroll, H is small
            sl = slice(h * dh, (h + 1) * dh)
            qh = q[..., sl].astype(jnp.bfloat16)               # (Bt, S, dh)
            kh = k[..., sl].astype(jnp.bfloat16)
            vh = v[..., sl].astype(jnp.bfloat16)
            s = jnp.einsum('bqe,bke->bqk', qh, kh,
                           preferred_element_type=jnp.float32) * scale      # (Bt, S, S) f32
            s = s - jnp.max(s, axis=-1, keepdims=True)
            p = jnp.exp(s)
            p = p * pl.reciprocal(jnp.sum(p, axis=-1, keepdims=True), approx=True)
            ctx_heads.append(jnp.einsum('bqk,bke->bqe', p.astype(jnp.bfloat16), vh,
                                        preferred_element_type=jnp.float32))  # (Bt, S, dh)
        ctx = jnp.concatenate(ctx_heads, axis=-1).reshape(M, D)  # (M, H*dh = D)

        # ---- out-projection: single matmul, MXU accumulates over the full 128-deep contraction
        attn = jnp.dot(ctx.astype(jnp.bfloat16), wo_ref[l],
                       preferred_element_type=jnp.float32) + bo_ref[l]       # (M, D)

        # residual + LayerNorm1 (dropout == identity in eval)
        x1 = _layer_norm(x + attn, ln1w_ref[l], ln1b_ref[l])

        # ---- feed-forward (bf16 MXU operands, f32 accumulate / elementwise) ----
        h1 = jnp.maximum(jnp.dot(x1.astype(jnp.bfloat16), w1_ref[l],
                                 preferred_element_type=jnp.float32) + b1_ref[l], 0.0)  # (M, F)
        ff = jnp.dot(h1.astype(jnp.bfloat16), w2_ref[l],
                     preferred_element_type=jnp.float32) + b2_ref[l]                    # (M, D)
        x = _layer_norm(x1 + ff, ln2w_ref[l], ln2b_ref[l])

    # ---- output head: Linear(D, 1) as a f32 VPU reduction ----
    y = jnp.sum(x * wout_ref[...], axis=-1)                    # (M,)
    o_ref[...] = (y.reshape(Bt, 1, S) + bout_ref[...]).astype(o_ref.dtype)


def transformer_forward(x, prm, num_heads, *, block_b=None):
    B, S, D = x.shape
    L = prm["wqkv"].shape[0]
    if block_b is None:
        # Keep a length-2 parallel grid when possible so v7x's two TensorCores both get work.
        # On v5e/v6e (single TC) pass block_b=B to collapse the grid into one step.
        block_b = B // 2 if (B % 2 == 0 and B > 1) else B
    assert B % block_b == 0

    # Weights/biases: untiled, resident in VMEM for the whole call (DMA'd once).
    vmem = pl.BlockSpec(memory_space=pltpu.MemorySpace.VMEM)
    kernel = functools.partial(transformer_kernel, num_heads=num_heads, num_layers=L)
    out = pl.pallas_call(
        kernel,
        out_shape=jax.ShapeDtypeStruct((B, 1, S), jnp.float32),
        grid=(B // block_b,),
        in_specs=[pl.BlockSpec((block_b, S, D), lambda b: (b, 0, 0))] + [vmem] * 14,
        out_specs=pl.BlockSpec((block_b, 1, S), lambda b: (b, 0, 0)),
        compiler_params=pltpu.CompilerParams(dimension_semantics=("parallel",)),
    )(x,
      prm["wqkv"], prm["bqkv"], prm["wo"], prm["bo"],
      prm["ln1w"], prm["ln1b"],
      prm["w1"], prm["b1"], prm["w2"], prm["b2"],
      prm["ln2w"], prm["ln2b"],
      prm["wout"], prm["bout"])
    return out[:, 0, :]                                        # (B, S)


# ------------------------- parameters (PyTorch-layout, deterministic) -------------------------
def init_params(key, input_dim, hidden_dim, num_layers):
    D, F = input_dim, hidden_dim
    layers = []
    for _ in range(num_layers):
        key, k1, k2, k3, k4, k5 = jax.random.split(key, 6)
        kb = jax.random.split(k5, 8)
        layers.append({
            "wqkv": jax.random.normal(k1, (3 * D, D), jnp.float32) / math.sqrt(D),
            "bqkv": 0.1 * jax.random.normal(kb[0], (1, 3 * D), jnp.float32),
            "wo":   jax.random.normal(k2, (D, D), jnp.float32) / math.sqrt(D),
            "bo":   0.1 * jax.random.normal(kb[1], (1, D), jnp.float32),
            "ln1w": 1.0 + 0.1 * jax.random.normal(kb[2], (1, D), jnp.float32),
            "ln1b": 0.1 * jax.random.normal(kb[3], (1, D), jnp.float32),
            "w1":   jax.random.normal(k3, (F, D), jnp.float32) / math.sqrt(D),
            "b1":   0.1 * jax.random.normal(kb[4], (1, F), jnp.float32),
            "w2":   jax.random.normal(k4, (D, F), jnp.float32) / math.sqrt(F),
            "b2":   0.1 * jax.random.normal(kb[5], (1, D), jnp.float32),
            "ln2w": 1.0 + 0.1 * jax.random.normal(kb[6], (1, D), jnp.float32),
            "ln2b": 0.1 * jax.random.normal(kb[7], (1, D), jnp.float32),
        })
    key, kw, kb2 = jax.random.split(key, 3)
    wout = jax.random.normal(kw, (1, D), jnp.float32) / math.sqrt(D)
    bout = 0.1 * jax.random.normal(kb2, (1, 1), jnp.float32)
    return layers, wout, bout


def prep_params(layers, wout, bout):
    """Host-side: transpose to (K, N) layouts, fuse QKV, stack over layers, cast MXU weights bf16."""
    def stack(fn, dtype=jnp.float32):
        return jnp.stack([fn(p) for p in layers], axis=0).astype(dtype)
    bf16 = jnp.bfloat16
    return {
        "wqkv": stack(lambda p: p["wqkv"].T, bf16),   # (L, D, 3D)  qkv = x @ Wqkv
        "bqkv": stack(lambda p: p["bqkv"]),           # (L, 1, 3D)  f32
        "wo":   stack(lambda p: p["wo"].T, bf16),     # (L, D, D)
        "bo":   stack(lambda p: p["bo"]),
        "ln1w": stack(lambda p: p["ln1w"]),
        "ln1b": stack(lambda p: p["ln1b"]),
        "w1":   stack(lambda p: p["w1"].T, bf16),     # (L, D, F)
        "b1":   stack(lambda p: p["b1"]),
        "w2":   stack(lambda p: p["w2"].T, bf16),     # (L, F, D)
        "b2":   stack(lambda p: p["b2"]),
        "ln2w": stack(lambda p: p["ln2w"]),
        "ln2b": stack(lambda p: p["ln2b"]),
        "wout": wout,                                 # (1, D)  f32 (VPU reduction head)
        "bout": bout,                                 # (1, 1)  f32
    }


# ------------------------- pure-JAX reference for validation -------------------------
def ref_forward(x, layers, wout, bout, num_heads, mm_dtype=jnp.float32):
    """PyTorch-semantics reference; mm_dtype lets us mirror the kernel's bf16 MXU operands."""
    def mm(eq, a, b):
        return jnp.einsum(eq, a.astype(mm_dtype), b.astype(mm_dtype),
                          preferred_element_type=jnp.float32)
    for p in layers:
        B, S, D = x.shape
        dh = D // num_heads
        qkv = mm('bsd,ed->bse', x, p["wqkv"]) + p["bqkv"][0]
        q, k, v = qkv[..., :D], qkv[..., D:2 * D], qkv[..., 2 * D:]
        sp = lambda t: t.reshape(B, S, num_heads, dh).transpose(0, 2, 1, 3)
        qh, kh, vh = sp(q), sp(k), sp(v)
        s = mm('bhqd,bhkd->bhqk', qh, kh) / math.sqrt(dh)
        a = jax.nn.softmax(s, axis=-1)
        o = mm('bhqk,bhkd->bhqd', a, vh).transpose(0, 2, 1, 3).reshape(B, S, D)
        o = mm('bsd,ed->bse', o, p["wo"]) + p["bo"][0]
        x1 = _layer_norm(x + o, p["ln1w"][0], p["ln1b"][0])
        h1 = jax.nn.relu(mm('bsd,fd->bsf', x1, p["w1"]) + p["b1"][0])
        ff = mm('bsf,df->bsd', h1, p["w2"]) + p["b2"][0]
        x = _layer_norm(x1 + ff, p["ln2w"][0], p["ln2b"][0])
    y = jnp.einsum('bsd,od->bso', x, wout) + bout[0]
    return y[..., 0]


if __name__ == "__main__":
    B, S = 2, 8
    input_dim, hidden_dim, num_heads, num_layers = 128, 128, 4, 2

    key = jax.random.PRNGKey(0)
    kx, kp = jax.random.split(key)
    x = jax.random.normal(kx, (B, S, input_dim), jnp.float32)
    layers, wout, bout = init_params(kp, input_dim, hidden_dim, num_layers)
    prm = prep_params(layers, wout, bout)

    y = transformer_forward(x, prm, num_heads)
    y = jax.block_until_ready(y)
    assert y.shape == (B, S), y.shape

    # Tight check vs a reference that mirrors the kernel's bf16 MXU operands.
    y_ref_bf16 = ref_forward(x, layers, wout, bout, num_heads, mm_dtype=jnp.bfloat16)
    err_bf16 = float(jnp.max(jnp.abs(y - y_ref_bf16)))
    assert jnp.allclose(y, y_ref_bf16, atol=5e-3, rtol=5e-3), err_bf16

    # Loose check vs the exact f32 (PyTorch-semantics) reference (bf16 matmuls cost ~1e-2 here).
    y_ref_f32 = ref_forward(x, layers, wout, bout, num_heads, mm_dtype=jnp.float32)
    err_f32 = float(jnp.max(jnp.abs(y - y_ref_f32)))
    assert jnp.allclose(y, y_ref_f32, atol=5e-2, rtol=5e-2), err_f32

    print("KERNEL_OK")
</pallas_src>

<mosaic_0001>
module attributes {stable_mosaic.version = 11 : i64} {
  func.func @transformer_kernel(%arg0: i32, %arg1: memref<1x8x128xf32, #tpu.memory_space<vmem>>, %arg2: memref<2x128x384xbf16, #tpu.memory_space<vmem>>, %arg3: memref<2x1x384xf32, #tpu.memory_space<vmem>>, %arg4: memref<2x128x128xbf16, #tpu.memory_space<vmem>>, %arg5: memref<2x1x128xf32, #tpu.memory_space<vmem>>, %arg6: memref<2x1x128xf32, #tpu.memory_space<vmem>>, %arg7: memref<2x1x128xf32, #tpu.memory_space<vmem>>, %arg8: memref<2x128x128xbf16, #tpu.memory_space<vmem>>, %arg9: memref<2x1x128xf32, #tpu.memory_space<vmem>>, %arg10: memref<2x128x128xbf16, #tpu.memory_space<vmem>>, %arg11: memref<2x1x128xf32, #tpu.memory_space<vmem>>, %arg12: memref<2x1x128xf32, #tpu.memory_space<vmem>>, %arg13: memref<2x1x128xf32, #tpu.memory_space<vmem>>, %arg14: memref<1x128xf32, #tpu.memory_space<vmem>>, %arg15: memref<1x1xf32, #tpu.memory_space<vmem>>, %arg16: memref<1x1x8xf32, #tpu.memory_space<vmem>>) attributes {dimension_semantics = [#tpu.dimension_semantics<parallel>], iteration_bounds = array<i64: 2>, scalar_prefetch = 0 : i64, scratch_operands = 0 : i64, tpu.core_type = #tpu.core_type<tc>, window_params = [{transform_indices = @transform_0, window_bounds = array<i64: 1, 8, 128>}, {pipeline_mode = #tpu.pipeline_mode<synchronous>, transform_indices = @transform_1, window_bounds = array<i64: 2, 128, 384>}, {pipeline_mode = #tpu.pipeline_mode<synchronous>, transform_indices = @transform_2, window_bounds = array<i64: 2, 1, 384>}, {pipeline_mode = #tpu.pipeline_mode<synchronous>, transform_indices = @transform_3, window_bounds = array<i64: 2, 128, 128>}, {pipeline_mode = #tpu.pipeline_mode<synchronous>, transform_indices = @transform_4, window_bounds = array<i64: 2, 1, 128>}, {pipeline_mode = #tpu.pipeline_mode<synchronous>, transform_indices = @transform_5, window_bounds = array<i64: 2, 1, 128>}, {pipeline_mode = #tpu.pipeline_mode<synchronous>, transform_indices = @transform_6, window_bounds = array<i64: 2, 1, 128>}, {pipeline_mode = #tpu.pipeline_mode<synchronous>, transform_indices = @transform_7, window_bounds = array<i64: 2, 128, 128>}, {pipeline_mode = #tpu.pipeline_mode<synchronous>, transform_indices = @transform_8, window_bounds = array<i64: 2, 1, 128>}, {pipeline_mode = #tpu.pipeline_mode<synchronous>, transform_indices = @transform_9, window_bounds = array<i64: 2, 128, 128>}, {pipeline_mode = #tpu.pipeline_mode<synchronous>, transform_indices = @transform_10, window_bounds = array<i64: 2, 1, 128>}, {pipeline_mode = #tpu.pipeline_mode<synchronous>, transform_indices = @transform_11, window_bounds = array<i64: 2, 1, 128>}, {pipeline_mode = #tpu.pipeline_mode<synchronous>, transform_indices = @transform_12, window_bounds = array<i64: 2, 1, 128>}, {pipeline_mode = #tpu.pipeline_mode<synchronous>, transform_indices = @transform_13, window_bounds = array<i64: 1, 128>}, {pipeline_mode = #tpu.pipeline_mode<synchronous>, transform_indices = @transform_14, window_bounds = array<i64: 1, 1>}, {transform_indices = @transform_15, window_bounds = array<i64: 1, 1, 8>}]} {
    %c0 = arith.constant 0 : index
    %c0_0 = arith.constant 0 : index
    %c0_1 = arith.constant 0 : index
    %0 = vector.load %arg1[%c0, %c0_0, %c0_1] : memref<1x8x128xf32, #tpu.memory_space<vmem>>, vector<1x8x128xf32>
    %1 = vector.shape_cast %0 : vector<1x8x128xf32> to vector<8x128xf32>
    %2 = arith.truncf %1 : vector<8x128xf32> to vector<8x128xbf16>
    %c0_2 = arith.constant 0 : index
    %c0_3 = arith.constant 0 : index
    %c0_4 = arith.constant 0 : index
    %3 = vector.load %arg2[%c0_2, %c0_3, %c0_4] : memref<2x128x384xbf16, #tpu.memory_space<vmem>>, vector<1x128x384xbf16>
    %4 = vector.shape_cast %3 : vector<1x128x384xbf16> to vector<128x384xbf16>
    %cst = arith.constant dense<0.000000e+00> : vector<8x384xf32>
    %5 = tpu.matmul %2, %4, %cst {dimension_numbers = #tpu.dot_dimension_numbers<[1], [0], [0], [1], [0, 0, 1, 1], [], []>} : vector<8x128xbf16>, vector<128x384xbf16>, vector<8x384xf32> -> vector<8x384xf32>
    %c0_5 = arith.constant 0 : index
    %c0_6 = arith.constant 0 : index
    %c0_7 = arith.constant 0 : index
    %6 = vector.load %arg3[%c0_5, %c0_6, %c0_7] : memref<2x1x384xf32, #tpu.memory_space<vmem>>, vector<1x1x384xf32>
    %7 = vector.shape_cast %6 : vector<1x1x384xf32> to vector<1x384xf32>
    %8 = vector.broadcast %7 : vector<1x384xf32> to vector<8x384xf32>
    %9 = arith.addf %5, %8 : vector<8x384xf32>
    %10 = vector.extract_strided_slice %9 {offsets = [0, 0], sizes = [8, 128], strides = [1, 1]} : vector<8x384xf32> to vector<8x128xf32>
    %11 = vector.shape_cast %10 : vector<8x128xf32> to vector<1x8x128xf32>
    %12 = vector.extract_strided_slice %9 {offsets = [0, 128], sizes = [8, 128], strides = [1, 1]} : vector<8x384xf32> to vector<8x128xf32>
    %13 = vector.shape_cast %12 : vector<8x128xf32> to vector<1x8x128xf32>
    %14 = vector.extract_strided_slice %9 {offsets = [0, 256], sizes = [8, 128], strides = [1, 1]} : vector<8x384xf32> to vector<8x128xf32>
    %15 = vector.shape_cast %14 : vector<8x128xf32> to vector<1x8x128xf32>
    %16 = vector.extract_strided_slice %11 {offsets = [0, 0, 0], sizes = [1, 8, 32], strides = [1, 1, 1]} : vector<1x8x128xf32> to vector<1x8x32xf32>
    %17 = arith.truncf %16 : vector<1x8x32xf32> to vector<1x8x32xbf16>
    %18 = vector.extract_strided_slice %13 {offsets = [0, 0, 0], sizes = [1, 8, 32], strides = [1, 1, 1]} : vector<1x8x128xf32> to vector<1x8x32xf32>
    %19 = arith.truncf %18 : vector<1x8x32xf32> to vector<1x8x32xbf16>
    %20 = vector.extract_strided_slice %15 {offsets = [0, 0, 0], sizes = [1, 8, 32], strides = [1, 1, 1]} : vector<1x8x128xf32> to vector<1x8x32xf32>
    %21 = arith.truncf %20 : vector<1x8x32xf32> to vector<1x8x32xbf16>
    "tpu.trace_start"() <{level = 10 : i32, message = "bqe,bke->bqk"}> : () -> ()
    %cst_8 = arith.constant dense<0.000000e+00> : vector<1x8x8xf32>
    %22 = tpu.matmul %17, %19, %cst_8 {dimension_numbers = #tpu.dot_dimension_numbers<[2], [2], [1], [1], [0, 0, 0, 1, 1, 1], [0], [0]>} : vector<1x8x32xbf16>, vector<1x8x32xbf16>, vector<1x8x8xf32> -> vector<1x8x8xf32>
    "tpu.trace_stop"() : () -> ()
    %cst_9 = arith.constant 0.176776692 : f32
    %23 = vector.broadcast %cst_9 : f32 to vector<1x8x8xf32>
    %24 = arith.mulf %22, %23 : vector<1x8x8xf32>
    %cst_10 = arith.constant dense<0xFF800000> : vector<1x8xf32>
    %25 = vector.multi_reduction <maximumf>, %24, %cst_10 [2] : vector<1x8x8xf32> to vector<1x8xf32>
    %26 = vector.shape_cast %25 : vector<1x8xf32> to vector<1x8x1xf32>
    %27 = vector.broadcast %26 : vector<1x8x1xf32> to vector<1x8x8xf32>
    %28 = arith.subf %24, %27 : vector<1x8x8xf32>
    %29 = math.exp %28 : vector<1x8x8xf32>
    %cst_11 = arith.constant dense<0.000000e+00> : vector<1x8xf32>
    %30 = vector.multi_reduction <add>, %29, %cst_11 [2] : vector<1x8x8xf32> to vector<1x8xf32>
    %31 = vector.shape_cast %30 : vector<1x8xf32> to vector<1x8x1xf32>
    %32 = tpu.reciprocal %31 {approx = true} : vector<1x8x1xf32> -> vector<1x8x1xf32>
    %33 = vector.broadcast %32 : vector<1x8x1xf32> to vector<1x8x8xf32>
    %34 = arith.mulf %29, %33 : vector<1x8x8xf32>
    %35 = arith.truncf %34 : vector<1x8x8xf32> to vector<1x8x8xbf16>
    "tpu.trace_start"() <{level = 10 : i32, message = "bqk,bke->bqe"}> : () -> ()
    %cst_12 = arith.constant dense<0.000000e+00> : vector<1x8x32xf32>
    %36 = tpu.matmul %35, %21, %cst_12 {dimension_numbers = #tpu.dot_dimension_numbers<[2], [1], [1], [2], [0, 0, 0, 1, 1, 2], [0], [0]>} : vector<1x8x8xbf16>, vector<1x8x32xbf16>, vector<1x8x32xf32> -> vector<1x8x32xf32>
    "tpu.trace_stop"() : () -> ()
    %37 = vector.extract_strided_slice %11 {offsets = [0, 0, 32], sizes = [1, 8, 32], strides = [1, 1, 1]} : vector<1x8x128xf32> to vector<1x8x32xf32>
    %38 = arith.truncf %37 : vector<1x8x32xf32> to vector<1x8x32xbf16>
    %39 = vector.extract_strided_slice %13 {offsets = [0, 0, 32], sizes = [1, 8, 32], strides = [1, 1, 1]} : vector<1x8x128xf32> to vector<1x8x32xf32>
    %40 = arith.truncf %39 : vector<1x8x32xf32> to vector<1x8x32xbf16>
    %41 = vector.extract_strided_slice %15 {offsets = [0, 0, 32], sizes = [1, 8, 32], strides = [1, 1, 1]} : vector<1x8x128xf32> to vector<1x8x32xf32>
    %42 = arith.truncf %41 : vector<1x8x32xf32> to vector<1x8x32xbf16>
    "tpu.trace_start"() <{level = 10 : i32, message = "bqe,bke->bqk"}> : () -> ()
    %cst_13 = arith.constant dense<0.000000e+00> : vector<1x8x8xf32>
    %43 = tpu.matmul %38, %40, %cst_13 {dimension_numbers = #tpu.dot_dimension_numbers<[2], [2], [1], [1], [0, 0, 0, 1, 1, 1], [0], [0]>} : vector<1x8x32xbf16>, vector<1x8x32xbf16>, vector<1x8x8xf32> -> vector<1x8x8xf32>
    "tpu.trace_stop"() : () -> ()
    %cst_14 = arith.constant 0.176776692 : f32
    %44 = vector.broadcast %cst_14 : f32 to vector<1x8x8xf32>
    %45 = arith.mulf %43, %44 : vector<1x8x8xf32>
    %cst_15 = arith.constant dense<0xFF800000> : vector<1x8xf32>
    %46 = vector.multi_reduction <maximumf>, %45, %cst_15 [2] : vector<1x8x8xf32> to vector<1x8xf32>
    %47 = vector.shape_cast %46 : vector<1x8xf32> to vector<1x8x1xf32>
    %48 = vector.broadcast %47 : vector<1x8x1xf32> to vector<1x8x8xf32>
    %49 = arith.subf %45, %48 : vector<1x8x8xf32>
    %50 = math.exp %49 : vector<1x8x8xf32>
    %cst_16 = arith.constant dense<0.000000e+00> : vector<1x8xf32>
    %51 = vector.multi_reduction <add>, %50, %cst_16 [2] : vector<1x8x8xf32> to vector<1x8xf32>
    %52 = vector.shape_cast %51 : vector<1x8xf32> to vector<1x8x1xf32>
    %53 = tpu.reciprocal %52 {approx = true} : vector<1x8x1xf32> -> vector<1x8x1xf32>
    %54 = vector.broadcast %53 : vector<1x8x1xf32> to vector<1x8x8xf32>
    %55 = arith.mulf %50, %54 : vector<1x8x8xf32>
    %56 = arith.truncf %55 : vector<1x8x8xf32> to vector<1x8x8xbf16>
    "tpu.trace_start"() <{level = 10 : i32, message = "bqk,bke->bqe"}> : () -> ()
    %cst_17 = arith.constant dense<0.000000e+00> : vector<1x8x32xf32>
    %57 = tpu.matmul %56, %42, %cst_17 {dimension_numbers = #tpu.dot_dimension_numbers<[2], [1], [1], [2], [0, 0, 0, 1, 1, 2], [0], [0]>} : vector<1x8x8xbf16>, vector<1x8x32xbf16>, vector<1x8x32xf32> -> vector<1x8x32xf32>
    "tpu.trace_stop"() : () -> ()
    %58 = vector.extract_strided_slice %11 {offsets = [0, 0, 64], sizes = [1, 8, 32], strides = [1, 1, 1]} : vector<1x8x128xf32> to vector<1x8x32xf32>
    %59 = arith.truncf %58 : vector<1x8x32xf32> to vector<1x8x32xbf16>
    %60 = vector.extract_strided_slice %13 {offsets = [0, 0, 64], sizes = [1, 8, 32], strides = [1, 1, 1]} : vector<1x8x128xf32> to vector<1x8x32xf32>
    %61 = arith.truncf %60 : vector<1x8x32xf32> to vector<1x8x32xbf16>
    %62 = vector.extract_strided_slice %15 {offsets = [0, 0, 64], sizes = [1, 8, 32], strides = [1, 1, 1]} : vector<1x8x128xf32> to vector<1x8x32xf32>
    %63 = arith.truncf %62 : vector<1x8x32xf32> to vector<1x8x32xbf16>
    "tpu.trace_start"() <{level = 10 : i32, message = "bqe,bke->bqk"}> : () -> ()
    %cst_18 = arith.constant dense<0.000000e+00> : vector<1x8x8xf32>
    %64 = tpu.matmul %59, %61, %cst_18 {dimension_numbers = #tpu.dot_dimension_numbers<[2], [2], [1], [1], [0, 0, 0, 1, 1, 1], [0], [0]>} : vector<1x8x32xbf16>, vector<1x8x32xbf16>, vector<1x8x8xf32> -> vector<1x8x8xf32>
    "tpu.trace_stop"() : () -> ()
    %cst_19 = arith.constant 0.176776692 : f32
    %65 = vector.broadcast %cst_19 : f32 to vector<1x8x8xf32>
    %66 = arith.mulf %64, %65 : vector<1x8x8xf32>
    %cst_20 = arith.constant dense<0xFF800000> : vector<1x8xf32>
    %67 = vector.multi_reduction <maximumf>, %66, %cst_20 [2] : vector<1x8x8xf32> to vector<1x8xf32>
    %68 = vector.shape_cast %67 : vector<1x8xf32> to vector<1x8x1xf32>
    %69 = vector.broadcast %68 : vector<1x8x1xf32> to vector<1x8x8xf32>
    %70 = arith.subf %66, %69 : vector<1x8x8xf32>
    %71 = math.exp %70 : vector<1x8x8xf32>
    %cst_21 = arith.constant dense<0.000000e+00> : vector<1x8xf32>
    %72 = vector.multi_reduction <add>, %71, %cst_21 [2] : vector<1x8x8xf32> to vector<1x8xf32>
    %73 = vector.shape_cast %72 : vector<1x8xf32> to vector<1x8x1xf32>
    %74 = tpu.reciprocal %73 {approx = true} : vector<1x8x1xf32> -> vector<1x8x1xf32>
    %75 = vector.broadcast %74 : vector<1x8x1xf32> to vector<1x8x8xf32>
    %76 = arith.mulf %71, %75 : vector<1x8x8xf32>
    %77 = arith.truncf %76 : vector<1x8x8xf32> to vector<1x8x8xbf16>
    "tpu.trace_start"() <{level = 10 : i32, message = "bqk,bke->bqe"}> : () -> ()
    %cst_22 = arith.constant dense<0.000000e+00> : vector<1x8x32xf32>
    %78 = tpu.matmul %77, %63, %cst_22 {dimension_numbers = #tpu.dot_dimension_numbers<[2], [1], [1], [2], [0, 0, 0, 1, 1, 2], [0], [0]>} : vector<1x8x8xbf16>, vector<1x8x32xbf16>, vector<1x8x32xf32> -> vector<1x8x32xf32>
    "tpu.trace_stop"() : () -> ()
    %79 = vector.extract_strided_slice %11 {offsets = [0, 0, 96], sizes = [1, 8, 32], strides = [1, 1, 1]} : vector<1x8x128xf32> to vector<1x8x32xf32>
    %80 = arith.truncf %79 : vector<1x8x32xf32> to vector<1x8x32xbf16>
    %81 = vector.extract_strided_slice %13 {offsets = [0, 0, 96], sizes = [1, 8, 32], strides = [1, 1, 1]} : vector<1x8x128xf32> to vector<1x8x32xf32>
    %82 = arith.truncf %81 : vector<1x8x32xf32> to vector<1x8x32xbf16>
    %83 = vector.extract_strided_slice %15 {offsets = [0, 0, 96], sizes = [1, 8, 32], strides = [1, 1, 1]} : vector<1x8x128xf32> to vector<1x8x32xf32>
    %84 = arith.truncf %83 : vector<1x8x32xf32> to vector<1x8x32xbf16>
    "tpu.trace_start"() <{level = 10 : i32, message = "bqe,bke->bqk"}> : () -> ()
    %cst_23 = arith.constant dense<0.000000e+00> : vector<1x8x8xf32>
    %85 = tpu.matmul %80, %82, %cst_23 {dimension_numbers = #tpu.dot_dimension_numbers<[2], [2], [1], [1], [0, 0, 0, 1, 1, 1], [0], [0]>} : vector<1x8x32xbf16>, vector<1x8x32xbf16>, vector<1x8x8xf32> -> vector<1x8x8xf32>
    "tpu.trace_stop"() : () -> ()
    %cst_24 = arith.constant 0.176776692 : f32
    %86 = vector.broadcast %cst_24 : f32 to vector<1x8x8xf32>
    %87 = arith.mulf %85, %86 : vector<1x8x8xf32>
    %cst_25 = arith.constant dense<0xFF800000> : vector<1x8xf32>
    %88 = vector.multi_reduction <maximumf>, %87, %cst_25 [2] : vector<1x8x8xf32> to vector<1x8xf32>
    %89 = vector.shape_cast %88 : vector<1x8xf32> to vector<1x8x1xf32>
    %90 = vector.broadcast %89 : vector<1x8x1xf32> to vector<1x8x8xf32>
    %91 = arith.subf %87, %90 : vector<1x8x8xf32>
    %92 = math.exp %91 : vector<1x8x8xf32>
    %cst_26 = arith.constant dense<0.000000e+00> : vector<1x8xf32>
    %93 = vector.multi_reduction <add>, %92, %cst_26 [2] : vector<1x8x8xf32> to vector<1x8xf32>
    %94 = vector.shape_cast %93 : vector<1x8xf32> to vector<1x8x1xf32>
    %95 = tpu.reciprocal %94 {approx = true} : vector<1x8x1xf32> -> vector<1x8x1xf32>
    %96 = vector.broadcast %95 : vector<1x8x1xf32> to vector<1x8x8xf32>
    %97 = arith.mulf %92, %96 : vector<1x8x8xf32>
    %98 = arith.truncf %97 : vector<1x8x8xf32> to vector<1x8x8xbf16>
    "tpu.trace_start"() <{level = 10 : i32, message = "bqk,bke->bqe"}> : () -> ()
    %cst_27 = arith.constant dense<0.000000e+00> : vector<1x8x32xf32>
    %99 = tpu.matmul %98, %84, %cst_27 {dimension_numbers = #tpu.dot_dimension_numbers<[2], [1], [1], [2], [0, 0, 0, 1, 1, 2], [0], [0]>} : vector<1x8x8xbf16>, vector<1x8x32xbf16>, vector<1x8x32xf32> -> vector<1x8x32xf32>
    "tpu.trace_stop"() : () -> ()
    %100 = tpu.concatenate %36, %57, %78, %99 in 2 : vector<1x8x32xf32>, vector<1x8x32xf32>, vector<1x8x32xf32>, vector<1x8x32xf32> -> vector<1x8x128xf32>
    %101 = vector.shape_cast %100 : vector<1x8x128xf32> to vector<8x128xf32>
    %102 = arith.truncf %101 : vector<8x128xf32> to vector<8x128xbf16>
    %c0_28 = arith.constant 0 : index
    %c0_29 = arith.constant 0 : index
    %c0_30 = arith.constant 0 : index
    %103 = vector.load %arg4[%c0_28, %c0_29, %c0_30] : memref<2x128x128xbf16, #tpu.memory_space<vmem>>, vector<1x128x128xbf16>
    %104 = vector.shape_cast %103 : vector<1x128x128xbf16> to vector<128x128xbf16>
    %cst_31 = arith.constant dense<0.000000e+00> : vector<8x128xf32>
    %105 = tpu.matmul %102, %104, %cst_31 {dimension_numbers = #tpu.dot_dimension_numbers<[1], [0], [0], [1], [0, 0, 1, 1], [], []>} : vector<8x128xbf16>, vector<128x128xbf16>, vector<8x128xf32> -> vector<8x128xf32>
    %c0_32 = arith.constant 0 : index
    %c0_33 = arith.constant 0 : index
    %c0_34 = arith.constant 0 : index
    %106 = vector.load %arg5[%c0_32, %c0_33, %c0_34] : memref<2x1x128xf32, #tpu.memory_space<vmem>>, vector<1x1x128xf32>
    %107 = vector.shape_cast %106 : vector<1x1x128xf32> to vector<1x128xf32>
    %108 = vector.broadcast %107 : vector<1x128xf32> to vector<8x128xf32>
    %109 = arith.addf %105, %108 : vector<8x128xf32>
    %110 = arith.addf %1, %109 : vector<8x128xf32>
    %c0_35 = arith.constant 0 : index
    %c0_36 = arith.constant 0 : index
    %c0_37 = arith.constant 0 : index
    %111 = vector.load %arg6[%c0_35, %c0_36, %c0_37] : memref<2x1x128xf32, #tpu.memory_space<vmem>>, vector<1x1x128xf32>
    %112 = vector.shape_cast %111 : vector<1x1x128xf32> to vector<1x128xf32>
    %c0_38 = arith.constant 0 : index
    %c0_39 = arith.constant 0 : index
    %c0_40 = arith.constant 0 : index
    %113 = vector.load %arg7[%c0_38, %c0_39, %c0_40] : memref<2x1x128xf32, #tpu.memory_space<vmem>>, vector<1x1x128xf32>
    %114 = vector.shape_cast %113 : vector<1x1x128xf32> to vector<1x128xf32>
    %cst_41 = arith.constant dense<0.000000e+00> : vector<8xf32>
    %115 = vector.multi_reduction <add>, %110, %cst_41 [1] : vector<8x128xf32> to vector<8xf32>
    %116 = vector.shape_cast %115 : vector<8xf32> to vector<8x1xf32>
    %cst_42 = arith.constant 1.280000e+02 : f32
    %117 = vector.broadcast %cst_42 : f32 to vector<8x1xf32>
    %118 = arith.divf %116, %117 : vector<8x1xf32>
    %119 = vector.broadcast %118 : vector<8x1xf32> to vector<8x128xf32>
    %120 = arith.subf %110, %119 : vector<8x128xf32>
    %121 = arith.mulf %120, %120 : vector<8x128xf32>
    %cst_43 = arith.constant dense<0.000000e+00> : vector<8xf32>
    %122 = vector.multi_reduction <add>, %121, %cst_43 [1] : vector<8x128xf32> to vector<8xf32>
    %123 = vector.shape_cast %122 : vector<8xf32> to vector<8x1xf32>
    %cst_44 = arith.constant 1.280000e+02 : f32
    %124 = vector.broadcast %cst_44 : f32 to vector<8x1xf32>
    %125 = arith.divf %123, %124 : vector<8x1xf32>
    %cst_45 = arith.constant 9.99999974E-6 : f32
    %126 = vector.broadcast %cst_45 : f32 to vector<8x1xf32>
    %127 = arith.addf %125, %126 : vector<8x1xf32>
    %128 = math.rsqrt %127 : vector<8x1xf32>
    %129 = vector.broadcast %128 : vector<8x1xf32> to vector<8x128xf32>
    %130 = arith.mulf %120, %129 : vector<8x128xf32>
    %131 = vector.broadcast %112 : vector<1x128xf32> to vector<8x128xf32>
    %132 = arith.mulf %130, %131 : vector<8x128xf32>
    %133 = vector.broadcast %114 : vector<1x128xf32> to vector<8x128xf32>
    %134 = arith.addf %132, %133 : vector<8x128xf32>
    %135 = arith.truncf %134 : vector<8x128xf32> to vector<8x128xbf16>
    %c0_46 = arith.constant 0 : index
    %c0_47 = arith.constant 0 : index
    %c0_48 = arith.constant 0 : index
    %136 = vector.load %arg8[%c0_46, %c0_47, %c0_48] : memref<2x128x128xbf16, #tpu.memory_space<vmem>>, vector<1x128x128xbf16>
    %137 = vector.shape_cast %136 : vector<1x128x128xbf16> to vector<128x128xbf16>
    %cst_49 = arith.constant dense<0.000000e+00> : vector<8x128xf32>
    %138 = tpu.matmul %135, %137, %cst_49 {dimension_numbers = #tpu.dot_dimension_numbers<[1], [0], [0], [1], [0, 0, 1, 1], [], []>} : vector<8x128xbf16>, vector<128x128xbf16>, vector<8x128xf32> -> vector<8x128xf32>
    %c0_50 = arith.constant 0 : index
    %c0_51 = arith.constant 0 : index
    %c0_52 = arith.constant 0 : index
    %139 = vector.load %arg9[%c0_50, %c0_51, %c0_52] : memref<2x1x128xf32, #tpu.memory_space<vmem>>, vector<1x1x128xf32>
    %140 = vector.shape_cast %139 : vector<1x1x128xf32> to vector<1x128xf32>
    %141 = vector.broadcast %140 : vector<1x128xf32> to vector<8x128xf32>
    %142 = arith.addf %138, %141 : vector<8x128xf32>
    %cst_53 = arith.constant 0.000000e+00 : f32
    %143 = vector.broadcast %cst_53 : f32 to vector<8x128xf32>
    %144 = arith.maximumf %142, %143 : vector<8x128xf32>
    %145 = arith.truncf %144 : vector<8x128xf32> to vector<8x128xbf16>
    %c0_54 = arith.constant 0 : index
    %c0_55 = arith.constant 0 : index
    %c0_56 = arith.constant 0 : index
    %146 = vector.load %arg10[%c0_54, %c0_55, %c0_56] : memref<2x128x128xbf16, #tpu.memory_space<vmem>>, vector<1x128x128xbf16>
    %147 = vector.shape_cast %146 : vector<1x128x128xbf16> to vector<128x128xbf16>
    %cst_57 = arith.constant dense<0.000000e+00> : vector<8x128xf32>
    %148 = tpu.matmul %145, %147, %cst_57 {dimension_numbers = #tpu.dot_dimension_numbers<[1], [0], [0], [1], [0, 0, 1, 1], [], []>} : vector<8x128xbf16>, vector<128x128xbf16>, vector<8x128xf32> -> vector<8x128xf32>
    %c0_58 = arith.constant 0 : index
    %c0_59 = arith.constant 0 : index
    %c0_60 = arith.constant 0 : index
    %149 = vector.load %arg11[%c0_58, %c0_59, %c0_60] : memref<2x1x128xf32, #tpu.memory_space<vmem>>, vector<1x1x128xf32>
    %150 = vector.shape_cast %149 : vector<1x1x128xf32> to vector<1x128xf32>
    %151 = vector.broadcast %150 : vector<1x128xf32> to vector<8x128xf32>
    %152 = arith.addf %148, %151 : vector<8x128xf32>
    %153 = arith.addf %134, %152 : vector<8x128xf32>
    %c0_61 = arith.constant 0 : index
    %c0_62 = arith.constant 0 : index
    %c0_63 = arith.constant 0 : index
    %154 = vector.load %arg12[%c0_61, %c0_62, %c0_63] : memref<2x1x128xf32, #tpu.memory_space<vmem>>, vector<1x1x128xf32>
    %155 = vector.shape_cast %154 : vector<1x1x128xf32> to vector<1x128xf32>
    %c0_64 = arith.constant 0 : index
    %c0_65 = arith.constant 0 : index
    %c0_66 = arith.constant 0 : index
    %156 = vector.load %arg13[%c0_64, %c0_65, %c0_66] : memref<2x1x128xf32, #tpu.memory_space<vmem>>, vector<1x1x128xf32>
    %157 = vector.shape_cast %156 : vector<1x1x128xf32> to vector<1x128xf32>
    %cst_67 = arith.constant dense<0.000000e+00> : vector<8xf32>
    %158 = vector.multi_reduction <add>, %153, %cst_67 [1] : vector<8x128xf32> to vector<8xf32>
    %159 = vector.shape_cast %158 : vector<8xf32> to vector<8x1xf32>
    %cst_68 = arith.constant 1.280000e+02 : f32
    %160 = vector.broadcast %cst_68 : f32 to vector<8x1xf32>
    %161 = arith.divf %159, %160 : vector<8x1xf32>
    %162 = vector.broadcast %161 : vector<8x1xf32> to vector<8x128xf32>
    %163 = arith.subf %153, %162 : vector<8x128xf32>
    %164 = arith.mulf %163, %163 : vector<8x128xf32>
    %cst_69 = arith.constant dense<0.000000e+00> : vector<8xf32>
    %165 = vector.multi_reduction <add>, %164, %cst_69 [1] : vector<8x128xf32> to vector<8xf32>
    %166 = vector.shape_cast %165 : vector<8xf32> to vector<8x1xf32>
    %cst_70 = arith.constant 1.280000e+02 : f32
    %167 = vector.broadcast %cst_70 : f32 to vector<8x1xf32>
    %168 = arith.divf %166, %167 : vector<8x1xf32>
    %cst_71 = arith.constant 9.99999974E-6 : f32
    %169 = vector.broadcast %cst_71 : f32 to vector<8x1xf32>
    %170 = arith.addf %168, %169 : vector<8x1xf32>
    %171 = math.rsqrt %170 : vector<8x1xf32>
    %172 = vector.broadcast %171 : vector<8x1xf32> to vector<8x128xf32>
    %173 = arith.mulf %163, %172 : vector<8x128xf32>
    %174 = vector.broadcast %155 : vector<1x128xf32> to vector<8x128xf32>
    %175 = arith.mulf %173, %174 : vector<8x128xf32>
    %176 = vector.broadcast %157 : vector<1x128xf32> to vector<8x128xf32>
    %177 = arith.addf %175, %176 : vector<8x128xf32>
    %178 = arith.truncf %177 : vector<8x128xf32> to vector<8x128xbf16>
    %c1 = arith.constant 1 : index
    %c0_72 = arith.constant 0 : index
    %c0_73 = arith.constant 0 : index
    %179 = vector.load %arg2[%c1, %c0_72, %c0_73] : memref<2x128x384xbf16, #tpu.memory_space<vmem>>, vector<1x128x384xbf16>
    %180 = vector.shape_cast %179 : vector<1x128x384xbf16> to vector<128x384xbf16>
    %cst_74 = arith.constant dense<0.000000e+00> : vector<8x384xf32>
    %181 = tpu.matmul %178, %180, %cst_74 {dimension_numbers = #tpu.dot_dimension_numbers<[1], [0], [0], [1], [0, 0, 1, 1], [], []>} : vector<8x128xbf16>, vector<128x384xbf16>, vector<8x384xf32> -> vector<8x384xf32>
    %c1_75 = arith.constant 1 : index
    %c0_76 = arith.constant 0 : index
    %c0_77 = arith.constant 0 : index
    %182 = vector.load %arg3[%c1_75, %c0_76, %c0_77] : memref<2x1x384xf32, #tpu.memory_space<vmem>>, vector<1x1x384xf32>
    %183 = vector.shape_cast %182 : vector<1x1x384xf32> to vector<1x384xf32>
    %184 = vector.broadcast %183 : vector<1x384xf32> to vector<8x384xf32>
    %185 = arith.addf %181, %184 : vector<8x384xf32>
    %186 = vector.extract_strided_slice %185 {offsets = [0, 0], sizes = [8, 128], strides = [1, 1]} : vector<8x384xf32> to vector<8x128xf32>
    %187 = vector.shape_cast %186 : vector<8x128xf32> to vector<1x8x128xf32>
    %188 = vector.extract_strided_slice %185 {offsets = [0, 128], sizes = [8, 128], strides = [1, 1]} : vector<8x384xf32> to vector<8x128xf32>
    %189 = vector.shape_cast %188 : vector<8x128xf32> to vector<1x8x128xf32>
    %190 = vector.extract_strided_slice %185 {offsets = [0, 256], sizes = [8, 128], strides = [1, 1]} : vector<8x384xf32> to vector<8x128xf32>
    %191 = vector.shape_cast %190 : vector<8x128xf32> to vector<1x8x128xf32>
    %192 = vector.extract_strided_slice %187 {offsets = [0, 0, 0], sizes = [1, 8, 32], strides = [1, 1, 1]} : vector<1x8x128xf32> to vector<1x8x32xf32>
    %193 = arith.truncf %192 : vector<1x8x32xf32> to vector<1x8x32xbf16>
    %194 = vector.extract_strided_slice %189 {offsets = [0, 0, 0], sizes = [1, 8, 32], strides = [1, 1, 1]} : vector<1x8x128xf32> to vector<1x8x32xf32>
    %195 = arith.truncf %194 : vector<1x8x32xf32> to vector<1x8x32xbf16>
    %196 = vector.extract_strided_slice %191 {offsets = [0, 0, 0], sizes = [1, 8, 32], strides = [1, 1, 1]} : vector<1x8x128xf32> to vector<1x8x32xf32>
    %197 = arith.truncf %196 : vector<1x8x32xf32> to vector<1x8x32xbf16>
    "tpu.trace_start"() <{level = 10 : i32, message = "bqe,bke->bqk"}> : () -> ()
    %cst_78 = arith.constant dense<0.000000e+00> : vector<1x8x8xf32>
    %198 = tpu.matmul %193, %195, %cst_78 {dimension_numbers = #tpu.dot_dimension_numbers<[2], [2], [1], [1], [0, 0, 0, 1, 1, 1], [0], [0]>} : vector<1x8x32xbf16>, vector<1x8x32xbf16>, vector<1x8x8xf32> -> vector<1x8x8xf32>
    "tpu.trace_stop"() : () -> ()
    %cst_79 = arith.constant 0.176776692 : f32
    %199 = vector.broadcast %cst_79 : f32 to vector<1x8x8xf32>
    %200 = arith.mulf %198, %199 : vector<1x8x8xf32>
    %cst_80 = arith.constant dense<0xFF800000> : vector<1x8xf32>
    %201 = vector.multi_reduction <maximumf>, %200, %cst_80 [2] : vector<1x8x8xf32> to vector<1x8xf32>
    %202 = vector.shape_cast %201 : vector<1x8xf32> to vector<1x8x1xf32>
    %203 = vector.broadcast %202 : vector<1x8x1xf32> to vector<1x8x8xf32>
    %204 = arith.subf %200, %203 : vector<1x8x8xf32>
    %205 = math.exp %204 : vector<1x8x8xf32>
    %cst_81 = arith.constant dense<0.000000e+00> : vector<1x8xf32>
    %206 = vector.multi_reduction <add>, %205, %cst_81 [2] : vector<1x8x8xf32> to vector<1x8xf32>
    %207 = vector.shape_cast %206 : vector<1x8xf32> to vector<1x8x1xf32>
    %208 = tpu.reciprocal %207 {approx = true} : vector<1x8x1xf32> -> vector<1x8x1xf32>
    %209 = vector.broadcast %208 : vector<1x8x1xf32> to vector<1x8x8xf32>
    %210 = arith.mulf %205, %209 : vector<1x8x8xf32>
    %211 = arith.truncf %210 : vector<1x8x8xf32> to vector<1x8x8xbf16>
    "tpu.trace_start"() <{level = 10 : i32, message = "bqk,bke->bqe"}> : () -> ()
    %cst_82 = arith.constant dense<0.000000e+00> : vector<1x8x32xf32>
    %212 = tpu.matmul %211, %197, %cst_82 {dimension_numbers = #tpu.dot_dimension_numbers<[2], [1], [1], [2], [0, 0, 0, 1, 1, 2], [0], [0]>} : vector<1x8x8xbf16>, vector<1x8x32xbf16>, vector<1x8x32xf32> -> vector<1x8x32xf32>
    "tpu.trace_stop"() : () -> ()
    %213 = vector.extract_strided_slice %187 {offsets = [0, 0, 32], sizes = [1, 8, 32], strides = [1, 1, 1]} : vector<1x8x128xf32> to vector<1x8x32xf32>
    %214 = arith.truncf %213 : vector<1x8x32xf32> to vector<1x8x32xbf16>
    %215 = vector.extract_strided_slice %189 {offsets = [0, 0, 32], sizes = [1, 8, 32], strides = [1, 1, 1]} : vector<1x8x128xf32> to vector<1x8x32xf32>
    %216 = arith.truncf %215 : vector<1x8x32xf32> to vector<1x8x32xbf16>
    %217 = vector.extract_strided_slice %191 {offsets = [0, 0, 32], sizes = [1, 8, 32], strides = [1, 1, 1]} : vector<1x8x128xf32> to vector<1x8x32xf32>
    %218 = arith.truncf %217 : vector<1x8x32xf32> to vector<1x8x32xbf16>
    "tpu.trace_start"() <{level = 10 : i32, message = "bqe,bke->bqk"}> : () -> ()
    %cst_83 = arith.constant dense<0.000000e+00> : vector<1x8x8xf32>
    %219 = tpu.matmul %214, %216, %cst_83 {dimension_numbers = #tpu.dot_dimension_numbers<[2], [2], [1], [1], [0, 0, 0, 1, 1, 1], [0], [0]>} : vector<1x8x32xbf16>, vector<1x8x32xbf16>, vector<1x8x8xf32> -> vector<1x8x8xf32>
    "tpu.trace_stop"() : () -> ()
    %cst_84 = arith.constant 0.176776692 : f32
    %220 = vector.broadcast %cst_84 : f32 to vector<1x8x8xf32>
    %221 = arith.mulf %219, %220 : vector<1x8x8xf32>
    %cst_85 = arith.constant dense<0xFF800000> : vector<1x8xf32>
    %222 = vector.multi_reduction <maximumf>, %221, %cst_85 [2] : vector<1x8x8xf32> to vector<1x8xf32>
    %223 = vector.shape_cast %222 : vector<1x8xf32> to vector<1x8x1xf32>
    %224 = vector.broadcast %223 : vector<1x8x1xf32> to vector<1x8x8xf32>
    %225 = arith.subf %221, %224 : vector<1x8x8xf32>
    %226 = math.exp %225 : vector<1x8x8xf32>
    %cst_86 = arith.constant dense<0.000000e+00> : vector<1x8xf32>
    %227 = vector.multi_reduction <add>, %226, %cst_86 [2] : vector<1x8x8xf32> to vector<1x8xf32>
    %228 = vector.shape_cast %227 : vector<1x8xf32> to vector<1x8x1xf32>
    %229 = tpu.reciprocal %228 {approx = true} : vector<1x8x1xf32> -> vector<1x8x1xf32>
    %230 = vector.broadcast %229 : vector<1x8x1xf32> to vector<1x8x8xf32>
    %231 = arith.mulf %226, %230 : vector<1x8x8xf32>
    %232 = arith.truncf %231 : vector<1x8x8xf32> to vector<1x8x8xbf16>
    "tpu.trace_start"() <{level = 10 : i32, message = "bqk,bke->bqe"}> : () -> ()
    %cst_87 = arith.constant dense<0.000000e+00> : vector<1x8x32xf32>
    %233 = tpu.matmul %232, %218, %cst_87 {dimension_numbers = #tpu.dot_dimension_numbers<[2], [1], [1], [2], [0, 0, 0, 1, 1, 2], [0], [0]>} : vector<1x8x8xbf16>, vector<1x8x32xbf16>, vector<1x8x32xf32> -> vector<1x8x32xf32>
    "tpu.trace_stop"() : () -> ()
    %234 = vector.extract_strided_slice %187 {offsets = [0, 0, 64], sizes = [1, 8, 32], strides = [1, 1, 1]} : vector<1x8x128xf32> to vector<1x8x32xf32>
    %235 = arith.truncf %234 : vector<1x8x32xf32> to vector<1x8x32xbf16>
    %236 = vector.extract_strided_slice %189 {offsets = [0, 0, 64], sizes = [1, 8, 32], strides = [1, 1, 1]} : vector<1x8x128xf32> to vector<1x8x32xf32>
    %237 = arith.truncf %236 : vector<1x8x32xf32> to vector<1x8x32xbf16>
    %238 = vector.extract_strided_slice %191 {offsets = [0, 0, 64], sizes = [1, 8, 32], strides = [1, 1, 1]} : vector<1x8x128xf32> to vector<1x8x32xf32>
    %239 = arith.truncf %238 : vector<1x8x32xf32> to vector<1x8x32xbf16>
    "tpu.trace_start"() <{level = 10 : i32, message = "bqe,bke->bqk"}> : () -> ()
    %cst_88 = arith.constant dense<0.000000e+00> : vector<1x8x8xf32>
    %240 = tpu.matmul %235, %237, %cst_88 {dimension_numbers = #tpu.dot_dimension_numbers<[2], [2], [1], [1], [0, 0, 0, 1, 1, 1], [0], [0]>} : vector<1x8x32xbf16>, vector<1x8x32xbf16>, vector<1x8x8xf32> -> vector<1x8x8xf32>
    "tpu.trace_stop"() : () -> ()
    %cst_89 = arith.constant 0.176776692 : f32
    %241 = vector.broadcast %cst_89 : f32 to vector<1x8x8xf32>
    %242 = arith.mulf %240, %241 : vector<1x8x8xf32>
    %cst_90 = arith.constant dense<0xFF800000> : vector<1x8xf32>
    %243 = vector.multi_reduction <maximumf>, %242, %cst_90 [2] : vector<1x8x8xf32> to vector<1x8xf32>
    %244 = vector.shape_cast %243 : vector<1x8xf32> to vector<1x8x1xf32>
    %245 = vector.broadcast %244 : vector<1x8x1xf32> to vector<1x8x8xf32>
    %246 = arith.subf %242, %245 : vector<1x8x8xf32>
    %247 = math.exp %246 : vector<1x8x8xf32>
    %cst_91 = arith.constant dense<0.000000e+00> : vector<1x8xf32>
    %248 = vector.multi_reduction <add>, %247, %cst_91 [2] : vector<1x8x8xf32> to vector<1x8xf32>
    %249 = vector.shape_cast %248 : vector<1x8xf32> to vector<1x8x1xf32>
    %250 = tpu.reciprocal %249 {approx = true} : vector<1x8x1xf32> -> vector<1x8x1xf32>
    %251 = vector.broadcast %250 : vector<1x8x1xf32> to vector<1x8x8xf32>
    %252 = arith.mulf %247, %251 : vector<1x8x8xf32>
    %253 = arith.truncf %252 : vector<1x8x8xf32> to vector<1x8x8xbf16>
    "tpu.trace_start"() <{level = 10 : i32, message = "bqk,bke->bqe"}> : () -> ()
    %cst_92 = arith.constant dense<0.000000e+00> : vector<1x8x32xf32>
    %254 = tpu.matmul %253, %239, %cst_92 {dimension_numbers = #tpu.dot_dimension_numbers<[2], [1], [1], [2], [0, 0, 0, 1, 1, 2], [0], [0]>} : vector<1x8x8xbf16>, vector<1x8x32xbf16>, vector<1x8x32xf32> -> vector<1x8x32xf32>
    "tpu.trace_stop"() : () -> ()
    %255 = vector.extract_strided_slice %187 {offsets = [0, 0, 96], sizes = [1, 8, 32], strides = [1, 1, 1]} : vector<1x8x128xf32> to vector<1x8x32xf32>
    %256 = arith.truncf %255 : vector<1x8x32xf32> to vector<1x8x32xbf16>
    %257 = vector.extract_strided_slice %189 {offsets = [0, 0, 96], sizes = [1, 8, 32], strides = [1, 1, 1]} : vector<1x8x128xf32> to vector<1x8x32xf32>
    %258 = arith.truncf %257 : vector<1x8x32xf32> to vector<1x8x32xbf16>
    %259 = vector.extract_strided_slice %191 {offsets = [0, 0, 96], sizes = [1, 8, 32], strides = [1, 1, 1]} : vector<1x8x128xf32> to vector<1x8x32xf32>
    %260 = arith.truncf %259 : vector<1x8x32xf32> to vector<1x8x32xbf16>
    "tpu.trace_start"() <{level = 10 : i32, message = "bqe,bke->bqk"}> : () -> ()
    %cst_93 = arith.constant dense<0.000000e+00> : vector<1x8x8xf32>
    %261 = tpu.matmul %256, %258, %cst_93 {dimension_numbers = #tpu.dot_dimension_numbers<[2], [2], [1], [1], [0, 0, 0, 1, 1, 1], [0], [0]>} : vector<1x8x32xbf16>, vector<1x8x32xbf16>, vector<1x8x8xf32> -> vector<1x8x8xf32>
    "tpu.trace_stop"() : () -> ()
    %cst_94 = arith.constant 0.176776692 : f32
    %262 = vector.broadcast %cst_94 : f32 to vector<1x8x8xf32>
    %263 = arith.mulf %261, %262 : vector<1x8x8xf32>
    %cst_95 = arith.constant dense<0xFF800000> : vector<1x8xf32>
    %264 = vector.multi_reduction <maximumf>, %263, %cst_95 [2] : vector<1x8x8xf32> to vector<1x8xf32>
    %265 = vector.shape_cast %264 : vector<1x8xf32> to vector<1x8x1xf32>
    %266 = vector.broadcast %265 : vector<1x8x1xf32> to vector<1x8x8xf32>
    %267 = arith.subf %263, %266 : vector<1x8x8xf32>
    %268 = math.exp %267 : vector<1x8x8xf32>
    %cst_96 = arith.constant dense<0.000000e+00> : vector<1x8xf32>
    %269 = vector.multi_reduction <add>, %268, %cst_96 [2] : vector<1x8x8xf32> to vector<1x8xf32>
    %270 = vector.shape_cast %269 : vector<1x8xf32> to vector<1x8x1xf32>
    %271 = tpu.reciprocal %270 {approx = true} : vector<1x8x1xf32> -> vector<1x8x1xf32>
    %272 = vector.broadcast %271 : vector<1x8x1xf32> to vector<1x8x8xf32>
    %273 = arith.mulf %268, %272 : vector<1x8x8xf32>
    %274 = arith.truncf %273 : vector<1x8x8xf32> to vector<1x8x8xbf16>
    "tpu.trace_start"() <{level = 10 : i32, message = "bqk,bke->bqe"}> : () -> ()
    %cst_97 = arith.constant dense<0.000000e+00> : vector<1x8x32xf32>
    %275 = tpu.matmul %274, %260, %cst_97 {dimension_numbers = #tpu.dot_dimension_numbers<[2], [1], [1], [2], [0, 0, 0, 1, 1, 2], [0], [0]>} : vector<1x8x8xbf16>, vector<1x8x32xbf16>, vector<1x8x32xf32> -> vector<1x8x32xf32>
    "tpu.trace_stop"() : () -> ()
    %276 = tpu.concatenate %212, %233, %254, %275 in 2 : vector<1x8x32xf32>, vector<1x8x32xf32>, vector<1x8x32xf32>, vector<1x8x32xf32> -> vector<1x8x128xf32>
    %277 = vector.shape_cast %276 : vector<1x8x128xf32> to vector<8x128xf32>
    %278 = arith.truncf %277 : vector<8x128xf32> to vector<8x128xbf16>
    %c1_98 = arith.constant 1 : index
    %c0_99 = arith.constant 0 : index
    %c0_100 = arith.constant 0 : index
    %279 = vector.load %arg4[%c1_98, %c0_99, %c0_100] : memref<2x128x128xbf16, #tpu.memory_space<vmem>>, vector<1x128x128xbf16>
    %280 = vector.shape_cast %279 : vector<1x128x128xbf16> to vector<128x128xbf16>
    %cst_101 = arith.constant dense<0.000000e+00> : vector<8x128xf32>
    %281 = tpu.matmul %278, %280, %cst_101 {dimension_numbers = #tpu.dot_dimension_numbers<[1], [0], [0], [1], [0, 0, 1, 1], [], []>} : vector<8x128xbf16>, vector<128x128xbf16>, vector<8x128xf32> -> vector<8x128xf32>
    %c1_102 = arith.constant 1 : index
    %c0_103 = arith.constant 0 : index
    %c0_104 = arith.constant 0 : index
    %282 = vector.load %arg5[%c1_102, %c0_103, %c0_104] : memref<2x1x128xf32, #tpu.memory_space<vmem>>, vector<1x1x128xf32>
    %283 = vector.shape_cast %282 : vector<1x1x128xf32> to vector<1x128xf32>
    %284 = vector.broadcast %283 : vector<1x128xf32> to vector<8x128xf32>
    %285 = arith.addf %281, %284 : vector<8x128xf32>
    %286 = arith.addf %177, %285 : vector<8x128xf32>
    %c1_105 = arith.constant 1 : index
    %c0_106 = arith.constant 0 : index
    %c0_107 = arith.constant 0 : index
    %287 = vector.load %arg6[%c1_105, %c0_106, %c0_107] : memref<2x1x128xf32, #tpu.memory_space<vmem>>, vector<1x1x128xf32>
    %288 = vector.shape_cast %287 : vector<1x1x128xf32> to vector<1x128xf32>
    %c1_108 = arith.constant 1 : index
    %c0_109 = arith.constant 0 : index
    %c0_110 = arith.constant 0 : index
    %289 = vector.load %arg7[%c1_108, %c0_109, %c0_110] : memref<2x1x128xf32, #tpu.memory_space<vmem>>, vector<1x1x128xf32>
    %290 = vector.shape_cast %289 : vector<1x1x128xf32> to vector<1x128xf32>
    %cst_111 = arith.constant dense<0.000000e+00> : vector<8xf32>
    %291 = vector.multi_reduction <add>, %286, %cst_111 [1] : vector<8x128xf32> to vector<8xf32>
    %292 = vector.shape_cast %291 : vector<8xf32> to vector<8x1xf32>
    %cst_112 = arith.constant 1.280000e+02 : f32
    %293 = vector.broadcast %cst_112 : f32 to vector<8x1xf32>
    %294 = arith.divf %292, %293 : vector<8x1xf32>
    %295 = vector.broadcast %294 : vector<8x1xf32> to vector<8x128xf32>
    %296 = arith.subf %286, %295 : vector<8x128xf32>
    %297 = arith.mulf %296, %296 : vector<8x128xf32>
    %cst_113 = arith.constant dense<0.000000e+00> : vector<8xf32>
    %298 = vector.multi_reduction <add>, %297, %cst_113 [1] : vector<8x128xf32> to vector<8xf32>
    %299 = vector.shape_cast %298 : vector<8xf32> to vector<8x1xf32>
    %cst_114 = arith.constant 1.280000e+02 : f32
    %300 = vector.broadcast %cst_114 : f32 to vector<8x1xf32>
    %301 = arith.divf %299, %300 : vector<8x1xf32>
    %cst_115 = arith.constant 9.99999974E-6 : f32
    %302 = vector.broadcast %cst_115 : f32 to vector<8x1xf32>
    %303 = arith.addf %301, %302 : vector<8x1xf32>
    %304 = math.rsqrt %303 : vector<8x1xf32>
    %305 = vector.broadcast %304 : vector<8x1xf32> to vector<8x128xf32>
    %306 = arith.mulf %296, %305 : vector<8x128xf32>
    %307 = vector.broadcast %288 : vector<1x128xf32> to vector<8x128xf32>
    %308 = arith.mulf %306, %307 : vector<8x128xf32>
    %309 = vector.broadcast %290 : vector<1x128xf32> to vector<8x128xf32>
    %310 = arith.addf %308, %309 : vector<8x128xf32>
    %311 = arith.truncf %310 : vector<8x128xf32> to vector<8x128xbf16>
    %c1_116 = arith.constant 1 : index
    %c0_117 = arith.constant 0 : index
    %c0_118 = arith.constant 0 : index
    %312 = vector.load %arg8[%c1_116, %c0_117, %c0_118] : memref<2x128x128xbf16, #tpu.memory_space<vmem>>, vector<1x128x128xbf16>
    %313 = vector.shape_cast %312 : vector<1x128x128xbf16> to vector<128x128xbf16>
    %cst_119 = arith.constant dense<0.000000e+00> : vector<8x128xf32>
    %314 = tpu.matmul %311, %313, %cst_119 {dimension_numbers = #tpu.dot_dimension_numbers<[1], [0], [0], [1], [0, 0, 1, 1], [], []>} : vector<8x128xbf16>, vector<128x128xbf16>, vector<8x128xf32> -> vector<8x128xf32>
    %c1_120 = arith.constant 1 : index
    %c0_121 = arith.constant 0 : index
    %c0_122 = arith.constant 0 : index
    %315 = vector.load %arg9[%c1_120, %c0_121, %c0_122] : memref<2x1x128xf32, #tpu.memory_space<vmem>>, vector<1x1x128xf32>
    %316 = vector.shape_cast %315 : vector<1x1x128xf32> to vector<1x128xf32>
    %317 = vector.broadcast %316 : vector<1x128xf32> to vector<8x128xf32>
    %318 = arith.addf %314, %317 : vector<8x128xf32>
    %cst_123 = arith.constant 0.000000e+00 : f32
    %319 = vector.broadcast %cst_123 : f32 to vector<8x128xf32>
    %320 = arith.maximumf %318, %319 : vector<8x128xf32>
    %321 = arith.truncf %320 : vector<8x128xf32> to vector<8x128xbf16>
    %c1_124 = arith.constant 1 : index
    %c0_125 = arith.constant 0 : index
    %c0_126 = arith.constant 0 : index
    %322 = vector.load %arg10[%c1_124, %c0_125, %c0_126] : memref<2x128x128xbf16, #tpu.memory_space<vmem>>, vector<1x128x128xbf16>
    %323 = vector.shape_cast %322 : vector<1x128x128xbf16> to vector<128x128xbf16>
    %cst_127 = arith.constant dense<0.000000e+00> : vector<8x128xf32>
    %324 = tpu.matmul %321, %323, %cst_127 {dimension_numbers = #tpu.dot_dimension_numbers<[1], [0], [0], [1], [0, 0, 1, 1], [], []>} : vector<8x128xbf16>, vector<128x128xbf16>, vector<8x128xf32> -> vector<8x128xf32>
    %c1_128 = arith.constant 1 : index
    %c0_129 = arith.constant 0 : index
    %c0_130 = arith.constant 0 : index
    %325 = vector.load %arg11[%c1_128, %c0_129, %c0_130] : memref<2x1x128xf32, #tpu.memory_space<vmem>>, vector<1x1x128xf32>
    %326 = vector.shape_cast %325 : vector<1x1x128xf32> to vector<1x128xf32>
    %327 = vector.broadcast %326 : vector<1x128xf32> to vector<8x128xf32>
    %328 = arith.addf %324, %327 : vector<8x128xf32>
    %329 = arith.addf %310, %328 : vector<8x128xf32>
    %c1_131 = arith.constant 1 : index
    %c0_132 = arith.constant 0 : index
    %c0_133 = arith.constant 0 : index
    %330 = vector.load %arg12[%c1_131, %c0_132, %c0_133] : memref<2x1x128xf32, #tpu.memory_space<vmem>>, vector<1x1x128xf32>
    %331 = vector.shape_cast %330 : vector<1x1x128xf32> to vector<1x128xf32>
    %c1_134 = arith.constant 1 : index
    %c0_135 = arith.constant 0 : index
    %c0_136 = arith.constant 0 : index
    %332 = vector.load %arg13[%c1_134, %c0_135, %c0_136] : memref<2x1x128xf32, #tpu.memory_space<vmem>>, vector<1x1x128xf32>
    %333 = vector.shape_cast %332 : vector<1x1x128xf32> to vector<1x128xf32>
    %cst_137 = arith.constant dense<0.000000e+00> : vector<8xf32>
    %334 = vector.multi_reduction <add>, %329, %cst_137 [1] : vector<8x128xf32> to vector<8xf32>
    %335 = vector.shape_cast %334 : vector<8xf32> to vector<8x1xf32>
    %cst_138 = arith.constant 1.280000e+02 : f32
    %336 = vector.broadcast %cst_138 : f32 to vector<8x1xf32>
    %337 = arith.divf %335, %336 : vector<8x1xf32>
    %338 = vector.broadcast %337 : vector<8x1xf32> to vector<8x128xf32>
    %339 = arith.subf %329, %338 : vector<8x128xf32>
    %340 = arith.mulf %339, %339 : vector<8x128xf32>
    %cst_139 = arith.constant dense<0.000000e+00> : vector<8xf32>
    %341 = vector.multi_reduction <add>, %340, %cst_139 [1] : vector<8x128xf32> to vector<8xf32>
    %342 = vector.shape_cast %341 : vector<8xf32> to vector<8x1xf32>
    %cst_140 = arith.constant 1.280000e+02 : f32
    %343 = vector.broadcast %cst_140 : f32 to vector<8x1xf32>
    %344 = arith.divf %342, %343 : vector<8x1xf32>
    %cst_141 = arith.constant 9.99999974E-6 : f32
    %345 = vector.broadcast %cst_141 : f32 to vector<8x1xf32>
    %346 = arith.addf %344, %345 : vector<8x1xf32>
    %347 = math.rsqrt %346 : vector<8x1xf32>
    %348 = vector.broadcast %347 : vector<8x1xf32> to vector<8x128xf32>
    %349 = arith.mulf %339, %348 : vector<8x128xf32>
    %350 = vector.broadcast %331 : vector<1x128xf32> to vector<8x128xf32>
    %351 = arith.mulf %349, %350 : vector<8x128xf32>
    %352 = vector.broadcast %333 : vector<1x128xf32> to vector<8x128xf32>
    %353 = arith.addf %351, %352 : vector<8x128xf32>
    %c0_142 = arith.constant 0 : index
    %c0_143 = arith.constant 0 : index
    %354 = vector.load %arg14[%c0_142, %c0_143] : memref<1x128xf32, #tpu.memory_space<vmem>>, vector<1x128xf32>
    %355 = vector.broadcast %354 : vector<1x128xf32> to vector<8x128xf32>
    %356 = arith.mulf %353, %355 : vector<8x128xf32>
    %cst_144 = arith.constant dense<0.000000e+00> : vector<8xf32>
    %357 = vector.multi_reduction <add>, %356, %cst_144 [1] : vector<8x128xf32> to vector<8xf32>
    %358 = vector.shape_cast %357 : vector<8xf32> to vector<1x1x8xf32>
    %c0_145 = arith.constant 0 : index
    %c0_146 = arith.constant 0 : index
    %359 = vector.load %arg15[%c0_145, %c0_146] : memref<1x1xf32, #tpu.memory_space<vmem>>, vector<1x1xf32>
    %360 = vector.shape_cast %359 : vector<1x1xf32> to vector<1x1x1xf32>
    %361 = vector.broadcast %360 : vector<1x1x1xf32> to vector<1x1x8xf32>
    %362 = arith.addf %358, %361 : vector<1x1x8xf32>
    %c0_147 = arith.constant 0 : index
    %c0_148 = arith.constant 0 : index
    %c0_149 = arith.constant 0 : index
    %363 = vector.load %arg16[%c0_147, %c0_148, %c0_149] : memref<1x1x8xf32, #tpu.memory_space<vmem>>, vector<1x1x8xf32>
    tpu.vector_store %arg16[%c0_147, %c0_148, %c0_149], %362 {strides = array<i32>} : memref<1x1x8xf32, #tpu.memory_space<vmem>>, vector<1x1x8xf32>,
    return
  }
  func.func @transform_0(%arg0: i32) -> (i32, i32, i32) {
    %c0_i32 = arith.constant 0 : i32
    %c0_i32_0 = arith.constant 0 : i32
    %c0_i32_1 = arith.constant 0 : i32
    return %arg0, %c0_i32, %c0_i32_0 : i32, i32, i32
  }
  func.func @transform_1(%arg0: i32) -> (i32, i32, i32) {
    %c0_i32 = arith.constant 0 : i32
    %c0_i32_0 = arith.constant 0 : i32
    %c0_i32_1 = arith.constant 0 : i32
    %c0_i32_2 = arith.constant 0 : i32
    return %c0_i32, %c0_i32_0, %c0_i32_1 : i32, i32, i32
  }
  func.func @transform_2(%arg0: i32) -> (i32, i32, i32) {
    %c0_i32 = arith.constant 0 : i32
    %c0_i32_0 = arith.constant 0 : i32
    %c0_i32_1 = arith.constant 0 : i32
    %c0_i32_2 = arith.constant 0 : i32
    return %c0_i32, %c0_i32_0, %c0_i32_1 : i32, i32, i32
  }
  func.func @transform_3(%arg0: i32) -> (i32, i32, i32) {
    %c0_i32 = arith.constant 0 : i32
    %c0_i32_0 = arith.constant 0 : i32
    %c0_i32_1 = arith.constant 0 : i32
    %c0_i32_2 = arith.constant 0 : i32
    return %c0_i32, %c0_i32_0, %c0_i32_1 : i32, i32, i32
  }
  func.func @transform_4(%arg0: i32) -> (i32, i32, i32) {
    %c0_i32 = arith.constant 0 : i32
    %c0_i32_0 = arith.constant 0 : i32
    %c0_i32_1 = arith.constant 0 : i32
    %c0_i32_2 = arith.constant 0 : i32
    return %c0_i32, %c0_i32_0, %c0_i32_1 : i32, i32, i32
  }
  func.func @transform_5(%arg0: i32) -> (i32, i32, i32) {
    %c0_i32 = arith.constant 0 : i32
    %c0_i32_0 = arith.constant 0 : i32
    %c0_i32_1 = arith.constant 0 : i32
    %c0_i32_2 = arith.constant 0 : i32
    return %c0_i32, %c0_i32_0, %c0_i32_1 : i32, i32, i32
  }
  func.func @transform_6(%arg0: i32) -> (i32, i32, i32) {
    %c0_i32 = arith.constant 0 : i32
    %c0_i32_0 = arith.constant 0 : i32
    %c0_i32_1 = arith.constant 0 : i32
    %c0_i32_2 = arith.constant 0 : i32
    return %c0_i32, %c0_i32_0, %c0_i32_1 : i32, i32, i32
  }
  func.func @transform_7(%arg0: i32) -> (i32, i32, i32) {
    %c0_i32 = arith.constant 0 : i32
    %c0_i32_0 = arith.constant 0 : i32
    %c0_i32_1 = arith.constant 0 : i32
    %c0_i32_2 = arith.constant 0 : i32
    return %c0_i32, %c0_i32_0, %c0_i32_1 : i32, i32, i32
  }
  func.func @transform_8(%arg0: i32) -> (i32, i32, i32) {
    %c0_i32 = arith.constant 0 : i32
    %c0_i32_0 = arith.constant 0 : i32
    %c0_i32_1 = arith.constant 0 : i32
    %c0_i32_2 = arith.constant 0 : i32
    return %c0_i32, %c0_i32_0, %c0_i32_1 : i32, i32, i32
  }
  func.func @transform_9(%arg0: i32) -> (i32, i32, i32) {
    %c0_i32 = arith.constant 0 : i32
    %c0_i32_0 = arith.constant 0 : i32
    %c0_i32_1 = arith.constant 0 : i32
    %c0_i32_2 = arith.constant 0 : i32
    return %c0_i32, %c0_i32_0, %c0_i32_1 : i32, i32, i32
  }
  func.func @transform_10(%arg0: i32) -> (i32, i32, i32) {
    %c0_i32 = arith.constant 0 : i32
    %c0_i32_0 = arith.constant 0 : i32
    %c0_i32_1 = arith.constant 0 : i32
    %c0_i32_2 = arith.constant 0 : i32
    return %c0_i32, %c0_i32_0, %c0_i32_1 : i32, i32, i32
  }
  func.func @transform_11(%arg0: i32) -> (i32, i32, i32) {
    %c0_i32 = arith.constant 0 : i32
    %c0_i32_0 = arith.constant 0 : i32
    %c0_i32_1 = arith.constant 0 : i32
    %c0_i32_2 = arith.constant 0 : i32
    return %c0_i32, %c0_i32_0, %c0_i32_1 : i32, i32, i32
  }
  func.func @transform_12(%arg0: i32) -> (i32, i32, i32) {
    %c0_i32 = arith.constant 0 : i32
    %c0_i32_0 = arith.constant 0 : i32
    %c0_i32_1 = arith.constant 0 : i32
    %c0_i32_2 = arith.constant 0 : i32
    return %c0_i32, %c0_i32_0, %c0_i32_1 : i32, i32, i32
  }
  func.func @transform_13(%arg0: i32) -> (i32, i32) {
    %c0_i32 = arith.constant 0 : i32
    %c0_i32_0 = arith.constant 0 : i32
    %c0_i32_1 = arith.constant 0 : i32
    return %c0_i32, %c0_i32_0 : i32, i32
  }
  func.func @transform_14(%arg0: i32) -> (i32, i32) {
    %c0_i32 = arith.constant 0 : i32
    %c0_i32_0 = arith.constant 0 : i32
    %c0_i32_1 = arith.constant 0 : i32
    return %c0_i32, %c0_i32_0 : i32, i32
  }
  func.func @transform_15(%arg0: i32) -> (i32, i32, i32) {
    %c0_i32 = arith.constant 0 : i32
    %c0_i32_0 = arith.constant 0 : i32
    %c0_i32_1 = arith.constant 0 : i32
    return %arg0, %c0_i32, %c0_i32_0 : i32, i32, i32
  }
}

</mosaic_0001>

<llo_original>
// kernel: tpu_custom_call.1
$region0: #{tpu_custom_call.1}
  #allocation0 [shape = 'u32[]', space=smem, size = 0x4, offset = 0x4, fixed_abs, tag = 'smem constant byte address 0x4 - core index']
  #allocation1 [shape = 'u32[144,128]{1,0:T(1,128)}', space=vmem, size = 0x12000, scoped, tag = 'internal scratch']
  #allocation2 [shape = 'f32[1,1]{1,0:T(1,128)S(1)}', space=vmem, size = 0x200, scoped, tag = 'scoped memory for tpu_custom_call.1']
  %s0 = inlined_call_operand.hbm [shape: f32[2,8,128], index: 0, kind: input, shape index: {}]
  %s1 = inlined_call_operand.hbm [shape: bf16[2,128,384], index: 1, kind: input, shape index: {}]
  %s2 = inlined_call_operand.vmem [shape: f32[2,1,384], index: 2, kind: input, shape index: {}]
  %s3 = inlined_call_operand.hbm [shape: bf16[2,128,128], index: 3, kind: input, shape index: {}]
  %s4 = inlined_call_operand.vmem [shape: f32[2,1,128], index: 4, kind: input, shape index: {}]
  %s5 = inlined_call_operand.vmem [shape: f32[2,1,128], index: 5, kind: input, shape index: {}]
  %s6 = inlined_call_operand.vmem [shape: f32[2,1,128], index: 6, kind: input, shape index: {}]
  %s7 = inlined_call_operand.hbm [shape: bf16[2,128,128], index: 7, kind: input, shape index: {}]
  %s8 = inlined_call_operand.vmem [shape: f32[2,1,128], index: 8, kind: input, shape index: {}]
  %s9 = inlined_call_operand.hbm [shape: bf16[2,128,128], index: 9, kind: input, shape index: {}]
  %s10 = inlined_call_operand.vmem [shape: f32[2,1,128], index: 10, kind: input, shape index: {}]
  %s11 = inlined_call_operand.vmem [shape: f32[2,1,128], index: 11, kind: input, shape index: {}]
  %s12 = inlined_call_operand.vmem [shape: f32[2,1,128], index: 12, kind: input, shape index: {}]
  %s13 = inlined_call_operand.vmem [shape: f32[1,128], index: 13, kind: input, shape index: {}]
  %s14 = inlined_call_operand.<no memory space> [shape: f32[1,1], index: 14, kind: input, shape index: {}]
  %s15 = inlined_call_operand.hbm [shape: f32[2,1,8], index: 15, kind: output, shape index: {}]
  %s16 = sld [smem:[#allocation0]]
  $region113: #{tpu_custom_call.1} parent=0
    _
  %s18 = ssub.s32 1, %s16
  %s19 = scalar_select 0, %s18, %s16
  %v20 = vstv %s14
  %21 = vst [vmem:[#allocation2] sm:$0x1] %v20
  $region1: #{tpu_custom_call.1} parent=0
    #allocation3 [shape = 'u8[8192]{0}', space=vmem, size = 0x2000, scoped, tag = 'input window, operand 0']
    #allocation4 [shape = 's32[2]{0}', space=sflag, size = 0x8, scoped, tag = 'scoped memory for tpu_custom_call.1']
    #allocation5 [shape = 's32[2]{0}', space=sflag, size = 0x8, scoped, tag = 'scoped memory for tpu_custom_call.1']
    #allocation6 [shape = 'u8[196608]{0}', space=vmem, size = 0x30000, scoped, tag = 'input window, operand 1, single buffered']
    #allocation7 [shape = 's32[1]{0}', space=sflag, size = 0x4, scoped, tag = 'scoped memory for tpu_custom_call.1']
    #allocation8 [shape = 'u8[65536]{0}', space=vmem, size = 0x10000, scoped, tag = 'input window, operand 3, single buffered']
    #allocation9 [shape = 'u8[65536]{0}', space=vmem, size = 0x10000, scoped, tag = 'input window, operand 7, single buffered']
    #allocation10 [shape = 's32[1]{0}', space=sflag, size = 0x4, scoped, tag = 'scoped memory for tpu_custom_call.1']
    #allocation11 [shape = 'u8[65536]{0}', space=vmem, size = 0x10000, scoped, tag = 'input window, operand 9, single buffered']
    #allocation12 [shape = 'u8[1024]{0}', space=vmem, size = 0x400, scoped, tag = 'output window, operand 0']
    %22 = vsyncpa [#allocation4], 0
    %s23 = scalar_lea.sflag [#allocation4], 1
    %24 = vsyncpa %s23, 0
    %25 = vsyncpa [#allocation7], 0
    %26 = vsyncpa [#allocation10], 0
    %27 = vsyncpa [#allocation5], 0
    %s28 = scalar_lea.sflag [#allocation5], 1
    %29 = vsyncpa %s28, 0
    loop: start=0, step=1, limit=4
    $region2: #{tpu_custom_call.1} parent=1 // loop_pre_header
      _
    $region3: #{tpu_custom_call.1} parent=1 // loop_header
      %s31 = sphi 0, %s35
      %p32 = scmp.ge.s32.totalorder %s31, 4
      %s41 = sphi 0, %s43
      %s44 = sphi 0, %s41
      %s45 = sphi 0, %s44
      %s61 = sphi 0, %s45
      %s65 = sphi 0, %s65
      %s67 = sphi 0, %s65
      %s68 = sphi 0, %s67
      %s82 = sphi 0, %s68
      %s86 = sphi 0, %s86
      %s88 = sphi 0, %s86
      %s89 = sphi 0, %s88
      %s103 = sphi 0, %s89
      %s107 = sphi 0, %s107
      %s109 = sphi 0, %s107
      %s110 = sphi 0, %s109
      %s124 = sphi 0, %s110
      %s128 = sphi 0, %s128
      %s130 = sphi 0, %s128
      %s131 = sphi 0, %s130
      %s145 = sphi 0, %s131
      %s149 = sphi 0, %s149
      %s151 = sphi 0, %s149
      %s152 = sphi 0, %s151
      %s166 = sphi 0, %s152
      %s170 = sphi 0, %s170
      %s172 = sphi 0, %s170
      %s173 = sphi 0, %s172
      %s187 = sphi 0, %s173
      %s191 = sphi 0, %s191
      %s193 = sphi 0, %s191
      %s194 = sphi 0, %s193
      %s208 = sphi 0, %s194
      %s212 = sphi 0, %s212
      %s214 = sphi 0, %s212
      %s215 = sphi 0, %s214
      %s229 = sphi 0, %s215
      %s233 = sphi 0, %s233
      %s235 = sphi 0, %s233
      %s236 = sphi 0, %s235
      %s250 = sphi 0, %s236
      %s254 = sphi 0, %s254
      %s256 = sphi 0, %s254
      %s257 = sphi 0, %s256
      %s271 = sphi 0, %s257
      %s275 = sphi 0, %s275
      %s277 = sphi 0, %s275
      %s278 = sphi 0, %s277
      %s292 = sphi 0, %s278
      %s296 = sphi 0, %s296
      %s298 = sphi 0, %s296
      %s299 = sphi 0, %s298
      %s313 = sphi 0, %s299
      %s317 = sphi 0, %s317
      %s319 = sphi 0, %s317
      %s320 = sphi 0, %s319
      %s334 = sphi 0, %s320
      %s338 = sphi 0, %s338
      %s340 = sphi 0, %s338
      %s341 = sphi 0, %s340
      %s355 = sphi 0, %s341
      %s361 = sphi 0, %s363
      %s364 = sphi 0, %s361
      %s365 = sphi 0, %s364
      %s381 = sphi 0, %s365
    $region4: #{tpu_custom_call.1} parent=1 // loop_header_branch
      %34 = sbr.rel (%p32) target = $region8
    $region5: #{tpu_custom_call.1} parent=1 // loop_body
      %s36 = ssub.s32 %s31, 1
      %s37 = ssub.s32 %s31, 2
      %s38 = sadd.s32 %s31, 1
      %s39 = ssub.s32 %s31, %s38
      %p40 = scmp.eq.s32.totalorder %s39, 0
      %s42 = sadd.s32 %s41, 1
      %s43 = scalar_select %p40, %s41, %s42
      %p46 = pneg %p40
      %p47 = scmp.eq.s32.totalorder %s31, 1
      %p48 = por %p46, %p47
      %p49 = scmp.ne.s32.totalorder %s41, %s44
      %p50 = scmp.eq.s32.totalorder %s31, 0
      %p51 = por %p49, %p50
      %p52 = scmp.ne.s32.totalorder %s41, %s44
      %p53 = scmp.eq.s32.totalorder %s36, 1
      %p54 = por %p52, %p53
      %p55 = scmp.ne.s32.totalorder %s44, %s45
      %p56 = scmp.eq.s32.totalorder %s36, 0
      %p57 = por %p55, %p56
      %p58 = scmp.ne.s32.totalorder %s44, %s45
      %p59 = scmp.eq.s32.totalorder %s37, 1
      %p60 = por %p58, %p59
      %p62 = scmp.ne.s32.totalorder %s45, %s61
      %p63 = scmp.eq.s32.totalorder %s37, 0
      %p64 = por %p62, %p63
      %s66 = sadd.s32 %s65, 1
      %p69 = scmp.eq.s32.totalorder %s31, 1
      %p70 = scmp.ne.s32.totalorder %s65, %s67
      %p71 = scmp.eq.s32.totalorder %s31, 0
      %p72 = por %p70, %p71
      %p73 = scmp.ne.s32.totalorder %s65, %s67
      %p74 = scmp.eq.s32.totalorder %s36, 1
      %p75 = por %p73, %p74
      %p76 = scmp.ne.s32.totalorder %s67, %s68
      %p77 = scmp.eq.s32.totalorder %s36, 0
      %p78 = por %p76, %p77
      %p79 = scmp.ne.s32.totalorder %s67, %s68
      %p80 = scmp.eq.s32.totalorder %s37, 1
      %p81 = por %p79, %p80
      %p83 = scmp.ne.s32.totalorder %s68, %s82
      %p84 = scmp.eq.s32.totalorder %s37, 0
      %p85 = por %p83, %p84
      %s87 = sadd.s32 %s86, 1
      %p90 = scmp.eq.s32.totalorder %s31, 1
      %p91 = scmp.ne.s32.totalorder %s86, %s88
      %p92 = scmp.eq.s32.totalorder %s31, 0
      %p93 = por %p91, %p92
      %p94 = scmp.ne.s32.totalorder %s86, %s88
      %p95 = scmp.eq.s32.totalorder %s36, 1
      %p96 = por %p94, %p95
      %p97 = scmp.ne.s32.totalorder %s88, %s89
      %p98 = scmp.eq.s32.totalorder %s36, 0
      %p99 = por %p97, %p98
      %p100 = scmp.ne.s32.totalorder %s88, %s89
      %p101 = scmp.eq.s32.totalorder %s37, 1
      %p102 = por %p100, %p101
      %p104 = scmp.ne.s32.totalorder %s89, %s103
      %p105 = scmp.eq.s32.totalorder %s37, 0
      %p106 = por %p104, %p105
      %s108 = sadd.s32 %s107, 1
      %p111 = scmp.eq.s32.totalorder %s31, 1
      %p112 = scmp.ne.s32.totalorder %s107, %s109
      %p113 = scmp.eq.s32.totalorder %s31, 0
      %p114 = por %p112, %p113
      %p115 = scmp.ne.s32.totalorder %s107, %s109
      %p116 = scmp.eq.s32.totalorder %s36, 1
      %p117 = por %p115, %p116
      %p118 = scmp.ne.s32.totalorder %s109, %s110
      %p119 = scmp.eq.s32.totalorder %s36, 0
      %p120 = por %p118, %p119
      %p121 = scmp.ne.s32.totalorder %s109, %s110
      %p122 = scmp.eq.s32.totalorder %s37, 1
      %p123 = por %p121, %p122
      %p125 = scmp.ne.s32.totalorder %s110, %s124
      %p126 = scmp.eq.s32.totalorder %s37, 0
      %p127 = por %p125, %p126
      %s129 = sadd.s32 %s128, 1
      %p132 = scmp.eq.s32.totalorder %s31, 1
      %p133 = scmp.ne.s32.totalorder %s128, %s130
      %p134 = scmp.eq.s32.totalorder %s31, 0
      %p135 = por %p133, %p134
      %p136 = scmp.ne.s32.totalorder %s128, %s130
      %p137 = scmp.eq.s32.totalorder %s36, 1
      %p138 = por %p136, %p137
      %p139 = scmp.ne.s32.totalorder %s130, %s131
      %p140 = scmp.eq.s32.totalorder %s36, 0
      %p141 = por %p139, %p140
      %p142 = scmp.ne.s32.totalorder %s130, %s131
      %p143 = scmp.eq.s32.totalorder %s37, 1
      %p144 = por %p142, %p143
      %p146 = scmp.ne.s32.totalorder %s131, %s145
      %p147 = scmp.eq.s32.totalorder %s37, 0
      %p148 = por %p146, %p147
      %s150 = sadd.s32 %s149, 1
      %p153 = scmp.eq.s32.totalorder %s31, 1
      %p154 = scmp.ne.s32.totalorder %s149, %s151
      %p155 = scmp.eq.s32.totalorder %s31, 0
      %p156 = por %p154, %p155
      %p157 = scmp.ne.s32.totalorder %s149, %s151
      %p158 = scmp.eq.s32.totalorder %s36, 1
      %p159 = por %p157, %p158
      %p160 = scmp.ne.s32.totalorder %s151, %s152
      %p161 = scmp.eq.s32.totalorder %s36, 0
      %p162 = por %p160, %p161
      %p163 = scmp.ne.s32.totalorder %s151, %s152
      %p164 = scmp.eq.s32.totalorder %s37, 1
      %p165 = por %p163, %p164
      %p167 = scmp.ne.s32.totalorder %s152, %s166
      %p168 = scmp.eq.s32.totalorder %s37, 0
      %p169 = por %p167, %p168
      %s171 = sadd.s32 %s170, 1
      %p174 = scmp.eq.s32.totalorder %s31, 1
      %p175 = scmp.ne.s32.totalorder %s170, %s172
      %p176 = scmp.eq.s32.totalorder %s31, 0
      %p177 = por %p175, %p176
      %p178 = scmp.ne.s32.totalorder %s170, %s172
      %p179 = scmp.eq.s32.totalorder %s36, 1
      %p180 = por %p178, %p179
      %p181 = scmp.ne.s32.totalorder %s172, %s173
      %p182 = scmp.eq.s32.totalorder %s36, 0
      %p183 = por %p181, %p182
      %p184 = scmp.ne.s32.totalorder %s172, %s173
      %p185 = scmp.eq.s32.totalorder %s37, 1
      %p186 = por %p184, %p185
      %p188 = scmp.ne.s32.totalorder %s173, %s187
      %p189 = scmp.eq.s32.totalorder %s37, 0
      %p190 = por %p188, %p189
      %s192 = sadd.s32 %s191, 1
      %p195 = scmp.eq.s32.totalorder %s31, 1
      %p196 = scmp.ne.s32.totalorder %s191, %s193
      %p197 = scmp.eq.s32.totalorder %s31, 0
      %p198 = por %p196, %p197
      %p199 = scmp.ne.s32.totalorder %s191, %s193
      %p200 = scmp.eq.s32.totalorder %s36, 1
      %p201 = por %p199, %p200
      %p202 = scmp.ne.s32.totalorder %s193, %s194
      %p203 = scmp.eq.s32.totalorder %s36, 0
      %p204 = por %p202, %p203
      %p205 = scmp.ne.s32.totalorder %s193, %s194
      %p206 = scmp.eq.s32.totalorder %s37, 1
      %p207 = por %p205, %p206
      %p209 = scmp.ne.s32.totalorder %s194, %s208
      %p210 = scmp.eq.s32.totalorder %s37, 0
      %p211 = por %p209, %p210
      %s213 = sadd.s32 %s212, 1
      %p216 = scmp.eq.s32.totalorder %s31, 1
      %p217 = scmp.ne.s32.totalorder %s212, %s214
      %p218 = scmp.eq.s32.totalorder %s31, 0
      %p219 = por %p217, %p218
      %p220 = scmp.ne.s32.totalorder %s212, %s214
      %p221 = scmp.eq.s32.totalorder %s36, 1
      %p222 = por %p220, %p221
      %p223 = scmp.ne.s32.totalorder %s214, %s215
      %p224 = scmp.eq.s32.totalorder %s36, 0
      %p225 = por %p223, %p224
      %p226 = scmp.ne.s32.totalorder %s214, %s215
      %p227 = scmp.eq.s32.totalorder %s37, 1
      %p228 = por %p226, %p227
      %p230 = scmp.ne.s32.totalorder %s215, %s229
      %p231 = scmp.eq.s32.totalorder %s37, 0
      %p232 = por %p230, %p231
      %s234 = sadd.s32 %s233, 1
      %p237 = scmp.eq.s32.totalorder %s31, 1
      %p238 = scmp.ne.s32.totalorder %s233, %s235
      %p239 = scmp.eq.s32.totalorder %s31, 0
      %p240 = por %p238, %p239
      %p241 = scmp.ne.s32.totalorder %s233, %s235
      %p242 = scmp.eq.s32.totalorder %s36, 1
      %p243 = por %p241, %p242
      %p244 = scmp.ne.s32.totalorder %s235, %s236
      %p245 = scmp.eq.s32.totalorder %s36, 0
      %p246 = por %p244, %p245
      %p247 = scmp.ne.s32.totalorder %s235, %s236
      %p248 = scmp.eq.s32.totalorder %s37, 1
      %p249 = por %p247, %p248
      %p251 = scmp.ne.s32.totalorder %s236, %s250
      %p252 = scmp.eq.s32.totalorder %s37, 0
      %p253 = por %p251, %p252
      %s255 = sadd.s32 %s254, 1
      %p258 = scmp.eq.s32.totalorder %s31, 1
      %p259 = scmp.ne.s32.totalorder %s254, %s256
      %p260 = scmp.eq.s32.totalorder %s31, 0
      %p261 = por %p259, %p260
      %p262 = scmp.ne.s32.totalorder %s254, %s256
      %p263 = scmp.eq.s32.totalorder %s36, 1
      %p264 = por %p262, %p263
      %p265 = scmp.ne.s32.totalorder %s256, %s257
      %p266 = scmp.eq.s32.totalorder %s36, 0
      %p267 = por %p265, %p266
      %p268 = scmp.ne.s32.totalorder %s256, %s257
      %p269 = scmp.eq.s32.totalorder %s37, 1
      %p270 = por %p268, %p269
      %p272 = scmp.ne.s32.totalorder %s257, %s271
      %p273 = scmp.eq.s32.totalorder %s37, 0
      %p274 = por %p272, %p273
      %s276 = sadd.s32 %s275, 1
      %p279 = scmp.eq.s32.totalorder %s31, 1
      %p280 = scmp.ne.s32.totalorder %s275, %s277
      %p281 = scmp.eq.s32.totalorder %s31, 0
      %p282 = por %p280, %p281
      %p283 = scmp.ne.s32.totalorder %s275, %s277
      %p284 = scmp.eq.s32.totalorder %s36, 1
      %p285 = por %p283, %p284
      %p286 = scmp.ne.s32.totalorder %s277, %s278
      %p287 = scmp.eq.s32.totalorder %s36, 0
      %p288 = por %p286, %p287
      %p289 = scmp.ne.s32.totalorder %s277, %s278
      %p290 = scmp.eq.s32.totalorder %s37, 1
      %p291 = por %p289, %p290
      %p293 = scmp.ne.s32.totalorder %s278, %s292
      %p294 = scmp.eq.s32.totalorder %s37, 0
      %p295 = por %p293, %p294
      %s297 = sadd.s32 %s296, 1
      %p300 = scmp.eq.s32.totalorder %s31, 1
      %p301 = scmp.ne.s32.totalorder %s296, %s298
      %p302 = scmp.eq.s32.totalorder %s31, 0
      %p303 = por %p301, %p302
      %p304 = scmp.ne.s32.totalorder %s296, %s298
      %p305 = scmp.eq.s32.totalorder %s36, 1
      %p306 = por %p304, %p305
      %p307 = scmp.ne.s32.totalorder %s298, %s299
      %p308 = scmp.eq.s32.totalorder %s36, 0
      %p309 = por %p307, %p308
      %p310 = scmp.ne.s32.totalorder %s298, %s299
      %p311 = scmp.eq.s32.totalorder %s37, 1
      %p312 = por %p310, %p311
      %p314 = scmp.ne.s32.totalorder %s299, %s313
      %p315 = scmp.eq.s32.totalorder %s37, 0
      %p316 = por %p314, %p315
      %s318 = sadd.s32 %s317, 1
      %p321 = scmp.eq.s32.totalorder %s31, 1
      %p322 = scmp.ne.s32.totalorder %s317, %s319
      %p323 = scmp.eq.s32.totalorder %s31, 0
      %p324 = por %p322, %p323
      %p325 = scmp.ne.s32.totalorder %s317, %s319
      %p326 = scmp.eq.s32.totalorder %s36, 1
      %p327 = por %p325, %p326
      %p328 = scmp.ne.s32.totalorder %s319, %s320
      %p329 = scmp.eq.s32.totalorder %s36, 0
      %p330 = por %p328, %p329
      %p331 = scmp.ne.s32.totalorder %s319, %s320
      %p332 = scmp.eq.s32.totalorder %s37, 1
      %p333 = por %p331, %p332
      %p335 = scmp.ne.s32.totalorder %s320, %s334
      %p336 = scmp.eq.s32.totalorder %s37, 0
      %p337 = por %p335, %p336
      %s339 = sadd.s32 %s338, 1
      %p342 = scmp.eq.s32.totalorder %s31, 1
      %p343 = scmp.ne.s32.totalorder %s338, %s340
      %p344 = scmp.eq.s32.totalorder %s31, 0
      %p345 = por %p343, %p344
      %p346 = scmp.ne.s32.totalorder %s338, %s340
      %p347 = scmp.eq.s32.totalorder %s36, 1
      %p348 = por %p346, %p347
      %p349 = scmp.ne.s32.totalorder %s340, %s341
      %p350 = scmp.eq.s32.totalorder %s36, 0
      %p351 = por %p349, %p350
      %p352 = scmp.ne.s32.totalorder %s340, %s341
      %p353 = scmp.eq.s32.totalorder %s37, 1
      %p354 = por %p352, %p353
      %p356 = scmp.ne.s32.totalorder %s341, %s355
      %p357 = scmp.eq.s32.totalorder %s37, 0
      %p358 = por %p356, %p357
      %s359 = ssub.s32 %s31, %s38
      %p360 = scmp.eq.s32.totalorder %s359, 0
      %s362 = sadd.s32 %s361, 1
      %s363 = scalar_select %p360, %s361, %s362
      %p366 = pneg %p360
      %p367 = scmp.eq.s32.totalorder %s31, 1
      %p368 = por %p366, %p367
      %p369 = scmp.ne.s32.totalorder %s361, %s364
      %p370 = scmp.eq.s32.totalorder %s31, 0
      %p371 = por %p369, %p370
      %p372 = scmp.ne.s32.totalorder %s361, %s364
      %p373 = scmp.eq.s32.totalorder %s36, 1
      %p374 = por %p372, %p373
      %p375 = scmp.ne.s32.totalorder %s364, %s365
      %p376 = scmp.eq.s32.totalorder %s36, 0
      %p377 = por %p375, %p376
      %p378 = scmp.ne.s32.totalorder %s364, %s365
      %p379 = scmp.eq.s32.totalorder %s37, 1
      %p380 = por %p378, %p379
      %p382 = scmp.ne.s32.totalorder %s365, %s381
      %p383 = scmp.eq.s32.totalorder %s37, 0
      %p384 = por %p382, %p383
      %p385 = scmp.le.s32.totalorder 1, %s31
      %p386 = scmp.lt.s32.totalorder %s31, 3
      %p387 = pnand %p385, %p386
      %p388 = pneg %p387
      // Predicated region
      $region9: #{tpu_custom_call.1} parent=5 // pred_check
        _
      $region10: #{tpu_custom_call.1} parent=5 // pred_check_branch
        %390 = sbr.rel (%p387) target = $region12
      $region11: #{tpu_custom_call.1} parent=5 // pred_region
        %s391 = ssub.s32 %s31, 1
        // Predicated region
        $region13: #{tpu_custom_call.1} parent=11 // pred_check
          %p392 = pneg %p78
        $region14: #{tpu_custom_call.1} parent=11 // pred_check_branch
          %394 = sbr.rel (%p392) target = $region16
        $region15: #{tpu_custom_call.1} parent=11 // pred_region
          %s396 = ssub.s32 6144, 6144
          %397 = vsyncadd [#allocation7], %s396
          %s398 = sshll.u32 [#allocation6], 4
          %s399 = int_to_ptr.vmem [resolvable:$true] %s398
          %404 = dma.hbm_to_vmem [thread:$0]  %s1, 6144, %s399, [#allocation7], 192, 192, 12
        $region16: #{tpu_custom_call.1} parent=11 // pred_fallthru
          _
        // Predicated region
        $region17: #{tpu_custom_call.1} parent=11 // pred_check
          %p405 = pneg %p99
        $region18: #{tpu_custom_call.1} parent=11 // pred_check_branch
          %407 = sbr.rel (%p405) target = $region20
        $region19: #{tpu_custom_call.1} parent=11 // pred_region
          _
        $region20: #{tpu_custom_call.1} parent=11 // pred_fallthru
          _
        // Predicated region
        $region21: #{tpu_custom_call.1} parent=11 // pred_check
          %p408 = pneg %p120
        $region22: #{tpu_custom_call.1} parent=11 // pred_check_branch
          %410 = sbr.rel (%p408) target = $region24
        $region23: #{tpu_custom_call.1} parent=11 // pred_region
          %s412 = ssub.s32 2048, 2048
          %413 = vsyncadd [#allocation7], %s412
          %s414 = sshll.u32 [#allocation8], 4
          %s415 = int_to_ptr.vmem [resolvable:$true] %s414
          %420 = dma.hbm_to_vmem [thread:$0]  %s3, 2048, %s415, [#allocation7], 64, 64, 4
        $region24: #{tpu_custom_call.1} parent=11 // pred_fallthru
          _
        // Predicated region
        $region25: #{tpu_custom_call.1} parent=11 // pred_check
          %p421 = pneg %p141
        $region26: #{tpu_custom_call.1} parent=11 // pred_check_branch
          %423 = sbr.rel (%p421) target = $region28
        $region27: #{tpu_custom_call.1} parent=11 // pred_region
          _
        $region28: #{tpu_custom_call.1} parent=11 // pred_fallthru
          _
        // Predicated region
        $region29: #{tpu_custom_call.1} parent=11 // pred_check
          %p424 = pneg %p162
        $region30: #{tpu_custom_call.1} parent=11 // pred_check_branch
          %426 = sbr.rel (%p424) target = $region32
        $region31: #{tpu_custom_call.1} parent=11 // pred_region
          _
        $region32: #{tpu_custom_call.1} parent=11 // pred_fallthru
          _
        // Predicated region
        $region33: #{tpu_custom_call.1} parent=11 // pred_check
          %p427 = pneg %p183
        $region34: #{tpu_custom_call.1} parent=11 // pred_check_branch
          %429 = sbr.rel (%p427) target = $region36
        $region35: #{tpu_custom_call.1} parent=11 // pred_region
          _
        $region36: #{tpu_custom_call.1} parent=11 // pred_fallthru
          _
        // Predicated region
        $region37: #{tpu_custom_call.1} parent=11 // pred_check
          %p430 = pneg %p204
        $region38: #{tpu_custom_call.1} parent=11 // pred_check_branch
          %432 = sbr.rel (%p430) target = $region40
        $region39: #{tpu_custom_call.1} parent=11 // pred_region
          %s434 = ssub.s32 2048, 2048
          %435 = vsyncadd [#allocation10], %s434
          %s436 = sshll.u32 [#allocation9], 4
          %s437 = int_to_ptr.vmem [resolvable:$true] %s436
          %442 = dma.hbm_to_vmem [thread:$0]  %s7, 2048, %s437, [#allocation10], 64, 64, 4
        $region40: #{tpu_custom_call.1} parent=11 // pred_fallthru
          _
        // Predicated region
        $region41: #{tpu_custom_call.1} parent=11 // pred_check
          %p443 = pneg %p225
        $region42: #{tpu_custom_call.1} parent=11 // pred_check_branch
          %445 = sbr.rel (%p443) target = $region44
        $region43: #{tpu_custom_call.1} parent=11 // pred_region
          _
        $region44: #{tpu_custom_call.1} parent=11 // pred_fallthru
          _
        // Predicated region
        $region45: #{tpu_custom_call.1} parent=11 // pred_check
          %p446 = pneg %p246
        $region46: #{tpu_custom_call.1} parent=11 // pred_check_branch
          %448 = sbr.rel (%p446) target = $region48
        $region47: #{tpu_custom_call.1} parent=11 // pred_region
          %s450 = ssub.s32 2048, 2048
          %451 = vsyncadd [#allocation10], %s450
          %s452 = sshll.u32 [#allocation11], 4
          %s453 = int_to_ptr.vmem [resolvable:$true] %s452
          %458 = dma.hbm_to_vmem [thread:$0]  %s9, 2048, %s453, [#allocation10], 64, 64, 4
        $region48: #{tpu_custom_call.1} parent=11 // pred_fallthru
          _
        // Predicated region
        $region49: #{tpu_custom_call.1} parent=11 // pred_check
          %p459 = pneg %p267
        $region50: #{tpu_custom_call.1} parent=11 // pred_check_branch
          %461 = sbr.rel (%p459) target = $region52
        $region51: #{tpu_custom_call.1} parent=11 // pred_region
          _
        $region52: #{tpu_custom_call.1} parent=11 // pred_fallthru
          _
        // Predicated region
        $region53: #{tpu_custom_call.1} parent=11 // pred_check
          %p462 = pneg %p288
        $region54: #{tpu_custom_call.1} parent=11 // pred_check_branch
          %464 = sbr.rel (%p462) target = $region56
        $region55: #{tpu_custom_call.1} parent=11 // pred_region
          _
        $region56: #{tpu_custom_call.1} parent=11 // pred_fallthru
          _
        // Predicated region
        $region57: #{tpu_custom_call.1} parent=11 // pred_check
          %p465 = pneg %p309
        $region58: #{tpu_custom_call.1} parent=11 // pred_check_branch
          %467 = sbr.rel (%p465) target = $region60
        $region59: #{tpu_custom_call.1} parent=11 // pred_region
          _
        $region60: #{tpu_custom_call.1} parent=11 // pred_fallthru
          _
        // Predicated region
        $region61: #{tpu_custom_call.1} parent=11 // pred_check
          %p468 = pneg %p330
        $region62: #{tpu_custom_call.1} parent=11 // pred_check_branch
          %470 = sbr.rel (%p468) target = $region64
        $region63: #{tpu_custom_call.1} parent=11 // pred_region
          _
        $region64: #{tpu_custom_call.1} parent=11 // pred_fallthru
          _
        // Predicated region
        $region65: #{tpu_custom_call.1} parent=11 // pred_check
          %p471 = pneg %p351
        $region66: #{tpu_custom_call.1} parent=11 // pred_check_branch
          %473 = sbr.rel (%p471) target = $region68
        $region67: #{tpu_custom_call.1} parent=11 // pred_region
          _
        $region68: #{tpu_custom_call.1} parent=11 // pred_fallthru
          _
      $region12: #{tpu_custom_call.1} parent=5 // pred_fallthru
        _
      %p474 = scmp.lt.s32.totalorder %s31, 2
      // Predicated region
      $region69: #{tpu_custom_call.1} parent=5 // pred_check
        %p475 = pneg %p474
      $region70: #{tpu_custom_call.1} parent=5 // pred_check_branch
        %477 = sbr.rel (%p475) target = $region72
      $region71: #{tpu_custom_call.1} parent=5 // pred_region
        // Predicated region
        $region73: #{tpu_custom_call.1} parent=71 // pred_check
          %p478 = pneg %p51
        $region74: #{tpu_custom_call.1} parent=71 // pred_check_branch
          %480 = sbr.rel (%p478) target = $region76
        $region75: #{tpu_custom_call.1} parent=71 // pred_region
          %s481 = sand.u32 %s41, 1
          %s482 = scalar_lea.sflag [#allocation4], %s481
          %s483 = sand.u32 %s41, 1
          %s484 = smul.addr %s483, 8
          %s485 = scalar_lea.vmem [#allocation3], %s484
          %s487 = ssub.s32 128, 128
          %488 = vsyncadd %s482, %s487
          %s489 = smul.addr %s31, 128
          %s490 = scalar_lea.hbm %s0, %s489
          %s492 = sshll.u32 %s485, 4
          %s493 = int_to_ptr.vmem [resolvable:$true] %s492
          %495 = dma.hbm_to_vmem [thread:$0]  %s490, 128, %s493, %s482
        $region76: #{tpu_custom_call.1} parent=71 // pred_fallthru
          _
      $region72: #{tpu_custom_call.1} parent=5 // pred_fallthru
        _
      %p496 = scmp.le.s32.totalorder 1, %s31
      %p497 = scmp.lt.s32.totalorder %s31, 3
      %p498 = pnand %p496, %p497
      %p499 = pneg %p498
      // Predicated region
      $region77: #{tpu_custom_call.1} parent=5 // pred_check
        _
      $region78: #{tpu_custom_call.1} parent=5 // pred_check_branch
        %501 = sbr.rel (%p498) target = $region80
      $region79: #{tpu_custom_call.1} parent=5 // pred_region
        %s502 = ssub.s32 %s31, 1
        %s503 = sand.u32 %s44, 1
        %s504 = scalar_lea.sflag [#allocation4], %s503
        %s505 = sand.u32 %s44, 1
        %s506 = smul.addr %s505, 8
        %s507 = scalar_lea.vmem [#allocation3], %s506
        // Predicated region
        $region81: #{tpu_custom_call.1} parent=79 // pred_check
          %p508 = pneg %p57
        $region82: #{tpu_custom_call.1} parent=79 // pred_check_branch
          %510 = sbr.rel (%p508) target = $region84
        $region83: #{tpu_custom_call.1} parent=79 // pred_region
          %511 = dma.done %s504, 128
        $region84: #{tpu_custom_call.1} parent=79 // pred_fallthru
          _
        // Predicated region
        $region85: #{tpu_custom_call.1} parent=79 // pred_check
          %p512 = pneg %p78
        $region86: #{tpu_custom_call.1} parent=79 // pred_check_branch
          %514 = sbr.rel (%p512) target = $region88
        $region87: #{tpu_custom_call.1} parent=79 // pred_region
          %515 = dma.done [#allocation7], 6144
        $region88: #{tpu_custom_call.1} parent=79 // pred_fallthru
          _
        // Predicated region
        $region89: #{tpu_custom_call.1} parent=79 // pred_check
          %p516 = pneg %p120
        $region90: #{tpu_custom_call.1} parent=79 // pred_check_branch
          %518 = sbr.rel (%p516) target = $region92
        $region91: #{tpu_custom_call.1} parent=79 // pred_region
          %519 = dma.done [#allocation7], 2048
        $region92: #{tpu_custom_call.1} parent=79 // pred_fallthru
          _
        // Predicated region
        $region93: #{tpu_custom_call.1} parent=79 // pred_check
          %p520 = pneg %p204
        $region94: #{tpu_custom_call.1} parent=79 // pred_check_branch
          %522 = sbr.rel (%p520) target = $region96
        $region95: #{tpu_custom_call.1} parent=79 // pred_region
          %523 = dma.done [#allocation10], 2048
        $region96: #{tpu_custom_call.1} parent=79 // pred_fallthru
          _
        // Predicated region
        $region97: #{tpu_custom_call.1} parent=79 // pred_check
          %p524 = pneg %p246
        $region98: #{tpu_custom_call.1} parent=79 // pred_check_branch
          %526 = sbr.rel (%p524) target = $region100
        $region99: #{tpu_custom_call.1} parent=79 // pred_region
          %527 = dma.done [#allocation10], 2048
        $region100: #{tpu_custom_call.1} parent=79 // pred_fallthru
          _
        %s528 = sand.u32 %s44, 1
        %s529 = scalar_lea.sflag [#allocation4], %s528
        %s530 = sand.u32 %s44, 1
        %s531 = smul.addr %s530, 8
        %s532 = scalar_lea.vmem [#allocation3], %s531
        %p533 = pneg %p57
        %p534 = pneg %p54
        %p535 = pneg %p78
        %p536 = pneg %p75
        %p537 = pneg %p99
        %p538 = pneg %p96
        %p539 = pneg %p120
        %p540 = pneg %p117
        %p541 = pneg %p141
        %p542 = pneg %p138
        %p543 = pneg %p162
        %p544 = pneg %p159
        %p545 = pneg %p183
        %p546 = pneg %p180
        %p547 = pneg %p204
        %p548 = pneg %p201
        %p549 = pneg %p225
        %p550 = pneg %p222
        %p551 = pneg %p246
        %p552 = pneg %p243
        %p553 = pneg %p267
        %p554 = pneg %p264
        %p555 = pneg %p288
        %p556 = pneg %p285
        %p557 = pneg %p309
        %p558 = pneg %p306
        %p559 = pneg %p330
        %p560 = pneg %p327
        %p561 = pneg %p351
        %p562 = pneg %p348
        %p563 = pneg %p377
        %p564 = pneg %p374
        %s565 = sand.u32 %s364, 1
        %s566 = scalar_lea.sflag [#allocation5], %s565
        %s567 = sand.u32 %s364, 1
        %s568 = scalar_lea.vmem [#allocation12], %s567
        %v570 = vld [vmem:[%s507] sm:$0xff]
        %v571 = vpack.c.bf16 %v570, %v570
        %v572 = vld [vmem:[#allocation6] sm:$0xff]
        %v573 = vld [vmem:[#allocation6 + $0x8] sm:$0xf]
        %v574 = vld [vmem:[#allocation6 + $0xc] sm:$0xff]
        %v575 = vld [vmem:[#allocation6 + $0x14] sm:$0xf]
        %v576 = vld [vmem:[#allocation6 + $0x18] sm:$0xff]
        %v577 = vld [vmem:[#allocation6 + $0x20] sm:$0xf]
        %v578 = vld [vmem:[#allocation6 + $0x24] sm:$0xff]
        %v579 = vld [vmem:[#allocation6 + $0x2c] sm:$0xf]
        %v580 = vld [vmem:[#allocation6 + $0x30] sm:$0xff]
        %v581 = vld [vmem:[#allocation6 + $0x38] sm:$0xf]
        %v582 = vld [vmem:[#allocation6 + $0x3c] sm:$0xff]
        %v583 = vld [vmem:[#allocation6 + $0x44] sm:$0xf]
        %v584 = vld [vmem:[#allocation6 + $0x48] sm:$0xff]
        %v585 = vld [vmem:[#allocation6 + $0x50] sm:$0xf]
        %v586 = vld [vmem:[#allocation6 + $0x54] sm:$0xff]
        %v587 = vld [vmem:[#allocation6 + $0x5c] sm:$0xf]
        %v588 = vld [vmem:[#allocation6 + $0x60] sm:$0xff]
        %v589 = vld [vmem:[#allocation6 + $0x68] sm:$0xf]
        %v590 = vld [vmem:[#allocation6 + $0x6c] sm:$0xff]
        %v591 = vld [vmem:[#allocation6 + $0x74] sm:$0xf]
        %v592 = vld [vmem:[#allocation6 + $0x78] sm:$0xff]
        %v593 = vld [vmem:[#allocation6 + $0x80] sm:$0xf]
        %v594 = vld [vmem:[#allocation6 + $0x84] sm:$0xff]
        %v595 = vld [vmem:[#allocation6 + $0x8c] sm:$0xf]
        %v596 = vld [vmem:[#allocation6 + $0x90] sm:$0xff]
        %v597 = vld [vmem:[#allocation6 + $0x98] sm:$0xf]
        %v598 = vld [vmem:[#allocation6 + $0x9c] sm:$0xff]
        %v599 = vld [vmem:[#allocation6 + $0xa4] sm:$0xf]
        %v600 = vld [vmem:[#allocation6 + $0xa8] sm:$0xff]
        %v601 = vld [vmem:[#allocation6 + $0xb0] sm:$0xf]
        %v602 = vld [vmem:[#allocation6 + $0xb4] sm:$0xff]
        %v603 = vld [vmem:[#allocation6 + $0xbc] sm:$0xf]
        %v604 = vld [vmem:[%s2] sm:$0x7]
        %v606 = vlaneseq
        %v607 = vshrl.u32 %v606, 7
        %v608 = vsub.s32 0, %v607
        %v609 = vrot.slane %v604, %v608
        %v610 = vlaneseq
        %v611 = vshrl.u32 %v610, 7
        %v612 = vsub.s32 1, %v611
        %v613 = vrot.slane %v604, %v612
        %v614 = vlaneseq
        %v615 = vshrl.u32 %v614, 7
        %v616 = vsub.s32 2, %v615
        %v617 = vrot.slane %v604, %v616
        %v653 = vunpack.c.l.b16 %v572
        %v654 = vunpack.c.h.b16 %v572
        %v655 = vunpack.c.l.b16 %v573
        %v656 = vunpack.c.l.b16 %v574
        %v657 = vunpack.c.h.b16 %v574
        %v658 = vunpack.c.l.b16 %v575
        %v659 = vunpack.c.l.b16 %v576
        %v660 = vunpack.c.h.b16 %v576
        %v661 = vunpack.c.l.b16 %v577
        %v662 = vunpack.c.l.b16 %v578
        %v663 = vunpack.c.h.b16 %v578
        %v664 = vunpack.c.l.b16 %v579
        %v665 = vunpack.c.l.b16 %v580
        %v666 = vunpack.c.h.b16 %v580
        %v667 = vunpack.c.l.b16 %v581
        %v668 = vunpack.c.l.b16 %v582
        %v669 = vunpack.c.h.b16 %v582
        %v670 = vunpack.c.l.b16 %v583
        %v671 = vunpack.c.l.b16 %v584
        %v672 = vunpack.c.h.b16 %v584
        %v673 = vunpack.c.l.b16 %v585
        %v674 = vunpack.c.l.b16 %v586
        %v675 = vunpack.c.h.b16 %v586
        %v676 = vunpack.c.l.b16 %v587
        %v677 = vunpack.c.l.b16 %v588
        %v678 = vunpack.c.h.b16 %v588
        %v679 = vunpack.c.l.b16 %v589
        %v680 = vunpack.c.l.b16 %v590
        %v681 = vunpack.c.h.b16 %v590
        %v682 = vunpack.c.l.b16 %v591
        %v683 = vunpack.c.l.b16 %v592
        %v684 = vunpack.c.h.b16 %v592
        %v685 = vunpack.c.l.b16 %v593
        %v686 = vunpack.c.l.b16 %v594
        %v687 = vunpack.c.h.b16 %v594
        %v688 = vunpack.c.l.b16 %v595
        %v689 = vunpack.c.l.b16 %v596
        %v690 = vunpack.c.h.b16 %v596
        %v691 = vunpack.c.l.b16 %v597
        %v692 = vunpack.c.l.b16 %v598
        %v693 = vunpack.c.h.b16 %v598
        %v694 = vunpack.c.l.b16 %v599
        %v695 = vunpack.c.l.b16 %v600
        %v696 = vunpack.c.h.b16 %v600
        %v697 = vunpack.c.l.b16 %v601
        %v698 = vunpack.c.l.b16 %v602
        %v699 = vunpack.c.h.b16 %v602
        %v700 = vunpack.c.l.b16 %v603
        %v701 = vpack.c.b16 %v656, %v653
        %v702 = vpack.c.b16 %v657, %v654
        %v703 = vpack.c.b16 %v658, %v655
        %v704 = vpack.c.b16 %v662, %v659
        %v705 = vpack.c.b16 %v663, %v660
        %v706 = vpack.c.b16 %v664, %v661
        %v707 = vpack.c.b16 %v668, %v665
        %v708 = vpack.c.b16 %v669, %v666
        %v709 = vpack.c.b16 %v670, %v667
        %v710 = vpack.c.b16 %v674, %v671
        %v711 = vpack.c.b16 %v675, %v672
        %v712 = vpack.c.b16 %v676, %v673
        %v713 = vpack.c.b16 %v680, %v677
        %v714 = vpack.c.b16 %v681, %v678
        %v715 = vpack.c.b16 %v682, %v679
        %v716 = vpack.c.b16 %v686, %v683
        %v717 = vpack.c.b16 %v687, %v684
        %v718 = vpack.c.b16 %v688, %v685
        %v719 = vpack.c.b16 %v692, %v689
        %v720 = vpack.c.b16 %v693, %v690
        %v721 = vpack.c.b16 %v694, %v691
        %v722 = vpack.c.b16 %v698, %v695
        %v723 = vpack.c.b16 %v699, %v696
        %v724 = vpack.c.b16 %v700, %v697
        %749 = vmatprep.subr.bf16.mxu0 %v702
        %750 = vmatpush1.bf16.msra.mxu0 %v701
        %751 = vmatprep.subr.bf16.mxu0 %v705
        %752 = vmatpush1.bf16.msra.mxu0 %v704
        %753 = vmatprep.subr.bf16.mxu0 %v708
        %754 = vmatpush1.bf16.msra.mxu0 %v707
        %755 = vmatprep.subr.bf16.mxu0 %v711
        %756 = vmatpush1.bf16.msra.mxu0 %v710
        %757 = vmatprep.subr.bf16.mxu0 %v714
        %758 = vmatpush1.bf16.msra.mxu0 %v713
        %759 = vmatprep.subr.bf16.mxu0 %v717
        %760 = vmatpush1.bf16.msra.mxu0 %v716
        %761 = vmatprep.subr.bf16.mxu0 %v720
        %762 = vmatpush1.bf16.msra.mxu0 %v719
        %763 = vmatprep.subr.bf16.mxu0 %v723
        %764 = vmatpush1.bf16.msra.mxu0 %v722
        %765 = vmatprep.subr.bf16.mxu0 0
        %766 = vmatpush1.bf16.msra.mxu0 0
        %767 = vmatprep.subr.bf16.mxu0 0
        %768 = vmatpush1.bf16.msra.mxu0 0
        %769 = vmatprep.subr.bf16.mxu0 0
        %770 = vmatpush1.bf16.msra.mxu0 0
        %771 = vmatprep.subr.bf16.mxu0 0
        %772 = vmatpush1.bf16.msra.mxu0 0
        %773 = vmatprep.subr.bf16.mxu0 0
        %774 = vmatpush1.bf16.msra.mxu0 0
        %775 = vmatprep.subr.bf16.mxu0 0
        %776 = vmatpush1.bf16.msra.mxu0 0
        %777 = vmatprep.subr.bf16.mxu0 0
        %778 = vmatpush1.bf16.msra.mxu0 0
        %779 = vmatprep.subr.bf16.mxu0 0
        %780 = vmatpush1.bf16.msra.mxu0 0
        %781 = vmatprep.mubr.bf16.mxu0 0
        %782 = vmatmul.mubr.bf16.gmra.mrb[0].mxu0 %v571
        %v783 = vpop.f32.mrb[0].mxu0
        %v784 = vadd.f32 %v609, %v783
        %v785 = vpop.f32.mrb[0].mxu0
        %v786 = vadd.f32 %v613, %v785
        %v787 = vpop.f32.mrb[0].mxu0
        %v788 = vpop.f32.mrb[0].mxu0
        %789 = vdwg.mxu0
        %790 = vmatprep.subr.bf16.mxu0 0
        %791 = vmatpush1.bf16.msra.mxu0 %v703
        %792 = vmatprep.subr.bf16.mxu0 0
        %793 = vmatpush1.bf16.msra.mxu0 %v706
        %794 = vmatprep.subr.bf16.mxu0 0
        %795 = vmatpush1.bf16.msra.mxu0 %v709
        %796 = vmatprep.subr.bf16.mxu0 0
        %797 = vmatpush1.bf16.msra.mxu0 %v712
        %798 = vmatprep.subr.bf16.mxu0 0
        %799 = vmatpush1.bf16.msra.mxu0 %v715
        %800 = vmatprep.subr.bf16.mxu0 0
        %801 = vmatpush1.bf16.msra.mxu0 %v718
        %802 = vmatprep.subr.bf16.mxu0 0
        %803 = vmatpush1.bf16.msra.mxu0 %v721
        %804 = vmatprep.subr.bf16.mxu0 0
        %805 = vmatpush1.bf16.msra.mxu0 %v724
        %806 = vmatprep.subr.bf16.mxu0 0
        %807 = vmatpush1.bf16.msra.mxu0 0
        %808 = vmatprep.subr.bf16.mxu0 0
        %809 = vmatpush1.bf16.msra.mxu0 0
        %810 = vmatprep.subr.bf16.mxu0 0
        %811 = vmatpush1.bf16.msra.mxu0 0
        %812 = vmatprep.subr.bf16.mxu0 0
        %813 = vmatpush1.bf16.msra.mxu0 0
        %814 = vmatprep.subr.bf16.mxu0 0
        %815 = vmatpush1.bf16.msra.mxu0 0
        %816 = vmatprep.subr.bf16.mxu0 0
        %817 = vmatpush1.bf16.msra.mxu0 0
        %818 = vmatprep.subr.bf16.mxu0 0
        %819 = vmatpush1.bf16.msra.mxu0 0
        %820 = vmatprep.subr.bf16.mxu0 0
        %821 = vmatpush1.bf16.msra.mxu0 0
        %822 = vmatprep.mubr.bf16.mxu0 0
        %823 = vmatmul.mubr.bf16.gmra.mrb[0].mxu0 %v571
        %v824 = vpop.f32.mrb[0].mxu0
        %v825 = vadd.f32 %v617, %v824
        %v826 = vpop.f32.mrb[0].mxu0
        %v827 = vpop.f32.mrb[0].mxu0
        %v828 = vpop.f32.mrb[0].mxu0
        %829 = vdwg.mxu0
        %v830 = vpack.c.bf16 %v784, %v784
        %v831 = vpack.c.bf16 %v786, %v786
        %v832 = vpack.c.bf16 %v825, %v825
        %vm833 = vcmask 261120
        %v835 = vsel %vm833, %v830, 0
        %v838 = vsel %vm833, %v831, 0
        %840 = vmatprep.subr.bf16.mxu0 0
        %841 = vmatpush1.bf16.xpose.msra.mxu0 %v838
        %842 = vmatprep.subr.bf16.mxu0 0
        %843 = vmatpush1.bf16.xpose.msra.mxu0 0
        %844 = vmatprep.subr.bf16.mxu0 0
        %845 = vmatpush1.bf16.xpose.msra.mxu0 0
        %846 = vmatprep.subr.bf16.mxu0 0
        %847 = vmatpush1.bf16.xpose.msra.mxu0 0
        %848 = vmatprep.subr.bf16.mxu0 0
        %849 = vmatpush1.bf16.xpose.msra.mxu0 0
        %850 = vmatprep.subr.bf16.mxu0 0
        %851 = vmatpush1.bf16.xpose.msra.mxu0 0
        %852 = vmatprep.subr.bf16.mxu0 0
        %853 = vmatpush1.bf16.xpose.msra.mxu0 0
        %854 = vmatprep.subr.bf16.mxu0 0
        %855 = vmatpush1.bf16.xpose.msra.mxu0 0
        %856 = vmatprep.subr.bf16.mxu0 0
        %857 = vmatpush1.bf16.xpose.msra.mxu0 0
        %858 = vmatprep.subr.bf16.mxu0 0
        %859 = vmatpush1.bf16.xpose.msra.mxu0 0
        %860 = vmatprep.subr.bf16.mxu0 0
        %861 = vmatpush1.bf16.xpose.msra.mxu0 0
        %862 = vmatprep.subr.bf16.mxu0 0
        %863 = vmatpush1.bf16.xpose.msra.mxu0 0
        %864 = vmatprep.subr.bf16.mxu0 0
        %865 = vmatpush1.bf16.xpose.msra.mxu0 0
        %866 = vmatprep.subr.bf16.mxu0 0
        %867 = vmatpush1.bf16.xpose.msra.mxu0 0
        %868 = vmatprep.subr.bf16.mxu0 0
        %869 = vmatpush1.bf16.xpose.msra.mxu0 0
        %870 = vmatprep.subr.bf16.mxu0 0
        %871 = vmatpush1.bf16.xpose.msra.mxu0 0
        %872 = vmatprep.mubr.bf16.mxu0 0
        %873 = vmatmul.mubr.bf16.gmra.mrb[0].mxu0 %v835
        %v874 = vpop.f32.mrb[0].mxu0
        %v875 = vadd.f32 0.0, %v874
        %v876 = vpop.f32.mrb[0].mxu0
        %v877 = vpop.f32.mrb[0].mxu0
        %v878 = vpop.f32.mrb[0].mxu0
        %879 = vdwg.mxu0
        %v880 = vmul.f32 %v875, 0.17677669
        %vm881 = vcmask 64512
        %v882 = vsel %vm881, %v880, -inf
        %883 = vmax.xlane.f32.xlu0 %v882
        %v884 = vpop.xlane.xlu0 %883
        %v885 = vsub.f32 %v880, %v884
        %v886 = vmul.f32 %v885, 1.442695
        %v887 = vpow.pop %v886
        %v888 = vsel %vm881, %v887, 0.0
        %889 = vadd.xlane.f32.xlu0 %v888
        %v890 = vpop.xlane.xlu0 %889
        %v891 = vrcp.pop %v890
        %v892 = vmul.f32 %v887, %v891
        %v893 = vpack.c.bf16 %v892, %v892
        %v895 = vsel %vm881, %v893, 0
        %vm897 = vcmask 1043456
        %v899 = vsel %vm897, %v832, 0
        %901 = vmatprep.subr.bf16.mxu0 0
        %902 = vmatpush1.bf16.msra.mxu0 %v899
        %903 = vmatprep.subr.bf16.mxu0 0
        %904 = vmatpush1.bf16.msra.mxu0 0
        %905 = vmatprep.subr.bf16.mxu0 0
        %906 = vmatpush1.bf16.msra.mxu0 0
        %907 = vmatprep.subr.bf16.mxu0 0
        %908 = vmatpush1.bf16.msra.mxu0 0
        %909 = vmatprep.subr.bf16.mxu0 0
        %910 = vmatpush1.bf16.msra.mxu0 0
        %911 = vmatprep.subr.bf16.mxu0 0
        %912 = vmatpush1.bf16.msra.mxu0 0
        %913 = vmatprep.subr.bf16.mxu0 0
        %914 = vmatpush1.bf16.msra.mxu0 0
        %915 = vmatprep.subr.bf16.mxu0 0
        %916 = vmatpush1.bf16.msra.mxu0 0
        %917 = vmatprep.subr.bf16.mxu0 0
        %918 = vmatpush1.bf16.msra.mxu0 0
        %919 = vmatprep.subr.bf16.mxu0 0
        %920 = vmatpush1.bf16.msra.mxu0 0
        %921 = vmatprep.subr.bf16.mxu0 0
        %922 = vmatpush1.bf16.msra.mxu0 0
        %923 = vmatprep.subr.bf16.mxu0 0
        %924 = vmatpush1.bf16.msra.mxu0 0
        %925 = vmatprep.subr.bf16.mxu0 0
        %926 = vmatpush1.bf16.msra.mxu0 0
        %927 = vmatprep.subr.bf16.mxu0 0
        %928 = vmatpush1.bf16.msra.mxu0 0
        %929 = vmatprep.subr.bf16.mxu0 0
        %930 = vmatpush1.bf16.msra.mxu0 0
        %931 = vmatprep.subr.bf16.mxu0 0
        %932 = vmatpush1.bf16.msra.mxu0 0
        %933 = vmatprep.mubr.bf16.mxu0 0
        %934 = vmatmul.mubr.bf16.gmra.mrb[0].mxu0 %v895
        %v935 = vpop.f32.mrb[0].mxu0
        %v936 = vadd.f32 0.0, %v935
        %v937 = vpop.f32.mrb[0].mxu0
        %v938 = vpop.f32.mrb[0].mxu0
        %v939 = vpop.f32.mrb[0].mxu0
        %940 = vdwg.mxu0
        %942 = vrot.lane.b32.xlu0 %v830, 96
        %v943 = vpop.permute.xlu0 %942
        %945 = vrot.lane.b32.xlu0 %v831, 96
        %v946 = vpop.permute.xlu0 %945
        %v948 = vsel %vm833, %v943, 0
        %v951 = vsel %vm833, %v946, 0
        %953 = vmatprep.subr.bf16.mxu0 0
        %954 = vmatpush1.bf16.xpose.msra.mxu0 %v951
        %955 = vmatprep.subr.bf16.mxu0 0
        %956 = vmatpush1.bf16.xpose.msra.mxu0 0
        %957 = vmatprep.subr.bf16.mxu0 0
        %958 = vmatpush1.bf16.xpose.msra.mxu0 0
        %959 = vmatprep.subr.bf16.mxu0 0
        %960 = vmatpush1.bf16.xpose.msra.mxu0 0
        %961 = vmatprep.subr.bf16.mxu0 0
        %962 = vmatpush1.bf16.xpose.msra.mxu0 0
        %963 = vmatprep.subr.bf16.mxu0 0
        %964 = vmatpush1.bf16.xpose.msra.mxu0 0
        %965 = vmatprep.subr.bf16.mxu0 0
        %966 = vmatpush1.bf16.xpose.msra.mxu0 0
        %967 = vmatprep.subr.bf16.mxu0 0
        %968 = vmatpush1.bf16.xpose.msra.mxu0 0
        %969 = vmatprep.subr.bf16.mxu0 0
        %970 = vmatpush1.bf16.xpose.msra.mxu0 0
        %971 = vmatprep.subr.bf16.mxu0 0
        %972 = vmatpush1.bf16.xpose.msra.mxu0 0
        %973 = vmatprep.subr.bf16.mxu0 0
        %974 = vmatpush1.bf16.xpose.msra.mxu0 0
        %975 = vmatprep.subr.bf16.mxu0 0
        %976 = vmatpush1.bf16.xpose.msra.mxu0 0
        %977 = vmatprep.subr.bf16.mxu0 0
        %978 = vmatpush1.bf16.xpose.msra.mxu0 0
        %979 = vmatprep.subr.bf16.mxu0 0
        %980 = vmatpush1.bf16.xpose.msra.mxu0 0
        %981 = vmatprep.subr.bf16.mxu0 0
        %982 = vmatpush1.bf16.xpose.msra.mxu0 0
        %983 = vmatprep.subr.bf16.mxu0 0
        %984 = vmatpush1.bf16.xpose.msra.mxu0 0
        %985 = vmatprep.mubr.bf16.mxu0 0
        %986 = vmatmul.mubr.bf16.gmra.mrb[0].mxu0 %v948
        %v987 = vpop.f32.mrb[0].mxu0
        %v988 = vadd.f32 0.0, %v987
        %v989 = vpop.f32.mrb[0].mxu0
        %v990 = vpop.f32.mrb[0].mxu0
        %v991 = vpop.f32.mrb[0].mxu0
        %992 = vdwg.mxu0
        %v993 = vmul.f32 %v988, 0.17677669
        %v994 = vsel %vm881, %v993, -inf
        %995 = vmax.xlane.f32.xlu0 %v994
        %v996 = vpop.xlane.xlu0 %995
        %v997 = vsub.f32 %v993, %v996
        %v998 = vmul.f32 %v997, 1.442695
        %v999 = vpow.pop %v998
        %v1000 = vsel %vm881, %v999, 0.0
        %1001 = vadd.xlane.f32.xlu0 %v1000
        %v1002 = vpop.xlane.xlu0 %1001
        %v1003 = vrcp.pop %v1002
        %v1004 = vmul.f32 %v999, %v1003
        %v1005 = vpack.c.bf16 %v1004, %v1004
        %1007 = vrot.lane.b32.xlu0 %v832, 96
        %v1008 = vpop.permute.xlu0 %1007
        %v1010 = vsel %vm881, %v1005, 0
        %v1013 = vsel %vm897, %v1008, 0
        %1015 = vmatprep.subr.bf16.mxu0 0
        %1016 = vmatpush1.bf16.msra.mxu0 %v1013
        %1017 = vmatprep.subr.bf16.mxu0 0
        %1018 = vmatpush1.bf16.msra.mxu0 0
        %1019 = vmatprep.subr.bf16.mxu0 0
        %1020 = vmatpush1.bf16.msra.mxu0 0
        %1021 = vmatprep.subr.bf16.mxu0 0
        %1022 = vmatpush1.bf16.msra.mxu0 0
        %1023 = vmatprep.subr.bf16.mxu0 0
        %1024 = vmatpush1.bf16.msra.mxu0 0
        %1025 = vmatprep.subr.bf16.mxu0 0
        %1026 = vmatpush1.bf16.msra.mxu0 0
        %1027 = vmatprep.subr.bf16.mxu0 0
        %1028 = vmatpush1.bf16.msra.mxu0 0
        %1029 = vmatprep.subr.bf16.mxu0 0
        %1030 = vmatpush1.bf16.msra.mxu0 0
        %1031 = vmatprep.subr.bf16.mxu0 0
        %1032 = vmatpush1.bf16.msra.mxu0 0
        %1033 = vmatprep.subr.bf16.mxu0 0
        %1034 = vmatpush1.bf16.msra.mxu0 0
        %1035 = vmatprep.subr.bf16.mxu0 0
        %1036 = vmatpush1.bf16.msra.mxu0 0
        %1037 = vmatprep.subr.bf16.mxu0 0
        %1038 = vmatpush1.bf16.msra.mxu0 0
        %1039 = vmatprep.subr.bf16.mxu0 0
        %1040 = vmatpush1.bf16.msra.mxu0 0
        %1041 = vmatprep.subr.bf16.mxu0 0
        %1042 = vmatpush1.bf16.msra.mxu0 0
        %1043 = vmatprep.subr.bf16.mxu0 0
        %1044 = vmatpush1.bf16.msra.mxu0 0
        %1045 = vmatprep.subr.bf16.mxu0 0
        %1046 = vmatpush1.bf16.msra.mxu0 0
        %1047 = vmatprep.mubr.bf16.mxu0 0
        %1048 = vmatmul.mubr.bf16.gmra.mrb[0].mxu0 %v1010
        %v1049 = vpop.f32.mrb[0].mxu0
        %v1050 = vadd.f32 0.0, %v1049
        %v1051 = vpop.f32.mrb[0].mxu0
        %v1052 = vpop.f32.mrb[0].mxu0
        %v1053 = vpop.f32.mrb[0].mxu0
        %1054 = vdwg.mxu0
        %1055 = vrot.lane.b32.xlu0 %v830, 64
        %v1056 = vpop.permute.xlu0 %1055
        %1057 = vrot.lane.b32.xlu0 %v831, 64
        %v1058 = vpop.permute.xlu0 %1057
        %v1060 = vsel %vm833, %v1056, 0
        %v1063 = vsel %vm833, %v1058, 0
        %1065 = vmatprep.subr.bf16.mxu0 0
        %1066 = vmatpush1.bf16.xpose.msra.mxu0 %v1063
        %1067 = vmatprep.subr.bf16.mxu0 0
        %1068 = vmatpush1.bf16.xpose.msra.mxu0 0
        %1069 = vmatprep.subr.bf16.mxu0 0
        %1070 = vmatpush1.bf16.xpose.msra.mxu0 0
        %1071 = vmatprep.subr.bf16.mxu0 0
        %1072 = vmatpush1.bf16.xpose.msra.mxu0 0
        %1073 = vmatprep.subr.bf16.mxu0 0
        %1074 = vmatpush1.bf16.xpose.msra.mxu0 0
        %1075 = vmatprep.subr.bf16.mxu0 0
        %1076 = vmatpush1.bf16.xpose.msra.mxu0 0
        %1077 = vmatprep.subr.bf16.mxu0 0
        %1078 = vmatpush1.bf16.xpose.msra.mxu0 0
        %1079 = vmatprep.subr.bf16.mxu0 0
        %1080 = vmatpush1.bf16.xpose.msra.mxu0 0
        %1081 = vmatprep.subr.bf16.mxu0 0
        %1082 = vmatpush1.bf16.xpose.msra.mxu0 0
        %1083 = vmatprep.subr.bf16.mxu0 0
        %1084 = vmatpush1.bf16.xpose.msra.mxu0 0
        %1085 = vmatprep.subr.bf16.mxu0 0
        %1086 = vmatpush1.bf16.xpose.msra.mxu0 0
        %1087 = vmatprep.subr.bf16.mxu0 0
        %1088 = vmatpush1.bf16.xpose.msra.mxu0 0
        %1089 = vmatprep.subr.bf16.mxu0 0
        %1090 = vmatpush1.bf16.xpose.msra.mxu0 0
        %1091 = vmatprep.subr.bf16.mxu0 0
        %1092 = vmatpush1.bf16.xpose.msra.mxu0 0
        %1093 = vmatprep.subr.bf16.mxu0 0
        %1094 = vmatpush1.bf16.xpose.msra.mxu0 0
        %1095 = vmatprep.subr.bf16.mxu0 0
        %1096 = vmatpush1.bf16.xpose.msra.mxu0 0
        %1097 = vmatprep.mubr.bf16.mxu0 0
        %1098 = vmatmul.mubr.bf16.gmra.mrb[0].mxu0 %v1060
        %v1099 = vpop.f32.mrb[0].mxu0
        %v1100 = vadd.f32 0.0, %v1099
        %v1101 = vpop.f32.mrb[0].mxu0
        %v1102 = vpop.f32.mrb[0].mxu0
        %v1103 = vpop.f32.mrb[0].mxu0
        %1104 = vdwg.mxu0
        %v1105 = vmul.f32 %v1100, 0.17677669
        %v1106 = vsel %vm881, %v1105, -inf
        %1107 = vmax.xlane.f32.xlu0 %v1106
        %v1108 = vpop.xlane.xlu0 %1107
        %v1109 = vsub.f32 %v1105, %v1108
        %v1110 = vmul.f32 %v1109, 1.442695
        %v1111 = vpow.pop %v1110
        %v1112 = vsel %vm881, %v1111, 0.0
        %1113 = vadd.xlane.f32.xlu0 %v1112
        %v1114 = vpop.xlane.xlu0 %1113
        %v1115 = vrcp.pop %v1114
        %v1116 = vmul.f32 %v1111, %v1115
        %v1117 = vpack.c.bf16 %v1116, %v1116
        %1118 = vrot.lane.b32.xlu0 %v832, 64
        %v1119 = vpop.permute.xlu0 %1118
        %v1121 = vsel %vm881, %v1117, 0
        %v1124 = vsel %vm897, %v1119, 0
        %1126 = vmatprep.subr.bf16.mxu0 0
        %1127 = vmatpush1.bf16.msra.mxu0 %v1124
        %1128 = vmatprep.subr.bf16.mxu0 0
        %1129 = vmatpush1.bf16.msra.mxu0 0
        %1130 = vmatprep.subr.bf16.mxu0 0
        %1131 = vmatpush1.bf16.msra.mxu0 0
        %1132 = vmatprep.subr.bf16.mxu0 0
        %1133 = vmatpush1.bf16.msra.mxu0 0
        %1134 = vmatprep.subr.bf16.mxu0 0
        %1135 = vmatpush1.bf16.msra.mxu0 0
        %1136 = vmatprep.subr.bf16.mxu0 0
        %1137 = vmatpush1.bf16.msra.mxu0 0
        %1138 = vmatprep.subr.bf16.mxu0 0
        %1139 = vmatpush1.bf16.msra.mxu0 0
        %1140 = vmatprep.subr.bf16.mxu0 0
        %1141 = vmatpush1.bf16.msra.mxu0 0
        %1142 = vmatprep.subr.bf16.mxu0 0
        %1143 = vmatpush1.bf16.msra.mxu0 0
        %1144 = vmatprep.subr.bf16.mxu0 0
        %1145 = vmatpush1.bf16.msra.mxu0 0
        %1146 = vmatprep.subr.bf16.mxu0 0
        %1147 = vmatpush1.bf16.msra.mxu0 0
        %1148 = vmatprep.subr.bf16.mxu0 0
        %1149 = vmatpush1.bf16.msra.mxu0 0
        %1150 = vmatprep.subr.bf16.mxu0 0
        %1151 = vmatpush1.bf16.msra.mxu0 0
        %1152 = vmatprep.subr.bf16.mxu0 0
        %1153 = vmatpush1.bf16.msra.mxu0 0
        %1154 = vmatprep.subr.bf16.mxu0 0
        %1155 = vmatpush1.bf16.msra.mxu0 0
        %1156 = vmatprep.subr.bf16.mxu0 0
        %1157 = vmatpush1.bf16.msra.mxu0 0
        %1158 = vmatprep.mubr.bf16.mxu0 0
        %1159 = vmatmul.mubr.bf16.gmra.mrb[0].mxu0 %v1121
        %v1160 = vpop.f32.mrb[0].mxu0
        %v1161 = vadd.f32 0.0, %v1160
        %v1162 = vpop.f32.mrb[0].mxu0
        %v1163 = vpop.f32.mrb[0].mxu0
        %v1164 = vpop.f32.mrb[0].mxu0
        %1165 = vdwg.mxu0
        %1166 = vrot.lane.b32.xlu0 %v830, 32
        %v1167 = vpop.permute.xlu0 %1166
        %1168 = vrot.lane.b32.xlu0 %v831, 32
        %v1169 = vpop.permute.xlu0 %1168
        %v1171 = vsel %vm833, %v1167, 0
        %v1174 = vsel %vm833, %v1169, 0
        %1176 = vmatprep.subr.bf16.mxu0 0
        %1177 = vmatpush1.bf16.xpose.msra.mxu0 %v1174
        %1178 = vmatprep.subr.bf16.mxu0 0
        %1179 = vmatpush1.bf16.xpose.msra.mxu0 0
        %1180 = vmatprep.subr.bf16.mxu0 0
        %1181 = vmatpush1.bf16.xpose.msra.mxu0 0
        %1182 = vmatprep.subr.bf16.mxu0 0
        %1183 = vmatpush1.bf16.xpose.msra.mxu0 0
        %1184 = vmatprep.subr.bf16.mxu0 0
        %1185 = vmatpush1.bf16.xpose.msra.mxu0 0
        %1186 = vmatprep.subr.bf16.mxu0 0
        %1187 = vmatpush1.bf16.xpose.msra.mxu0 0
        %1188 = vmatprep.subr.bf16.mxu0 0
        %1189 = vmatpush1.bf16.xpose.msra.mxu0 0
        %1190 = vmatprep.subr.bf16.mxu0 0
        %1191 = vmatpush1.bf16.xpose.msra.mxu0 0
        %1192 = vmatprep.subr.bf16.mxu0 0
        %1193 = vmatpush1.bf16.xpose.msra.mxu0 0
        %1194 = vmatprep.subr.bf16.mxu0 0
        %1195 = vmatpush1.bf16.xpose.msra.mxu0 0
        %1196 = vmatprep.subr.bf16.mxu0 0
        %1197 = vmatpush1.bf16.xpose.msra.mxu0 0
        %1198 = vmatprep.subr.bf16.mxu0 0
        %1199 = vmatpush1.bf16.xpose.msra.mxu0 0
        %1200 = vmatprep.subr.bf16.mxu0 0
        %1201 = vmatpush1.bf16.xpose.msra.mxu0 0
        %1202 = vmatprep.subr.bf16.mxu0 0
        %1203 = vmatpush1.bf16.xpose.msra.mxu0 0
        %1204 = vmatprep.subr.bf16.mxu0 0
        %1205 = vmatpush1.bf16.xpose.msra.mxu0 0
        %1206 = vmatprep.subr.bf16.mxu0 0
        %1207 = vmatpush1.bf16.xpose.msra.mxu0 0
        %1208 = vmatprep.mubr.bf16.mxu0 0
        %1209 = vmatmul.mubr.bf16.gmra.mrb[0].mxu0 %v1171
        %v1210 = vpop.f32.mrb[0].mxu0
        %v1211 = vadd.f32 0.0, %v1210
        %v1212 = vpop.f32.mrb[0].mxu0
        %v1213 = vpop.f32.mrb[0].mxu0
        %v1214 = vpop.f32.mrb[0].mxu0
        %1215 = vdwg.mxu0
        %v1216 = vmul.f32 %v1211, 0.17677669
        %v1217 = vsel %vm881, %v1216, -inf
        %1218 = vmax.xlane.f32.xlu0 %v1217
        %v1219 = vpop.xlane.xlu0 %1218
        %v1220 = vsub.f32 %v1216, %v1219
        %v1221 = vmul.f32 %v1220, 1.442695
        %v1222 = vpow.pop %v1221
        %v1223 = vsel %vm881, %v1222, 0.0
        %1224 = vadd.xlane.f32.xlu0 %v1223
        %v1225 = vpop.xlane.xlu0 %1224
        %v1226 = vrcp.pop %v1225
        %v1227 = vmul.f32 %v1222, %v1226
        %v1228 = vpack.c.bf16 %v1227, %v1227
        %1229 = vrot.lane.b32.xlu0 %v832, 32
        %v1230 = vpop.permute.xlu0 %1229
        %v1232 = vsel %vm881, %v1228, 0
        %v1235 = vsel %vm897, %v1230, 0
        %1237 = vmatprep.subr.bf16.mxu0 0
        %1238 = vmatpush1.bf16.msra.mxu0 %v1235
        %1239 = vmatprep.subr.bf16.mxu0 0
        %1240 = vmatpush1.bf16.msra.mxu0 0
        %1241 = vmatprep.subr.bf16.mxu0 0
        %1242 = vmatpush1.bf16.msra.mxu0 0
        %1243 = vmatprep.subr.bf16.mxu0 0
        %1244 = vmatpush1.bf16.msra.mxu0 0
        %1245 = vmatprep.subr.bf16.mxu0 0
        %1246 = vmatpush1.bf16.msra.mxu0 0
        %1247 = vmatprep.subr.bf16.mxu0 0
        %1248 = vmatpush1.bf16.msra.mxu0 0
        %1249 = vmatprep.subr.bf16.mxu0 0
        %1250 = vmatpush1.bf16.msra.mxu0 0
        %1251 = vmatprep.subr.bf16.mxu0 0
        %1252 = vmatpush1.bf16.msra.mxu0 0
        %1253 = vmatprep.subr.bf16.mxu0 0
        %1254 = vmatpush1.bf16.msra.mxu0 0
        %1255 = vmatprep.subr.bf16.mxu0 0
        %1256 = vmatpush1.bf16.msra.mxu0 0
        %1257 = vmatprep.subr.bf16.mxu0 0
        %1258 = vmatpush1.bf16.msra.mxu0 0
        %1259 = vmatprep.subr.bf16.mxu0 0
        %1260 = vmatpush1.bf16.msra.mxu0 0
        %1261 = vmatprep.subr.bf16.mxu0 0
        %1262 = vmatpush1.bf16.msra.mxu0 0
        %1263 = vmatprep.subr.bf16.mxu0 0
        %1264 = vmatpush1.bf16.msra.mxu0 0
        %1265 = vmatprep.subr.bf16.mxu0 0
        %1266 = vmatpush1.bf16.msra.mxu0 0
        %1267 = vmatprep.subr.bf16.mxu0 0
        %1268 = vmatpush1.bf16.msra.mxu0 0
        %1269 = vmatprep.mubr.bf16.mxu0 0
        %1270 = vmatmul.mubr.bf16.gmra.mrb[0].mxu0 %v1232
        %v1271 = vpop.f32.mrb[0].mxu0
        %v1272 = vadd.f32 0.0, %v1271
        %v1273 = vpop.f32.mrb[0].mxu0
        %v1274 = vpop.f32.mrb[0].mxu0
        %v1275 = vpop.f32.mrb[0].mxu0
        %1276 = vdwg.mxu0
        %1278 = vrot.lane.b32.xlu0 %v1050, 32
        %v1279 = vpop.permute.xlu0 %1278
        %1282 = vrot.lane.b32.xlu0 %v1161, 64
        %v1283 = vpop.permute.xlu0 %1282
        %1286 = vrot.lane.b32.xlu0 %v1272, 96
        %v1287 = vpop.permute.xlu0 %1286
        %v1289 = vsel %vm833, %v936, %v1279
        %vm1290 = vcmask 523264
        %v1291 = vsel %vm1290, %v1289, %v1283
        %vm1292 = vcmask 785408
        %v1293 = vsel %vm1292, %v1291, %v1287
        %v1294 = vpack.c.bf16 %v1293, %v1293
        %v1295 = vld [vmem:[#allocation8] sm:$0xf]
        %v1296 = vld [vmem:[#allocation8 + $0x4] sm:$0xf]
        %v1297 = vld [vmem:[#allocation8 + $0x8] sm:$0xf]
        %v1298 = vld [vmem:[#allocation8 + $0xc] sm:$0xf]
        %v1299 = vld [vmem:[#allocation8 + $0x10] sm:$0xf]
        %v1300 = vld [vmem:[#allocation8 + $0x14] sm:$0xf]
        %v1301 = vld [vmem:[#allocation8 + $0x18] sm:$0xf]
        %v1302 = vld [vmem:[#allocation8 + $0x1c] sm:$0xf]
        %v1303 = vld [vmem:[#allocation8 + $0x20] sm:$0xf]
        %v1304 = vld [vmem:[#allocation8 + $0x24] sm:$0xf]
        %v1305 = vld [vmem:[#allocation8 + $0x28] sm:$0xf]
        %v1306 = vld [vmem:[#allocation8 + $0x2c] sm:$0xf]
        %v1307 = vld [vmem:[#allocation8 + $0x30] sm:$0xf]
        %v1308 = vld [vmem:[#allocation8 + $0x34] sm:$0xf]
        %v1309 = vld [vmem:[#allocation8 + $0x38] sm:$0xf]
        %v1310 = vld [vmem:[#allocation8 + $0x3c] sm:$0xf]
        %v1311 = vld [vmem:[%s4] sm:$0x1]
        %v1313 = vlaneseq
        %v1314 = vshrl.u32 %v1313, 7
        %v1315 = vsub.s32 0, %v1314
        %v1316 = vrot.slane %v1311, %v1315
        %v1334 = vunpack.c.l.b16 %v1295
        %v1335 = vunpack.c.l.b16 %v1296
        %v1336 = vunpack.c.l.b16 %v1297
        %v1337 = vunpack.c.l.b16 %v1298
        %v1338 = vunpack.c.l.b16 %v1299
        %v1339 = vunpack.c.l.b16 %v1300
        %v1340 = vunpack.c.l.b16 %v1301
        %v1341 = vunpack.c.l.b16 %v1302
        %v1342 = vunpack.c.l.b16 %v1303
        %v1343 = vunpack.c.l.b16 %v1304
        %v1344 = vunpack.c.l.b16 %v1305
        %v1345 = vunpack.c.l.b16 %v1306
        %v1346 = vunpack.c.l.b16 %v1307
        %v1347 = vunpack.c.l.b16 %v1308
        %v1348 = vunpack.c.l.b16 %v1309
        %v1349 = vunpack.c.l.b16 %v1310
        %v1350 = vpack.c.b16 %v1335, %v1334
        %v1351 = vpack.c.b16 %v1337, %v1336
        %v1352 = vpack.c.b16 %v1339, %v1338
        %v1353 = vpack.c.b16 %v1341, %v1340
        %v1354 = vpack.c.b16 %v1343, %v1342
        %v1355 = vpack.c.b16 %v1345, %v1344
        %v1356 = vpack.c.b16 %v1347, %v1346
        %v1357 = vpack.c.b16 %v1349, %v1348
        %1366 = vmatprep.subr.bf16.mxu0 0
        %1367 = vmatpush1.bf16.msra.mxu0 %v1350
        %1368 = vmatprep.subr.bf16.mxu0 0
        %1369 = vmatpush1.bf16.msra.mxu0 %v1351
        %1370 = vmatprep.subr.bf16.mxu0 0
        %1371 = vmatpush1.bf16.msra.mxu0 %v1352
        %1372 = vmatprep.subr.bf16.mxu0 0
        %1373 = vmatpush1.bf16.msra.mxu0 %v1353
        %1374 = vmatprep.subr.bf16.mxu0 0
        %1375 = vmatpush1.bf16.msra.mxu0 %v1354
        %1376 = vmatprep.subr.bf16.mxu0 0
        %1377 = vmatpush1.bf16.msra.mxu0 %v1355
        %1378 = vmatprep.subr.bf16.mxu0 0
        %1379 = vmatpush1.bf16.msra.mxu0 %v1356
        %1380 = vmatprep.subr.bf16.mxu0 0
        %1381 = vmatpush1.bf16.msra.mxu0 %v1357
        %1382 = vmatprep.subr.bf16.mxu0 0
        %1383 = vmatpush1.bf16.msra.mxu0 0
        %1384 = vmatprep.subr.bf16.mxu0 0
        %1385 = vmatpush1.bf16.msra.mxu0 0
        %1386 = vmatprep.subr.bf16.mxu0 0
        %1387 = vmatpush1.bf16.msra.mxu0 0
        %1388 = vmatprep.subr.bf16.mxu0 0
        %1389 = vmatpush1.bf16.msra.mxu0 0
        %1390 = vmatprep.subr.bf16.mxu0 0
        %1391 = vmatpush1.bf16.msra.mxu0 0
        %1392 = vmatprep.subr.bf16.mxu0 0
        %1393 = vmatpush1.bf16.msra.mxu0 0
        %1394 = vmatprep.subr.bf16.mxu0 0
        %1395 = vmatpush1.bf16.msra.mxu0 0
        %1396 = vmatprep.subr.bf16.mxu0 0
        %1397 = vmatpush1.bf16.msra.mxu0 0
        %1398 = vmatprep.mubr.bf16.mxu0 0
        %1399 = vmatmul.mubr.bf16.gmra.mrb[0].mxu0 %v1294
        %v1400 = vpop.f32.mrb[0].mxu0
        %v1401 = vadd.f32 %v1316, %v1400
        %v1402 = vpop.f32.mrb[0].mxu0
        %v1403 = vpop.f32.mrb[0].mxu0
        %v1404 = vpop.f32.mrb[0].mxu0
        %1405 = vdwg.mxu0
        %v1406 = vadd.f32 %v570, %v1401
        %v1407 = vld [vmem:[%s5] sm:$0x1]
        %v1408 = vld [vmem:[%s6] sm:$0x1]
        %1409 = vadd.xlane.f32.xlu0 %v1406
        %v1410 = vpop.xlane.xlu0 %1409
        %v1411 = vrcp.pop 128.0
        %v1412 = vmul.f32 %v1410, %v1411
        %v1413 = vsub.f32 %v1406, %v1412
        %v1414 = vmul.f32 %v1413, %v1413
        %1415 = vadd.xlane.f32.xlu0 %v1414
        %v1416 = vpop.xlane.xlu0 %1415
        %v1417 = vmul.f32 %v1416, %v1411
        %v1418 = vadd.f32 %v1417, 1e-05
        %v1419 = vrsqrt.pop %v1418
        %v1420 = vmul.f32 %v1413, %v1419
        %v1422 = vlaneseq
        %v1423 = vshrl.u32 %v1422, 7
        %v1424 = vsub.s32 0, %v1423
        %v1425 = vrot.slane %v1407, %v1424
        %v1427 = vmul.f32 %v1420, %v1425
        %v1429 = vlaneseq
        %v1430 = vshrl.u32 %v1429, 7
        %v1431 = vsub.s32 0, %v1430
        %v1432 = vrot.slane %v1408, %v1431
        %v1434 = vadd.f32 %v1427, %v1432
        %v1435 = vpack.c.bf16 %v1434, %v1434
        %v1436 = vld [vmem:[#allocation9] sm:$0xf]
        %v1437 = vld [vmem:[#allocation9 + $0x4] sm:$0xf]
        %v1438 = vld [vmem:[#allocation9 + $0x8] sm:$0xf]
        %v1439 = vld [vmem:[#allocation9 + $0xc] sm:$0xf]
        %v1440 = vld [vmem:[#allocation9 + $0x10] sm:$0xf]
        %v1441 = vld [vmem:[#allocation9 + $0x14] sm:$0xf]
        %v1442 = vld [vmem:[#allocation9 + $0x18] sm:$0xf]
        %v1443 = vld [vmem:[#allocation9 + $0x1c] sm:$0xf]
        %v1444 = vld [vmem:[#allocation9 + $0x20] sm:$0xf]
        %v1445 = vld [vmem:[#allocation9 + $0x24] sm:$0xf]
        %v1446 = vld [vmem:[#allocation9 + $0x28] sm:$0xf]
        %v1447 = vld [vmem:[#allocation9 + $0x2c] sm:$0xf]
        %v1448 = vld [vmem:[#allocation9 + $0x30] sm:$0xf]
        %v1449 = vld [vmem:[#allocation9 + $0x34] sm:$0xf]
        %v1450 = vld [vmem:[#allocation9 + $0x38] sm:$0xf]
        %v1451 = vld [vmem:[#allocation9 + $0x3c] sm:$0xf]
        %v1452 = vld [vmem:[%s8] sm:$0x1]
        %v1454 = vlaneseq
        %v1455 = vshrl.u32 %v1454, 7
        %v1456 = vsub.s32 0, %v1455
        %v1457 = vrot.slane %v1452, %v1456
        %v1475 = vunpack.c.l.b16 %v1436
        %v1476 = vunpack.c.l.b16 %v1437
        %v1477 = vunpack.c.l.b16 %v1438
        %v1478 = vunpack.c.l.b16 %v1439
        %v1479 = vunpack.c.l.b16 %v1440
        %v1480 = vunpack.c.l.b16 %v1441
        %v1481 = vunpack.c.l.b16 %v1442
        %v1482 = vunpack.c.l.b16 %v1443
        %v1483 = vunpack.c.l.b16 %v1444
        %v1484 = vunpack.c.l.b16 %v1445
        %v1485 = vunpack.c.l.b16 %v1446
        %v1486 = vunpack.c.l.b16 %v1447
        %v1487 = vunpack.c.l.b16 %v1448
        %v1488 = vunpack.c.l.b16 %v1449
        %v1489 = vunpack.c.l.b16 %v1450
        %v1490 = vunpack.c.l.b16 %v1451
        %v1491 = vpack.c.b16 %v1476, %v1475
        %v1492 = vpack.c.b16 %v1478, %v1477
        %v1493 = vpack.c.b16 %v1480, %v1479
        %v1494 = vpack.c.b16 %v1482, %v1481
        %v1495 = vpack.c.b16 %v1484, %v1483
        %v1496 = vpack.c.b16 %v1486, %v1485
        %v1497 = vpack.c.b16 %v1488, %v1487
        %v1498 = vpack.c.b16 %v1490, %v1489
        %1507 = vmatprep.subr.bf16.mxu0 0
        %1508 = vmatpush1.bf16.msra.mxu0 %v1491
        %1509 = vmatprep.subr.bf16.mxu0 0
        %1510 = vmatpush1.bf16.msra.mxu0 %v1492
        %1511 = vmatprep.subr.bf16.mxu0 0
        %1512 = vmatpush1.bf16.msra.mxu0 %v1493
        %1513 = vmatprep.subr.bf16.mxu0 0
        %1514 = vmatpush1.bf16.msra.mxu0 %v1494
        %1515 = vmatprep.subr.bf16.mxu0 0
        %1516 = vmatpush1.bf16.msra.mxu0 %v1495
        %1517 = vmatprep.subr.bf16.mxu0 0
        %1518 = vmatpush1.bf16.msra.mxu0 %v1496
        %1519 = vmatprep.subr.bf16.mxu0 0
        %1520 = vmatpush1.bf16.msra.mxu0 %v1497
        %1521 = vmatprep.subr.bf16.mxu0 0
        %1522 = vmatpush1.bf16.msra.mxu0 %v1498
        %1523 = vmatprep.subr.bf16.mxu0 0
        %1524 = vmatpush1.bf16.msra.mxu0 0
        %1525 = vmatprep.subr.bf16.mxu0 0
        %1526 = vmatpush1.bf16.msra.mxu0 0
        %1527 = vmatprep.subr.bf16.mxu0 0
        %1528 = vmatpush1.bf16.msra.mxu0 0
        %1529 = vmatprep.subr.bf16.mxu0 0
        %1530 = vmatpush1.bf16.msra.mxu0 0
        %1531 = vmatprep.subr.bf16.mxu0 0
        %1532 = vmatpush1.bf16.msra.mxu0 0
        %1533 = vmatprep.subr.bf16.mxu0 0
        %1534 = vmatpush1.bf16.msra.mxu0 0
        %1535 = vmatprep.subr.bf16.mxu0 0
        %1536 = vmatpush1.bf16.msra.mxu0 0
        %1537 = vmatprep.subr.bf16.mxu0 0
        %1538 = vmatpush1.bf16.msra.mxu0 0
        %1539 = vmatprep.mubr.bf16.mxu0 0
        %1540 = vmatmul.mubr.bf16.gmra.mrb[0].mxu0 %v1435
        %v1541 = vpop.f32.mrb[0].mxu0
        %v1542 = vadd.f32 %v1457, %v1541
        %v1543 = vpop.f32.mrb[0].mxu0
        %v1544 = vpop.f32.mrb[0].mxu0
        %v1545 = vpop.f32.mrb[0].mxu0
        %1546 = vdwg.mxu0
        %v1547 = vmax.f32 %v1542, 0.0
        %v1548 = vpack.c.bf16 %v1547, %v1547
        %v1549 = vld [vmem:[#allocation11] sm:$0xf]
        %v1550 = vld [vmem:[#allocation11 + $0x4] sm:$0xf]
        %v1551 = vld [vmem:[#allocation11 + $0x8] sm:$0xf]
        %v1552 = vld [vmem:[#allocation11 + $0xc] sm:$0xf]
        %v1553 = vld [vmem:[#allocation11 + $0x10] sm:$0xf]
        %v1554 = vld [vmem:[#allocation11 + $0x14] sm:$0xf]
        %v1555 = vld [vmem:[#allocation11 + $0x18] sm:$0xf]
        %v1556 = vld [vmem:[#allocation11 + $0x1c] sm:$0xf]
        %v1557 = vld [vmem:[#allocation11 + $0x20] sm:$0xf]
        %v1558 = vld [vmem:[#allocation11 + $0x24] sm:$0xf]
        %v1559 = vld [vmem:[#allocation11 + $0x28] sm:$0xf]
        %v1560 = vld [vmem:[#allocation11 + $0x2c] sm:$0xf]
        %v1561 = vld [vmem:[#allocation11 + $0x30] sm:$0xf]
        %v1562 = vld [vmem:[#allocation11 + $0x34] sm:$0xf]
        %v1563 = vld [vmem:[#allocation11 + $0x38] sm:$0xf]
        %v1564 = vld [vmem:[#allocation11 + $0x3c] sm:$0xf]
        %v1565 = vld [vmem:[%s10] sm:$0x1]
        %v1567 = vlaneseq
        %v1568 = vshrl.u32 %v1567, 7
        %v1569 = vsub.s32 0, %v1568
        %v1570 = vrot.slane %v1565, %v1569
        %v1588 = vunpack.c.l.b16 %v1549
        %v1589 = vunpack.c.l.b16 %v1550
        %v1590 = vunpack.c.l.b16 %v1551
        %v1591 = vunpack.c.l.b16 %v1552
        %v1592 = vunpack.c.l.b16 %v1553
        %v1593 = vunpack.c.l.b16 %v1554
        %v1594 = vunpack.c.l.b16 %v1555
        %v1595 = vunpack.c.l.b16 %v1556
        %v1596 = vunpack.c.l.b16 %v1557
        %v1597 = vunpack.c.l.b16 %v1558
        %v1598 = vunpack.c.l.b16 %v1559
        %v1599 = vunpack.c.l.b16 %v1560
        %v1600 = vunpack.c.l.b16 %v1561
        %v1601 = vunpack.c.l.b16 %v1562
        %v1602 = vunpack.c.l.b16 %v1563
        %v1603 = vunpack.c.l.b16 %v1564
        %v1604 = vpack.c.b16 %v1589, %v1588
        %v1605 = vpack.c.b16 %v1591, %v1590
        %v1606 = vpack.c.b16 %v1593, %v1592
        %v1607 = vpack.c.b16 %v1595, %v1594
        %v1608 = vpack.c.b16 %v1597, %v1596
        %v1609 = vpack.c.b16 %v1599, %v1598
        %v1610 = vpack.c.b16 %v1601, %v1600
        %v1611 = vpack.c.b16 %v1603, %v1602
        %1620 = vmatprep.subr.bf16.mxu0 0
        %1621 = vmatpush1.bf16.msra.mxu0 %v1604
        %1622 = vmatprep.subr.bf16.mxu0 0
        %1623 = vmatpush1.bf16.msra.mxu0 %v1605
        %1624 = vmatprep.subr.bf16.mxu0 0
        %1625 = vmatpush1.bf16.msra.mxu0 %v1606
        %1626 = vmatprep.subr.bf16.mxu0 0
        %1627 = vmatpush1.bf16.msra.mxu0 %v1607
        %1628 = vmatprep.subr.bf16.mxu0 0
        %1629 = vmatpush1.bf16.msra.mxu0 %v1608
        %1630 = vmatprep.subr.bf16.mxu0 0
        %1631 = vmatpush1.bf16.msra.mxu0 %v1609
        %1632 = vmatprep.subr.bf16.mxu0 0
        %1633 = vmatpush1.bf16.msra.mxu0 %v1610
        %1634 = vmatprep.subr.bf16.mxu0 0
        %1635 = vmatpush1.bf16.msra.mxu0 %v1611
        %1636 = vmatprep.subr.bf16.mxu0 0
        %1637 = vmatpush1.bf16.msra.mxu0 0
        %1638 = vmatprep.subr.bf16.mxu0 0
        %1639 = vmatpush1.bf16.msra.mxu0 0
        %1640 = vmatprep.subr.bf16.mxu0 0
        %1641 = vmatpush1.bf16.msra.mxu0 0
        %1642 = vmatprep.subr.bf16.mxu0 0
        %1643 = vmatpush1.bf16.msra.mxu0 0
        %1644 = vmatprep.subr.bf16.mxu0 0
        %1645 = vmatpush1.bf16.msra.mxu0 0
        %1646 = vmatprep.subr.bf16.mxu0 0
        %1647 = vmatpush1.bf16.msra.mxu0 0
        %1648 = vmatprep.subr.bf16.mxu0 0
        %1649 = vmatpush1.bf16.msra.mxu0 0
        %1650 = vmatprep.subr.bf16.mxu0 0
        %1651 = vmatpush1.bf16.msra.mxu0 0
        %1652 = vmatprep.mubr.bf16.mxu0 0
        %1653 = vmatmul.mubr.bf16.gmra.mrb[0].mxu0 %v1548
        %v1654 = vpop.f32.mrb[0].mxu0
        %v1655 = vadd.f32 %v1570, %v1654
        %v1656 = vpop.f32.mrb[0].mxu0
        %v1657 = vpop.f32.mrb[0].mxu0
        %v1658 = vpop.f32.mrb[0].mxu0
        %1659 = vdwg.mxu0
        %v1660 = vadd.f32 %v1434, %v1655
        %v1661 = vld [vmem:[%s11] sm:$0x1]
        %v1662 = vld [vmem:[%s12] sm:$0x1]
        %1663 = vadd.xlane.f32.xlu0 %v1660
        %v1664 = vpop.xlane.xlu0 %1663
        %v1665 = vmul.f32 %v1664, %v1411
        %v1666 = vsub.f32 %v1660, %v1665
        %v1667 = vmul.f32 %v1666, %v1666
        %1668 = vadd.xlane.f32.xlu0 %v1667
        %v1669 = vpop.xlane.xlu0 %1668
        %v1670 = vmul.f32 %v1669, %v1411
        %v1671 = vadd.f32 %v1670, 1e-05
        %v1672 = vrsqrt.pop %v1671
        %v1673 = vmul.f32 %v1666, %v1672
        %v1675 = vlaneseq
        %v1676 = vshrl.u32 %v1675, 7
        %v1677 = vsub.s32 0, %v1676
        %v1678 = vrot.slane %v1661, %v1677
        %v1680 = vmul.f32 %v1673, %v1678
        %v1682 = vlaneseq
        %v1683 = vshrl.u32 %v1682, 7
        %v1684 = vsub.s32 0, %v1683
        %v1685 = vrot.slane %v1662, %v1684
        %v1687 = vadd.f32 %v1680, %v1685
        %v1688 = vpack.c.bf16 %v1687, %v1687
        %s1689 = scalar_lea.vmem [#allocation6], 192
        %v1690 = vld [vmem:[%s1689] sm:$0xff]
        %v1691 = vld [vmem:[%s1689 + $0x8] sm:$0xf]
        %v1692 = vld [vmem:[%s1689 + $0xc] sm:$0xff]
        %v1693 = vld [vmem:[%s1689 + $0x14] sm:$0xf]
        %v1694 = vld [vmem:[%s1689 + $0x18] sm:$0xff]
        %v1695 = vld [vmem:[%s1689 + $0x20] sm:$0xf]
        %v1696 = vld [vmem:[%s1689 + $0x24] sm:$0xff]
        %v1697 = vld [vmem:[%s1689 + $0x2c] sm:$0xf]
        %v1698 = vld [vmem:[%s1689 + $0x30] sm:$0xff]
        %v1699 = vld [vmem:[%s1689 + $0x38] sm:$0xf]
        %v1700 = vld [vmem:[%s1689 + $0x3c] sm:$0xff]
        %v1701 = vld [vmem:[%s1689 + $0x44] sm:$0xf]
        %v1702 = vld [vmem:[%s1689 + $0x48] sm:$0xff]
        %v1703 = vld [vmem:[%s1689 + $0x50] sm:$0xf]
        %v1704 = vld [vmem:[%s1689 + $0x54] sm:$0xff]
        %v1705 = vld [vmem:[%s1689 + $0x5c] sm:$0xf]
        %v1706 = vld [vmem:[%s1689 + $0x60] sm:$0xff]
        %v1707 = vld [vmem:[%s1689 + $0x68] sm:$0xf]
        %v1708 = vld [vmem:[%s1689 + $0x6c] sm:$0xff]
        %v1709 = vld [vmem:[%s1689 + $0x74] sm:$0xf]
        %v1710 = vld [vmem:[%s1689 + $0x78] sm:$0xff]
        %v1711 = vld [vmem:[%s1689 + $0x80] sm:$0xf]
        %v1712 = vld [vmem:[%s1689 + $0x84] sm:$0xff]
        %v1713 = vld [vmem:[%s1689 + $0x8c] sm:$0xf]
        %v1714 = vld [vmem:[%s1689 + $0x90] sm:$0xff]
        %v1715 = vld [vmem:[%s1689 + $0x98] sm:$0xf]
        %v1716 = vld [vmem:[%s1689 + $0x9c] sm:$0xff]
        %v1717 = vld [vmem:[%s1689 + $0xa4] sm:$0xf]
        %v1718 = vld [vmem:[%s1689 + $0xa8] sm:$0xff]
        %v1719 = vld [vmem:[%s1689 + $0xb0] sm:$0xf]
        %v1720 = vld [vmem:[%s1689 + $0xb4] sm:$0xff]
        %v1721 = vld [vmem:[%s1689 + $0xbc] sm:$0xf]
        %s1722 = scalar_lea.vmem %s2, 3
        %v1723 = vld [vmem:[%s1722] sm:$0x7]
        %v1725 = vlaneseq
        %v1726 = vshrl.u32 %v1725, 7
        %v1727 = vsub.s32 0, %v1726
        %v1728 = vrot.slane %v1723, %v1727
        %v1729 = vlaneseq
        %v1730 = vshrl.u32 %v1729, 7
        %v1731 = vsub.s32 1, %v1730
        %v1732 = vrot.slane %v1723, %v1731
        %v1733 = vlaneseq
        %v1734 = vshrl.u32 %v1733, 7
        %v1735 = vsub.s32 2, %v1734
        %v1736 = vrot.slane %v1723, %v1735
        %v1772 = vunpack.c.l.b16 %v1690
        %v1773 = vunpack.c.h.b16 %v1690
        %v1774 = vunpack.c.l.b16 %v1691
        %v1775 = vunpack.c.l.b16 %v1692
        %v1776 = vunpack.c.h.b16 %v1692
        %v1777 = vunpack.c.l.b16 %v1693
        %v1778 = vunpack.c.l.b16 %v1694
        %v1779 = vunpack.c.h.b16 %v1694
        %v1780 = vunpack.c.l.b16 %v1695
        %v1781 = vunpack.c.l.b16 %v1696
        %v1782 = vunpack.c.h.b16 %v1696
        %v1783 = vunpack.c.l.b16 %v1697
        %v1784 = vunpack.c.l.b16 %v1698
        %v1785 = vunpack.c.h.b16 %v1698
        %v1786 = vunpack.c.l.b16 %v1699
        %v1787 = vunpack.c.l.b16 %v1700
        %v1788 = vunpack.c.h.b16 %v1700
        %v1789 = vunpack.c.l.b16 %v1701
        %v1790 = vunpack.c.l.b16 %v1702
        %v1791 = vunpack.c.h.b16 %v1702
        %v1792 = vunpack.c.l.b16 %v1703
        %v1793 = vunpack.c.l.b16 %v1704
        %v1794 = vunpack.c.h.b16 %v1704
        %v1795 = vunpack.c.l.b16 %v1705
        %v1796 = vunpack.c.l.b16 %v1706
        %v1797 = vunpack.c.h.b16 %v1706
        %v1798 = vunpack.c.l.b16 %v1707
        %v1799 = vunpack.c.l.b16 %v1708
        %v1800 = vunpack.c.h.b16 %v1708
        %v1801 = vunpack.c.l.b16 %v1709
        %v1802 = vunpack.c.l.b16 %v1710
        %v1803 = vunpack.c.h.b16 %v1710
        %v1804 = vunpack.c.l.b16 %v1711
        %v1805 = vunpack.c.l.b16 %v1712
        %v1806 = vunpack.c.h.b16 %v1712
        %v1807 = vunpack.c.l.b16 %v1713
        %v1808 = vunpack.c.l.b16 %v1714
        %v1809 = vunpack.c.h.b16 %v1714
        %v1810 = vunpack.c.l.b16 %v1715
        %v1811 = vunpack.c.l.b16 %v1716
        %v1812 = vunpack.c.h.b16 %v1716
        %v1813 = vunpack.c.l.b16 %v1717
        %v1814 = vunpack.c.l.b16 %v1718
        %v1815 = vunpack.c.h.b16 %v1718
        %v1816 = vunpack.c.l.b16 %v1719
        %v1817 = vunpack.c.l.b16 %v1720
        %v1818 = vunpack.c.h.b16 %v1720
        %v1819 = vunpack.c.l.b16 %v1721
        %v1820 = vpack.c.b16 %v1775, %v1772
        %v1821 = vpack.c.b16 %v1776, %v1773
        %v1822 = vpack.c.b16 %v1777, %v1774
        %v1823 = vpack.c.b16 %v1781, %v1778
        %v1824 = vpack.c.b16 %v1782, %v1779
        %v1825 = vpack.c.b16 %v1783, %v1780
        %v1826 = vpack.c.b16 %v1787, %v1784
        %v1827 = vpack.c.b16 %v1788, %v1785
        %v1828 = vpack.c.b16 %v1789, %v1786
        %v1829 = vpack.c.b16 %v1793, %v1790
        %v1830 = vpack.c.b16 %v1794, %v1791
        %v1831 = vpack.c.b16 %v1795, %v1792
        %v1832 = vpack.c.b16 %v1799, %v1796
        %v1833 = vpack.c.b16 %v1800, %v1797
        %v1834 = vpack.c.b16 %v1801, %v1798
        %v1835 = vpack.c.b16 %v1805, %v1802
        %v1836 = vpack.c.b16 %v1806, %v1803
        %v1837 = vpack.c.b16 %v1807, %v1804
        %v1838 = vpack.c.b16 %v1811, %v1808
        %v1839 = vpack.c.b16 %v1812, %v1809
        %v1840 = vpack.c.b16 %v1813, %v1810
        %v1841 = vpack.c.b16 %v1817, %v1814
        %v1842 = vpack.c.b16 %v1818, %v1815
        %v1843 = vpack.c.b16 %v1819, %v1816
        %1868 = vmatprep.subr.bf16.mxu0 %v1821
        %1869 = vmatpush1.bf16.msra.mxu0 %v1820
        %1870 = vmatprep.subr.bf16.mxu0 %v1824
        %1871 = vmatpush1.bf16.msra.mxu0 %v1823
        %1872 = vmatprep.subr.bf16.mxu0 %v1827
        %1873 = vmatpush1.bf16.msra.mxu0 %v1826
        %1874 = vmatprep.subr.bf16.mxu0 %v1830
        %1875 = vmatpush1.bf16.msra.mxu0 %v1829
        %1876 = vmatprep.subr.bf16.mxu0 %v1833
        %1877 = vmatpush1.bf16.msra.mxu0 %v1832
        %1878 = vmatprep.subr.bf16.mxu0 %v1836
        %1879 = vmatpush1.bf16.msra.mxu0 %v1835
        %1880 = vmatprep.subr.bf16.mxu0 %v1839
        %1881 = vmatpush1.bf16.msra.mxu0 %v1838
        %1882 = vmatprep.subr.bf16.mxu0 %v1842
        %1883 = vmatpush1.bf16.msra.mxu0 %v1841
        %1884 = vmatprep.subr.bf16.mxu0 0
        %1885 = vmatpush1.bf16.msra.mxu0 0
        %1886 = vmatprep.subr.bf16.mxu0 0
        %1887 = vmatpush1.bf16.msra.mxu0 0
        %1888 = vmatprep.subr.bf16.mxu0 0
        %1889 = vmatpush1.bf16.msra.mxu0 0
        %1890 = vmatprep.subr.bf16.mxu0 0
        %1891 = vmatpush1.bf16.msra.mxu0 0
        %1892 = vmatprep.subr.bf16.mxu0 0
        %1893 = vmatpush1.bf16.msra.mxu0 0
        %1894 = vmatprep.subr.bf16.mxu0 0
        %1895 = vmatpush1.bf16.msra.mxu0 0
        %1896 = vmatprep.subr.bf16.mxu0 0
        %1897 = vmatpush1.bf16.msra.mxu0 0
        %1898 = vmatprep.subr.bf16.mxu0 0
        %1899 = vmatpush1.bf16.msra.mxu0 0
        %1900 = vmatprep.mubr.bf16.mxu0 0
        %1901 = vmatmul.mubr.bf16.gmra.mrb[0].mxu0 %v1688
        %v1902 = vpop.f32.mrb[0].mxu0
        %v1903 = vadd.f32 %v1728, %v1902
        %v1904 = vpop.f32.mrb[0].mxu0
        %v1905 = vadd.f32 %v1732, %v1904
        %v1906 = vpop.f32.mrb[0].mxu0
        %v1907 = vpop.f32.mrb[0].mxu0
        %1908 = vdwg.mxu0
        %1909 = vmatprep.subr.bf16.mxu0 0
        %1910 = vmatpush1.bf16.msra.mxu0 %v1822
        %1911 = vmatprep.subr.bf16.mxu0 0
        %1912 = vmatpush1.bf16.msra.mxu0 %v1825
        %1913 = vmatprep.subr.bf16.mxu0 0
        %1914 = vmatpush1.bf16.msra.mxu0 %v1828
        %1915 = vmatprep.subr.bf16.mxu0 0
        %1916 = vmatpush1.bf16.msra.mxu0 %v1831
        %1917 = vmatprep.subr.bf16.mxu0 0
        %1918 = vmatpush1.bf16.msra.mxu0 %v1834
        %1919 = vmatprep.subr.bf16.mxu0 0
        %1920 = vmatpush1.bf16.msra.mxu0 %v1837
        %1921 = vmatprep.subr.bf16.mxu0 0
        %1922 = vmatpush1.bf16.msra.mxu0 %v1840
        %1923 = vmatprep.subr.bf16.mxu0 0
        %1924 = vmatpush1.bf16.msra.mxu0 %v1843
        %1925 = vmatprep.subr.bf16.mxu0 0
        %1926 = vmatpush1.bf16.msra.mxu0 0
        %1927 = vmatprep.subr.bf16.mxu0 0
        %1928 = vmatpush1.bf16.msra.mxu0 0
        %1929 = vmatprep.subr.bf16.mxu0 0
        %1930 = vmatpush1.bf16.msra.mxu0 0
        %1931 = vmatprep.subr.bf16.mxu0 0
        %1932 = vmatpush1.bf16.msra.mxu0 0
        %1933 = vmatprep.subr.bf16.mxu0 0
        %1934 = vmatpush1.bf16.msra.mxu0 0
        %1935 = vmatprep.subr.bf16.mxu0 0
        %1936 = vmatpush1.bf16.msra.mxu0 0
        %1937 = vmatprep.subr.bf16.mxu0 0
        %1938 = vmatpush1.bf16.msra.mxu0 0
        %1939 = vmatprep.subr.bf16.mxu0 0
        %1940 = vmatpush1.bf16.msra.mxu0 0
        %1941 = vmatprep.mubr.bf16.mxu0 0
        %1942 = vmatmul.mubr.bf16.gmra.mrb[0].mxu0 %v1688
        %v1943 = vpop.f32.mrb[0].mxu0
        %v1944 = vadd.f32 %v1736, %v1943
        %v1945 = vpop.f32.mrb[0].mxu0
        %v1946 = vpop.f32.mrb[0].mxu0
        %v1947 = vpop.f32.mrb[0].mxu0
        %1948 = vdwg.mxu0
        %v1949 = vpack.c.bf16 %v1903, %v1903
        %v1950 = vpack.c.bf16 %v1905, %v1905
        %v1951 = vpack.c.bf16 %v1944, %v1944
        %v1953 = vsel %vm833, %v1949, 0
        %v1956 = vsel %vm833, %v1950, 0
        %1958 = vmatprep.subr.bf16.mxu0 0
        %1959 = vmatpush1.bf16.xpose.msra.mxu0 %v1956
        %1960 = vmatprep.subr.bf16.mxu0 0
        %1961 = vmatpush1.bf16.xpose.msra.mxu0 0
        %1962 = vmatprep.subr.bf16.mxu0 0
        %1963 = vmatpush1.bf16.xpose.msra.mxu0 0
        %1964 = vmatprep.subr.bf16.mxu0 0
        %1965 = vmatpush1.bf16.xpose.msra.mxu0 0
        %1966 = vmatprep.subr.bf16.mxu0 0
        %1967 = vmatpush1.bf16.xpose.msra.mxu0 0
        %1968 = vmatprep.subr.bf16.mxu0 0
        %1969 = vmatpush1.bf16.xpose.msra.mxu0 0
        %1970 = vmatprep.subr.bf16.mxu0 0
        %1971 = vmatpush1.bf16.xpose.msra.mxu0 0
        %1972 = vmatprep.subr.bf16.mxu0 0
        %1973 = vmatpush1.bf16.xpose.msra.mxu0 0
        %1974 = vmatprep.subr.bf16.mxu0 0
        %1975 = vmatpush1.bf16.xpose.msra.mxu0 0
        %1976 = vmatprep.subr.bf16.mxu0 0
        %1977 = vmatpush1.bf16.xpose.msra.mxu0 0
        %1978 = vmatprep.subr.bf16.mxu0 0
        %1979 = vmatpush1.bf16.xpose.msra.mxu0 0
        %1980 = vmatprep.subr.bf16.mxu0 0
        %1981 = vmatpush1.bf16.xpose.msra.mxu0 0
        %1982 = vmatprep.subr.bf16.mxu0 0
        %1983 = vmatpush1.bf16.xpose.msra.mxu0 0
        %1984 = vmatprep.subr.bf16.mxu0 0
        %1985 = vmatpush1.bf16.xpose.msra.mxu0 0
        %1986 = vmatprep.subr.bf16.mxu0 0
        %1987 = vmatpush1.bf16.xpose.msra.mxu0 0
        %1988 = vmatprep.subr.bf16.mxu0 0
        %1989 = vmatpush1.bf16.xpose.msra.mxu0 0
        %1990 = vmatprep.mubr.bf16.mxu0 0
        %1991 = vmatmul.mubr.bf16.gmra.mrb[0].mxu0 %v1953
        %v1992 = vpop.f32.mrb[0].mxu0
        %v1993 = vadd.f32 0.0, %v1992
        %v1994 = vpop.f32.mrb[0].mxu0
        %v1995 = vpop.f32.mrb[0].mxu0
        %v1996 = vpop.f32.mrb[0].mxu0
        %1997 = vdwg.mxu0
        %v1998 = vmul.f32 %v1993, 0.17677669
        %v1999 = vsel %vm881, %v1998, -inf
        %2000 = vmax.xlane.f32.xlu0 %v1999
        %v2001 = vpop.xlane.xlu0 %2000
        %v2002 = vsub.f32 %v1998, %v2001
        %v2003 = vmul.f32 %v2002, 1.442695
        %v2004 = vpow.pop %v2003
        %v2005 = vsel %vm881, %v2004, 0.0
        %2006 = vadd.xlane.f32.xlu0 %v2005
        %v2007 = vpop.xlane.xlu0 %2006
        %v2008 = vrcp.pop %v2007
        %v2009 = vmul.f32 %v2004, %v2008
        %v2010 = vpack.c.bf16 %v2009, %v2009
        %v2012 = vsel %vm881, %v2010, 0
        %v2015 = vsel %vm897, %v1951, 0
        %2017 = vmatprep.subr.bf16.mxu0 0
        %2018 = vmatpush1.bf16.msra.mxu0 %v2015
        %2019 = vmatprep.subr.bf16.mxu0 0
        %2020 = vmatpush1.bf16.msra.mxu0 0
        %2021 = vmatprep.subr.bf16.mxu0 0
        %2022 = vmatpush1.bf16.msra.mxu0 0
        %2023 = vmatprep.subr.bf16.mxu0 0
        %2024 = vmatpush1.bf16.msra.mxu0 0
        %2025 = vmatprep.subr.bf16.mxu0 0
        %2026 = vmatpush1.bf16.msra.mxu0 0
        %2027 = vmatprep.subr.bf16.mxu0 0
        %2028 = vmatpush1.bf16.msra.mxu0 0
        %2029 = vmatprep.subr.bf16.mxu0 0
        %2030 = vmatpush1.bf16.msra.mxu0 0
        %2031 = vmatprep.subr.bf16.mxu0 0
        %2032 = vmatpush1.bf16.msra.mxu0 0
        %2033 = vmatprep.subr.bf16.mxu0 0
        %2034 = vmatpush1.bf16.msra.mxu0 0
        %2035 = vmatprep.subr.bf16.mxu0 0
        %2036 = vmatpush1.bf16.msra.mxu0 0
        %2037 = vmatprep.subr.bf16.mxu0 0
        %2038 = vmatpush1.bf16.msra.mxu0 0
        %2039 = vmatprep.subr.bf16.mxu0 0
        %2040 = vmatpush1.bf16.msra.mxu0 0
        %2041 = vmatprep.subr.bf16.mxu0 0
        %2042 = vmatpush1.bf16.msra.mxu0 0
        %2043 = vmatprep.subr.bf16.mxu0 0
        %2044 = vmatpush1.bf16.msra.mxu0 0
        %2045 = vmatprep.subr.bf16.mxu0 0
        %2046 = vmatpush1.bf16.msra.mxu0 0
        %2047 = vmatprep.subr.bf16.mxu0 0
        %2048 = vmatpush1.bf16.msra.mxu0 0
        %2049 = vmatprep.mubr.bf16.mxu0 0
        %2050 = vmatmul.mubr.bf16.gmra.mrb[0].mxu0 %v2012
        %v2051 = vpop.f32.mrb[0].mxu0
        %v2052 = vadd.f32 0.0, %v2051
        %v2053 = vpop.f32.mrb[0].mxu0
        %v2054 = vpop.f32.mrb[0].mxu0
        %v2055 = vpop.f32.mrb[0].mxu0
        %2056 = vdwg.mxu0
        %2058 = vrot.lane.b32.xlu0 %v1949, 96
        %v2059 = vpop.permute.xlu0 %2058
        %2061 = vrot.lane.b32.xlu0 %v1950, 96
        %v2062 = vpop.permute.xlu0 %2061
        %v2064 = vsel %vm833, %v2059, 0
        %v2067 = vsel %vm833, %v2062, 0
        %2069 = vmatprep.subr.bf16.mxu0 0
        %2070 = vmatpush1.bf16.xpose.msra.mxu0 %v2067
        %2071 = vmatprep.subr.bf16.mxu0 0
        %2072 = vmatpush1.bf16.xpose.msra.mxu0 0
        %2073 = vmatprep.subr.bf16.mxu0 0
        %2074 = vmatpush1.bf16.xpose.msra.mxu0 0
        %2075 = vmatprep.subr.bf16.mxu0 0
        %2076 = vmatpush1.bf16.xpose.msra.mxu0 0
        %2077 = vmatprep.subr.bf16.mxu0 0
        %2078 = vmatpush1.bf16.xpose.msra.mxu0 0
        %2079 = vmatprep.subr.bf16.mxu0 0
        %2080 = vmatpush1.bf16.xpose.msra.mxu0 0
        %2081 = vmatprep.subr.bf16.mxu0 0
        %2082 = vmatpush1.bf16.xpose.msra.mxu0 0
        %2083 = vmatprep.subr.bf16.mxu0 0
        %2084 = vmatpush1.bf16.xpose.msra.mxu0 0
        %2085 = vmatprep.subr.bf16.mxu0 0
        %2086 = vmatpush1.bf16.xpose.msra.mxu0 0
        %2087 = vmatprep.subr.bf16.mxu0 0
        %2088 = vmatpush1.bf16.xpose.msra.mxu0 0
        %2089 = vmatprep.subr.bf16.mxu0 0
        %2090 = vmatpush1.bf16.xpose.msra.mxu0 0
        %2091 = vmatprep.subr.bf16.mxu0 0
        %2092 = vmatpush1.bf16.xpose.msra.mxu0 0
        %2093 = vmatprep.subr.bf16.mxu0 0
        %2094 = vmatpush1.bf16.xpose.msra.mxu0 0
        %2095 = vmatprep.subr.bf16.mxu0 0
        %2096 = vmatpush1.bf16.xpose.msra.mxu0 0
        %2097 = vmatprep.subr.bf16.mxu0 0
        %2098 = vmatpush1.bf16.xpose.msra.mxu0 0
        %2099 = vmatprep.subr.bf16.mxu0 0
        %2100 = vmatpush1.bf16.xpose.msra.mxu0 0
        %2101 = vmatprep.mubr.bf16.mxu0 0
        %2102 = vmatmul.mubr.bf16.gmra.mrb[0].mxu0 %v2064
        %v2103 = vpop.f32.mrb[0].mxu0
        %v2104 = vadd.f32 0.0, %v2103
        %v2105 = vpop.f32.mrb[0].mxu0
        %v2106 = vpop.f32.mrb[0].mxu0
        %v2107 = vpop.f32.mrb[0].mxu0
        %2108 = vdwg.mxu0
        %v2109 = vmul.f32 %v2104, 0.17677669
        %v2110 = vsel %vm881, %v2109, -inf
        %2111 = vmax.xlane.f32.xlu0 %v2110
        %v2112 = vpop.xlane.xlu0 %2111
        %v2113 = vsub.f32 %v2109, %v2112
        %v2114 = vmul.f32 %v2113, 1.442695
        %v2115 = vpow.pop %v2114
        %v2116 = vsel %vm881, %v2115, 0.0
        %2117 = vadd.xlane.f32.xlu0 %v2116
        %v2118 = vpop.xlane.xlu0 %2117
        %v2119 = vrcp.pop %v2118
        %v2120 = vmul.f32 %v2115, %v2119
        %v2121 = vpack.c.bf16 %v2120, %v2120
        %2123 = vrot.lane.b32.xlu0 %v1951, 96
        %v2124 = vpop.permute.xlu0 %2123
        %v2126 = vsel %vm881, %v2121, 0
        %v2129 = vsel %vm897, %v2124, 0
        %2131 = vmatprep.subr.bf16.mxu0 0
        %2132 = vmatpush1.bf16.msra.mxu0 %v2129
        %2133 = vmatprep.subr.bf16.mxu0 0
        %2134 = vmatpush1.bf16.msra.mxu0 0
        %2135 = vmatprep.subr.bf16.mxu0 0
        %2136 = vmatpush1.bf16.msra.mxu0 0
        %2137 = vmatprep.subr.bf16.mxu0 0
        %2138 = vmatpush1.bf16.msra.mxu0 0
        %2139 = vmatprep.subr.bf16.mxu0 0
        %2140 = vmatpush1.bf16.msra.mxu0 0
        %2141 = vmatprep.subr.bf16.mxu0 0
        %2142 = vmatpush1.bf16.msra.mxu0 0
        %2143 = vmatprep.subr.bf16.mxu0 0
        %2144 = vmatpush1.bf16.msra.mxu0 0
        %2145 = vmatprep.subr.bf16.mxu0 0
        %2146 = vmatpush1.bf16.msra.mxu0 0
        %2147 = vmatprep.subr.bf16.mxu0 0
        %2148 = vmatpush1.bf16.msra.mxu0 0
        %2149 = vmatprep.subr.bf16.mxu0 0
        %2150 = vmatpush1.bf16.msra.mxu0 0
        %2151 = vmatprep.subr.bf16.mxu0 0
        %2152 = vmatpush1.bf16.msra.mxu0 0
        %2153 = vmatprep.subr.bf16.mxu0 0
        %2154 = vmatpush1.bf16.msra.mxu0 0
        %2155 = vmatprep.subr.bf16.mxu0 0
        %2156 = vmatpush1.bf16.msra.mxu0 0
        %2157 = vmatprep.subr.bf16.mxu0 0
        %2158 = vmatpush1.bf16.msra.mxu0 0
        %2159 = vmatprep.subr.bf16.mxu0 0
        %2160 = vmatpush1.bf16.msra.mxu0 0
        %2161 = vmatprep.subr.bf16.mxu0 0
        %2162 = vmatpush1.bf16.msra.mxu0 0
        %2163 = vmatprep.mubr.bf16.mxu0 0
        %2164 = vmatmul.mubr.bf16.gmra.mrb[0].mxu0 %v2126
        %v2165 = vpop.f32.mrb[0].mxu0
        %v2166 = vadd.f32 0.0, %v2165
        %v2167 = vpop.f32.mrb[0].mxu0
        %v2168 = vpop.f32.mrb[0].mxu0
        %v2169 = vpop.f32.mrb[0].mxu0
        %2170 = vdwg.mxu0
        %2171 = vrot.lane.b32.xlu0 %v1949, 64
        %v2172 = vpop.permute.xlu0 %2171
        %2173 = vrot.lane.b32.xlu0 %v1950, 64
        %v2174 = vpop.permute.xlu0 %2173
        %v2176 = vsel %vm833, %v2172, 0
        %v2179 = vsel %vm833, %v2174, 0
        %2181 = vmatprep.subr.bf16.mxu0 0
        %2182 = vmatpush1.bf16.xpose.msra.mxu0 %v2179
        %2183 = vmatprep.subr.bf16.mxu0 0
        %2184 = vmatpush1.bf16.xpose.msra.mxu0 0
        %2185 = vmatprep.subr.bf16.mxu0 0
        %2186 = vmatpush1.bf16.xpose.msra.mxu0 0
        %2187 = vmatprep.subr.bf16.mxu0 0
        %2188 = vmatpush1.bf16.xpose.msra.mxu0 0
        %2189 = vmatprep.subr.bf16.mxu0 0
        %2190 = vmatpush1.bf16.xpose.msra.mxu0 0
        %2191 = vmatprep.subr.bf16.mxu0 0
        %2192 = vmatpush1.bf16.xpose.msra.mxu0 0
        %2193 = vmatprep.subr.bf16.mxu0 0
        %2194 = vmatpush1.bf16.xpose.msra.mxu0 0
        %2195 = vmatprep.subr.bf16.mxu0 0
        %2196 = vmatpush1.bf16.xpose.msra.mxu0 0
        %2197 = vmatprep.subr.bf16.mxu0 0
        %2198 = vmatpush1.bf16.xpose.msra.mxu0 0
        %2199 = vmatprep.subr.bf16.mxu0 0
        %2200 = vmatpush1.bf16.xpose.msra.mxu0 0
        %2201 = vmatprep.subr.bf16.mxu0 0
        %2202 = vmatpush1.bf16.xpose.msra.mxu0 0
        %2203 = vmatprep.subr.bf16.mxu0 0
        %2204 = vmatpush1.bf16.xpose.msra.mxu0 0
        %2205 = vmatprep.subr.bf16.mxu0 0
        %2206 = vmatpush1.bf16.xpose.msra.mxu0 0
        %2207 = vmatprep.subr.bf16.mxu0 0
        %2208 = vmatpush1.bf16.xpose.msra.mxu0 0
        %2209 = vmatprep.subr.bf16.mxu0 0
        %2210 = vmatpush1.bf16.xpose.msra.mxu0 0
        %2211 = vmatprep.subr.bf16.mxu0 0
        %2212 = vmatpush1.bf16.xpose.msra.mxu0 0
        %2213 = vmatprep.mubr.bf16.mxu0 0
        %2214 = vmatmul.mubr.bf16.gmra.mrb[0].mxu0 %v2176
        %v2215 = vpop.f32.mrb[0].mxu0
        %v2216 = vadd.f32 0.0, %v2215
        %v2217 = vpop.f32.mrb[0].mxu0
        %v2218 = vpop.f32.mrb[0].mxu0
        %v2219 = vpop.f32.mrb[0].mxu0
        %2220 = vdwg.mxu0
        %v2221 = vmul.f32 %v2216, 0.17677669
        %v2222 = vsel %vm881, %v2221, -inf
        %2223 = vmax.xlane.f32.xlu0 %v2222
        %v2224 = vpop.xlane.xlu0 %2223
        %v2225 = vsub.f32 %v2221, %v2224
        %v2226 = vmul.f32 %v2225, 1.442695
        %v2227 = vpow.pop %v2226
        %v2228 = vsel %vm881, %v2227, 0.0
        %2229 = vadd.xlane.f32.xlu0 %v2228
        %v2230 = vpop.xlane.xlu0 %2229
        %v2231 = vrcp.pop %v2230
        %v2232 = vmul.f32 %v2227, %v2231
        %v2233 = vpack.c.bf16 %v2232, %v2232
        %2234 = vrot.lane.b32.xlu0 %v1951, 64
        %v2235 = vpop.permute.xlu0 %2234
        %v2237 = vsel %vm881, %v2233, 0
        %v2240 = vsel %vm897, %v2235, 0
        %2242 = vmatprep.subr.bf16.mxu0 0
        %2243 = vmatpush1.bf16.msra.mxu0 %v2240
        %2244 = vmatprep.subr.bf16.mxu0 0
        %2245 = vmatpush1.bf16.msra.mxu0 0
        %2246 = vmatprep.subr.bf16.mxu0 0
        %2247 = vmatpush1.bf16.msra.mxu0 0
        %2248 = vmatprep.subr.bf16.mxu0 0
        %2249 = vmatpush1.bf16.msra.mxu0 0
        %2250 = vmatprep.subr.bf16.mxu0 0
        %2251 = vmatpush1.bf16.msra.mxu0 0
        %2252 = vmatprep.subr.bf16.mxu0 0
        %2253 = vmatpush1.bf16.msra.mxu0 0
        %2254 = vmatprep.subr.bf16.mxu0 0
        %2255 = vmatpush1.bf16.msra.mxu0 0
        %2256 = vmatprep.subr.bf16.mxu0 0
        %2257 = vmatpush1.bf16.msra.mxu0 0
        %2258 = vmatprep.subr.bf16.mxu0 0
        %2259 = vmatpush1.bf16.msra.mxu0 0
        %2260 = vmatprep.subr.bf16.mxu0 0
        %2261 = vmatpush1.bf16.msra.mxu0 0
        %2262 = vmatprep.subr.bf16.mxu0 0
        %2263 = vmatpush1.bf16.msra.mxu0 0
        %2264 = vmatprep.subr.bf16.mxu0 0
        %2265 = vmatpush1.bf16.msra.mxu0 0
        %2266 = vmatprep.subr.bf16.mxu0 0
        %2267 = vmatpush1.bf16.msra.mxu0 0
        %2268 = vmatprep.subr.bf16.mxu0 0
        %2269 = vmatpush1.bf16.msra.mxu0 0
        %2270 = vmatprep.subr.bf16.mxu0 0
        %2271 = vmatpush1.bf16.msra.mxu0 0
        %2272 = vmatprep.subr.bf16.mxu0 0
        %2273 = vmatpush1.bf16.msra.mxu0 0
        %2274 = vmatprep.mubr.bf16.mxu0 0
        %2275 = vmatmul.mubr.bf16.gmra.mrb[0].mxu0 %v2237
        %v2276 = vpop.f32.mrb[0].mxu0
        %v2277 = vadd.f32 0.0, %v2276
        %v2278 = vpop.f32.mrb[0].mxu0
        %v2279 = vpop.f32.mrb[0].mxu0
        %v2280 = vpop.f32.mrb[0].mxu0
        %2281 = vdwg.mxu0
        %2282 = vrot.lane.b32.xlu0 %v1949, 32
        %v2283 = vpop.permute.xlu0 %2282
        %2284 = vrot.lane.b32.xlu0 %v1950, 32
        %v2285 = vpop.permute.xlu0 %2284
        %v2287 = vsel %vm833, %v2283, 0
        %v2290 = vsel %vm833, %v2285, 0
        %2292 = vmatprep.subr.bf16.mxu0 0
        %2293 = vmatpush1.bf16.xpose.msra.mxu0 %v2290
        %2294 = vmatprep.subr.bf16.mxu0 0
        %2295 = vmatpush1.bf16.xpose.msra.mxu0 0
        %2296 = vmatprep.subr.bf16.mxu0 0
        %2297 = vmatpush1.bf16.xpose.msra.mxu0 0
        %2298 = vmatprep.subr.bf16.mxu0 0
        %2299 = vmatpush1.bf16.xpose.msra.mxu0 0
        %2300 = vmatprep.subr.bf16.mxu0 0
        %2301 = vmatpush1.bf16.xpose.msra.mxu0 0
        %2302 = vmatprep.subr.bf16.mxu0 0
        %2303 = vmatpush1.bf16.xpose.msra.mxu0 0
        %2304 = vmatprep.subr.bf16.mxu0 0
        %2305 = vmatpush1.bf16.xpose.msra.mxu0 0
        %2306 = vmatprep.subr.bf16.mxu0 0
        %2307 = vmatpush1.bf16.xpose.msra.mxu0 0
        %2308 = vmatprep.subr.bf16.mxu0 0
        %2309 = vmatpush1.bf16.xpose.msra.mxu0 0
        %2310 = vmatprep.subr.bf16.mxu0 0
        %2311 = vmatpush1.bf16.xpose.msra.mxu0 0
        %2312 = vmatprep.subr.bf16.mxu0 0
        %2313 = vmatpush1.bf16.xpose.msra.mxu0 0
        %2314 = vmatprep.subr.bf16.mxu0 0
        %2315 = vmatpush1.bf16.xpose.msra.mxu0 0
        %2316 = vmatprep.subr.bf16.mxu0 0
        %2317 = vmatpush1.bf16.xpose.msra.mxu0 0
        %2318 = vmatprep.subr.bf16.mxu0 0
        %2319 = vmatpush1.bf16.xpose.msra.mxu0 0
        %2320 = vmatprep.subr.bf16.mxu0 0
        %2321 = vmatpush1.bf16.xpose.msra.mxu0 0
        %2322 = vmatprep.subr.bf16.mxu0 0
        %2323 = vmatpush1.bf16.xpose.msra.mxu0 0
        %2324 = vmatprep.mubr.bf16.mxu0 0
        %2325 = vmatmul.mubr.bf16.gmra.mrb[0].mxu0 %v2287
        %v2326 = vpop.f32.mrb[0].mxu0
        %v2327 = vadd.f32 0.0, %v2326
        %v2328 = vpop.f32.mrb[0].mxu0
        %v2329 = vpop.f32.mrb[0].mxu0
        %v2330 = vpop.f32.mrb[0].mxu0
        %2331 = vdwg.mxu0
        %v2332 = vmul.f32 %v2327, 0.17677669
        %v2333 = vsel %vm881, %v2332, -inf
        %2334 = vmax.xlane.f32.xlu0 %v2333
        %v2335 = vpop.xlane.xlu0 %2334
        %v2336 = vsub.f32 %v2332, %v2335
        %v2337 = vmul.f32 %v2336, 1.442695
        %v2338 = vpow.pop %v2337
        %v2339 = vsel %vm881, %v2338, 0.0
        %2340 = vadd.xlane.f32.xlu0 %v2339
        %v2341 = vpop.xlane.xlu0 %2340
        %v2342 = vrcp.pop %v2341
        %v2343 = vmul.f32 %v2338, %v2342
        %v2344 = vpack.c.bf16 %v2343, %v2343
        %2345 = vrot.lane.b32.xlu0 %v1951, 32
        %v2346 = vpop.permute.xlu0 %2345
        %v2348 = vsel %vm881, %v2344, 0
        %v2351 = vsel %vm897, %v2346, 0
        %2353 = vmatprep.subr.bf16.mxu0 0
        %2354 = vmatpush1.bf16.msra.mxu0 %v2351
        %2355 = vmatprep.subr.bf16.mxu0 0
        %2356 = vmatpush1.bf16.msra.mxu0 0
        %2357 = vmatprep.subr.bf16.mxu0 0
        %2358 = vmatpush1.bf16.msra.mxu0 0
        %2359 = vmatprep.subr.bf16.mxu0 0
        %2360 = vmatpush1.bf16.msra.mxu0 0
        %2361 = vmatprep.subr.bf16.mxu0 0
        %2362 = vmatpush1.bf16.msra.mxu0 0
        %2363 = vmatprep.subr.bf16.mxu0 0
        %2364 = vmatpush1.bf16.msra.mxu0 0
        %2365 = vmatprep.subr.bf16.mxu0 0
        %2366 = vmatpush1.bf16.msra.mxu0 0
        %2367 = vmatprep.subr.bf16.mxu0 0
        %2368 = vmatpush1.bf16.msra.mxu0 0
        %2369 = vmatprep.subr.bf16.mxu0 0
        %2370 = vmatpush1.bf16.msra.mxu0 0
        %2371 = vmatprep.subr.bf16.mxu0 0
        %2372 = vmatpush1.bf16.msra.mxu0 0
        %2373 = vmatprep.subr.bf16.mxu0 0
        %2374 = vmatpush1.bf16.msra.mxu0 0
        %2375 = vmatprep.subr.bf16.mxu0 0
        %2376 = vmatpush1.bf16.msra.mxu0 0
        %2377 = vmatprep.subr.bf16.mxu0 0
        %2378 = vmatpush1.bf16.msra.mxu0 0
        %2379 = vmatprep.subr.bf16.mxu0 0
        %2380 = vmatpush1.bf16.msra.mxu0 0
        %2381 = vmatprep.subr.bf16.mxu0 0
        %2382 = vmatpush1.bf16.msra.mxu0 0
        %2383 = vmatprep.subr.bf16.mxu0 0
        %2384 = vmatpush1.bf16.msra.mxu0 0
        %2385 = vmatprep.mubr.bf16.mxu0 0
        %2386 = vmatmul.mubr.bf16.gmra.mrb[0].mxu0 %v2348
        %v2387 = vpop.f32.mrb[0].mxu0
        %v2388 = vadd.f32 0.0, %v2387
        %v2389 = vpop.f32.mrb[0].mxu0
        %v2390 = vpop.f32.mrb[0].mxu0
        %v2391 = vpop.f32.mrb[0].mxu0
        %2392 = vdwg.mxu0
        %2394 = vrot.lane.b32.xlu0 %v2166, 32
        %v2395 = vpop.permute.xlu0 %2394
        %2398 = vrot.lane.b32.xlu0 %v2277, 64
        %v2399 = vpop.permute.xlu0 %2398
        %2402 = vrot.lane.b32.xlu0 %v2388, 96
        %v2403 = vpop.permute.xlu0 %2402
        %v2405 = vsel %vm833, %v2052, %v2395
        %v2406 = vsel %vm1290, %v2405, %v2399
        %v2407 = vsel %vm1292, %v2406, %v2403
        %v2408 = vpack.c.bf16 %v2407, %v2407
        %s2409 = scalar_lea.vmem [#allocation8], 64
        %v2410 = vld [vmem:[%s2409] sm:$0xf]
        %v2411 = vld [vmem:[%s2409 + $0x4] sm:$0xf]
        %v2412 = vld [vmem:[%s2409 + $0x8] sm:$0xf]
        %v2413 = vld [vmem:[%s2409 + $0xc] sm:$0xf]
        %v2414 = vld [vmem:[%s2409 + $0x10] sm:$0xf]
        %v2415 = vld [vmem:[%s2409 + $0x14] sm:$0xf]
        %v2416 = vld [vmem:[%s2409 + $0x18] sm:$0xf]
        %v2417 = vld [vmem:[%s2409 + $0x1c] sm:$0xf]
        %v2418 = vld [vmem:[%s2409 + $0x20] sm:$0xf]
        %v2419 = vld [vmem:[%s2409 + $0x24] sm:$0xf]
        %v2420 = vld [vmem:[%s2409 + $0x28] sm:$0xf]
        %v2421 = vld [vmem:[%s2409 + $0x2c] sm:$0xf]
        %v2422 = vld [vmem:[%s2409 + $0x30] sm:$0xf]
        %v2423 = vld [vmem:[%s2409 + $0x34] sm:$0xf]
        %v2424 = vld [vmem:[%s2409 + $0x38] sm:$0xf]
        %v2425 = vld [vmem:[%s2409 + $0x3c] sm:$0xf]
        %s2426 = scalar_lea.vmem %s4, 1
        %v2427 = vld [vmem:[%s2426] sm:$0x1]
        %v2429 = vlaneseq
        %v2430 = vshrl.u32 %v2429, 7
        %v2431 = vsub.s32 0, %v2430
        %v2432 = vrot.slane %v2427, %v2431
        %v2450 = vunpack.c.l.b16 %v2410
        %v2451 = vunpack.c.l.b16 %v2411
        %v2452 = vunpack.c.l.b16 %v2412
        %v2453 = vunpack.c.l.b16 %v2413
        %v2454 = vunpack.c.l.b16 %v2414
        %v2455 = vunpack.c.l.b16 %v2415
        %v2456 = vunpack.c.l.b16 %v2416
        %v2457 = vunpack.c.l.b16 %v2417
        %v2458 = vunpack.c.l.b16 %v2418
        %v2459 = vunpack.c.l.b16 %v2419
        %v2460 = vunpack.c.l.b16 %v2420
        %v2461 = vunpack.c.l.b16 %v2421
        %v2462 = vunpack.c.l.b16 %v2422
        %v2463 = vunpack.c.l.b16 %v2423
        %v2464 = vunpack.c.l.b16 %v2424
        %v2465 = vunpack.c.l.b16 %v2425
        %v2466 = vpack.c.b16 %v2451, %v2450
        %v2467 = vpack.c.b16 %v2453, %v2452
        %v2468 = vpack.c.b16 %v2455, %v2454
        %v2469 = vpack.c.b16 %v2457, %v2456
        %v2470 = vpack.c.b16 %v2459, %v2458
        %v2471 = vpack.c.b16 %v2461, %v2460
        %v2472 = vpack.c.b16 %v2463, %v2462
        %v2473 = vpack.c.b16 %v2465, %v2464
        %2482 = vmatprep.subr.bf16.mxu0 0
        %2483 = vmatpush1.bf16.msra.mxu0 %v2466
        %2484 = vmatprep.subr.bf16.mxu0 0
        %2485 = vmatpush1.bf16.msra.mxu0 %v2467
        %2486 = vmatprep.subr.bf16.mxu0 0
        %2487 = vmatpush1.bf16.msra.mxu0 %v2468
        %2488 = vmatprep.subr.bf16.mxu0 0
        %2489 = vmatpush1.bf16.msra.mxu0 %v2469
        %2490 = vmatprep.subr.bf16.mxu0 0
        %2491 = vmatpush1.bf16.msra.mxu0 %v2470
        %2492 = vmatprep.subr.bf16.mxu0 0
        %2493 = vmatpush1.bf16.msra.mxu0 %v2471
        %2494 = vmatprep.subr.bf16.mxu0 0
        %2495 = vmatpush1.bf16.msra.mxu0 %v2472
        %2496 = vmatprep.subr.bf16.mxu0 0
        %2497 = vmatpush1.bf16.msra.mxu0 %v2473
        %2498 = vmatprep.subr.bf16.mxu0 0
        %2499 = vmatpush1.bf16.msra.mxu0 0
        %2500 = vmatprep.subr.bf16.mxu0 0
        %2501 = vmatpush1.bf16.msra.mxu0 0
        %2502 = vmatprep.subr.bf16.mxu0 0
        %2503 = vmatpush1.bf16.msra.mxu0 0
        %2504 = vmatprep.subr.bf16.mxu0 0
        %2505 = vmatpush1.bf16.msra.mxu0 0
        %2506 = vmatprep.subr.bf16.mxu0 0
        %2507 = vmatpush1.bf16.msra.mxu0 0
        %2508 = vmatprep.subr.bf16.mxu0 0
        %2509 = vmatpush1.bf16.msra.mxu0 0
        %2510 = vmatprep.subr.bf16.mxu0 0
        %2511 = vmatpush1.bf16.msra.mxu0 0
        %2512 = vmatprep.subr.bf16.mxu0 0
        %2513 = vmatpush1.bf16.msra.mxu0 0
        %2514 = vmatprep.mubr.bf16.mxu0 0
        %2515 = vmatmul.mubr.bf16.gmra.mrb[0].mxu0 %v2408
        %v2516 = vpop.f32.mrb[0].mxu0
        %v2517 = vadd.f32 %v2432, %v2516
        %v2518 = vpop.f32.mrb[0].mxu0
        %v2519 = vpop.f32.mrb[0].mxu0
        %v2520 = vpop.f32.mrb[0].mxu0
        %2521 = vdwg.mxu0
        %v2522 = vadd.f32 %v1687, %v2517
        %s2523 = scalar_lea.vmem %s5, 1
        %v2524 = vld [vmem:[%s2523] sm:$0x1]
        %s2525 = scalar_lea.vmem %s6, 1
        %v2526 = vld [vmem:[%s2525] sm:$0x1]
        %2527 = vadd.xlane.f32.xlu0 %v2522
        %v2528 = vpop.xlane.xlu0 %2527
        %v2529 = vmul.f32 %v2528, %v1411
        %v2530 = vsub.f32 %v2522, %v2529
        %v2531 = vmul.f32 %v2530, %v2530
        %2532 = vadd.xlane.f32.xlu0 %v2531
        %v2533 = vpop.xlane.xlu0 %2532
        %v2534 = vmul.f32 %v2533, %v1411
        %v2535 = vadd.f32 %v2534, 1e-05
        %v2536 = vrsqrt.pop %v2535
        %v2537 = vmul.f32 %v2530, %v2536
        %v2539 = vlaneseq
        %v2540 = vshrl.u32 %v2539, 7
        %v2541 = vsub.s32 0, %v2540
        %v2542 = vrot.slane %v2524, %v2541
        %v2544 = vmul.f32 %v2537, %v2542
        %v2546 = vlaneseq
        %v2547 = vshrl.u32 %v2546, 7
        %v2548 = vsub.s32 0, %v2547
        %v2549 = vrot.slane %v2526, %v2548
        %v2551 = vadd.f32 %v2544, %v2549
        %v2552 = vpack.c.bf16 %v2551, %v2551
        %s2553 = scalar_lea.vmem [#allocation9], 64
        %v2554 = vld [vmem:[%s2553] sm:$0xf]
        %v2555 = vld [vmem:[%s2553 + $0x4] sm:$0xf]
        %v2556 = vld [vmem:[%s2553 + $0x8] sm:$0xf]
        %v2557 = vld [vmem:[%s2553 + $0xc] sm:$0xf]
        %v2558 = vld [vmem:[%s2553 + $0x10] sm:$0xf]
        %v2559 = vld [vmem:[%s2553 + $0x14] sm:$0xf]
        %v2560 = vld [vmem:[%s2553 + $0x18] sm:$0xf]
        %v2561 = vld [vmem:[%s2553 + $0x1c] sm:$0xf]
        %v2562 = vld [vmem:[%s2553 + $0x20] sm:$0xf]
        %v2563 = vld [vmem:[%s2553 + $0x24] sm:$0xf]
        %v2564 = vld [vmem:[%s2553 + $0x28] sm:$0xf]
        %v2565 = vld [vmem:[%s2553 + $0x2c] sm:$0xf]
        %v2566 = vld [vmem:[%s2553 + $0x30] sm:$0xf]
        %v2567 = vld [vmem:[%s2553 + $0x34] sm:$0xf]
        %v2568 = vld [vmem:[%s2553 + $0x38] sm:$0xf]
        %v2569 = vld [vmem:[%s2553 + $0x3c] sm:$0xf]
        %s2570 = scalar_lea.vmem %s8, 1
        %v2571 = vld [vmem:[%s2570] sm:$0x1]
        %v2573 = vlaneseq
        %v2574 = vshrl.u32 %v2573, 7
        %v2575 = vsub.s32 0, %v2574
        %v2576 = vrot.slane %v2571, %v2575
        %v2594 = vunpack.c.l.b16 %v2554
        %v2595 = vunpack.c.l.b16 %v2555
        %v2596 = vunpack.c.l.b16 %v2556
        %v2597 = vunpack.c.l.b16 %v2557
        %v2598 = vunpack.c.l.b16 %v2558
        %v2599 = vunpack.c.l.b16 %v2559
        %v2600 = vunpack.c.l.b16 %v2560
        %v2601 = vunpack.c.l.b16 %v2561
        %v2602 = vunpack.c.l.b16 %v2562
        %v2603 = vunpack.c.l.b16 %v2563
        %v2604 = vunpack.c.l.b16 %v2564
        %v2605 = vunpack.c.l.b16 %v2565
        %v2606 = vunpack.c.l.b16 %v2566
        %v2607 = vunpack.c.l.b16 %v2567
        %v2608 = vunpack.c.l.b16 %v2568
        %v2609 = vunpack.c.l.b16 %v2569
        %v2610 = vpack.c.b16 %v2595, %v2594
        %v2611 = vpack.c.b16 %v2597, %v2596
        %v2612 = vpack.c.b16 %v2599, %v2598
        %v2613 = vpack.c.b16 %v2601, %v2600
        %v2614 = vpack.c.b16 %v2603, %v2602
        %v2615 = vpack.c.b16 %v2605, %v2604
        %v2616 = vpack.c.b16 %v2607, %v2606
        %v2617 = vpack.c.b16 %v2609, %v2608
        %2626 = vmatprep.subr.bf16.mxu0 0
        %2627 = vmatpush1.bf16.msra.mxu0 %v2610
        %2628 = vmatprep.subr.bf16.mxu0 0
        %2629 = vmatpush1.bf16.msra.mxu0 %v2611
        %2630 = vmatprep.subr.bf16.mxu0 0
        %2631 = vmatpush1.bf16.msra.mxu0 %v2612
        %2632 = vmatprep.subr.bf16.mxu0 0
        %2633 = vmatpush1.bf16.msra.mxu0 %v2613
        %2634 = vmatprep.subr.bf16.mxu0 0
        %2635 = vmatpush1.bf16.msra.mxu0 %v2614
        %2636 = vmatprep.subr.bf16.mxu0 0
        %2637 = vmatpush1.bf16.msra.mxu0 %v2615
        %2638 = vmatprep.subr.bf16.mxu0 0
        %2639 = vmatpush1.bf16.msra.mxu0 %v2616
        %2640 = vmatprep.subr.bf16.mxu0 0
        %2641 = vmatpush1.bf16.msra.mxu0 %v2617
        %2642 = vmatprep.subr.bf16.mxu0 0
        %2643 = vmatpush1.bf16.msra.mxu0 0
        %2644 = vmatprep.subr.bf16.mxu0 0
        %2645 = vmatpush1.bf16.msra.mxu0 0
        %2646 = vmatprep.subr.bf16.mxu0 0
        %2647 = vmatpush1.bf16.msra.mxu0 0
        %2648 = vmatprep.subr.bf16.mxu0 0
        %2649 = vmatpush1.bf16.msra.mxu0 0
        %2650 = vmatprep.subr.bf16.mxu0 0
        %2651 = vmatpush1.bf16.msra.mxu0 0
        %2652 = vmatprep.subr.bf16.mxu0 0
        %2653 = vmatpush1.bf16.msra.mxu0 0
        %2654 = vmatprep.subr.bf16.mxu0 0
        %2655 = vmatpush1.bf16.msra.mxu0 0
        %2656 = vmatprep.subr.bf16.mxu0 0
        %2657 = vmatpush1.bf16.msra.mxu0 0
        %2658 = vmatprep.mubr.bf16.mxu0 0
        %2659 = vmatmul.mubr.bf16.gmra.mrb[0].mxu0 %v2552
        %v2660 = vpop.f32.mrb[0].mxu0
        %v2661 = vadd.f32 %v2576, %v2660
        %v2662 = vpop.f32.mrb[0].mxu0
        %v2663 = vpop.f32.mrb[0].mxu0
        %v2664 = vpop.f32.mrb[0].mxu0
        %2665 = vdwg.mxu0
        %v2666 = vmax.f32 %v2661, 0.0
        %v2667 = vpack.c.bf16 %v2666, %v2666
        %s2668 = scalar_lea.vmem [#allocation11], 64
        %v2669 = vld [vmem:[%s2668] sm:$0xf]
        %v2670 = vld [vmem:[%s2668 + $0x4] sm:$0xf]
        %v2671 = vld [vmem:[%s2668 + $0x8] sm:$0xf]
        %v2672 = vld [vmem:[%s2668 + $0xc] sm:$0xf]
        %v2673 = vld [vmem:[%s2668 + $0x10] sm:$0xf]
        %v2674 = vld [vmem:[%s2668 + $0x14] sm:$0xf]
        %v2675 = vld [vmem:[%s2668 + $0x18] sm:$0xf]
        %v2676 = vld [vmem:[%s2668 + $0x1c] sm:$0xf]
        %v2677 = vld [vmem:[%s2668 + $0x20] sm:$0xf]
        %v2678 = vld [vmem:[%s2668 + $0x24] sm:$0xf]
        %v2679 = vld [vmem:[%s2668 + $0x28] sm:$0xf]
        %v2680 = vld [vmem:[%s2668 + $0x2c] sm:$0xf]
        %v2681 = vld [vmem:[%s2668 + $0x30] sm:$0xf]
        %v2682 = vld [vmem:[%s2668 + $0x34] sm:$0xf]
        %v2683 = vld [vmem:[%s2668 + $0x38] sm:$0xf]
        %v2684 = vld [vmem:[%s2668 + $0x3c] sm:$0xf]
        %s2685 = scalar_lea.vmem %s10, 1
        %v2686 = vld [vmem:[%s2685] sm:$0x1]
        %v2688 = vlaneseq
        %v2689 = vshrl.u32 %v2688, 7
        %v2690 = vsub.s32 0, %v2689
        %v2691 = vrot.slane %v2686, %v2690
        %v2709 = vunpack.c.l.b16 %v2669
        %v2710 = vunpack.c.l.b16 %v2670
        %v2711 = vunpack.c.l.b16 %v2671
        %v2712 = vunpack.c.l.b16 %v2672
        %v2713 = vunpack.c.l.b16 %v2673
        %v2714 = vunpack.c.l.b16 %v2674
        %v2715 = vunpack.c.l.b16 %v2675
        %v2716 = vunpack.c.l.b16 %v2676
        %v2717 = vunpack.c.l.b16 %v2677
        %v2718 = vunpack.c.l.b16 %v2678
        %v2719 = vunpack.c.l.b16 %v2679
        %v2720 = vunpack.c.l.b16 %v2680
        %v2721 = vunpack.c.l.b16 %v2681
        %v2722 = vunpack.c.l.b16 %v2682
        %v2723 = vunpack.c.l.b16 %v2683
        %v2724 = vunpack.c.l.b16 %v2684
        %v2725 = vpack.c.b16 %v2710, %v2709
        %v2726 = vpack.c.b16 %v2712, %v2711
        %v2727 = vpack.c.b16 %v2714, %v2713
        %v2728 = vpack.c.b16 %v2716, %v2715
        %v2729 = vpack.c.b16 %v2718, %v2717
        %v2730 = vpack.c.b16 %v2720, %v2719
        %v2731 = vpack.c.b16 %v2722, %v2721
        %v2732 = vpack.c.b16 %v2724, %v2723
        %2741 = vmatprep.subr.bf16.mxu0 0
        %2742 = vmatpush1.bf16.msra.mxu0 %v2725
        %2743 = vmatprep.subr.bf16.mxu0 0
        %2744 = vmatpush1.bf16.msra.mxu0 %v2726
        %2745 = vmatprep.subr.bf16.mxu0 0
        %2746 = vmatpush1.bf16.msra.mxu0 %v2727
        %2747 = vmatprep.subr.bf16.mxu0 0
        %2748 = vmatpush1.bf16.msra.mxu0 %v2728
        %2749 = vmatprep.subr.bf16.mxu0 0
        %2750 = vmatpush1.bf16.msra.mxu0 %v2729
        %2751 = vmatprep.subr.bf16.mxu0 0
        %2752 = vmatpush1.bf16.msra.mxu0 %v2730
        %2753 = vmatprep.subr.bf16.mxu0 0
        %2754 = vmatpush1.bf16.msra.mxu0 %v2731
        %2755 = vmatprep.subr.bf16.mxu0 0
        %2756 = vmatpush1.bf16.msra.mxu0 %v2732
        %2757 = vmatprep.subr.bf16.mxu0 0
        %2758 = vmatpush1.bf16.msra.mxu0 0
        %2759 = vmatprep.subr.bf16.mxu0 0
        %2760 = vmatpush1.bf16.msra.mxu0 0
        %2761 = vmatprep.subr.bf16.mxu0 0
        %2762 = vmatpush1.bf16.msra.mxu0 0
        %2763 = vmatprep.subr.bf16.mxu0 0
        %2764 = vmatpush1.bf16.msra.mxu0 0
        %2765 = vmatprep.subr.bf16.mxu0 0
        %2766 = vmatpush1.bf16.msra.mxu0 0
        %2767 = vmatprep.subr.bf16.mxu0 0
        %2768 = vmatpush1.bf16.msra.mxu0 0
        %2769 = vmatprep.subr.bf16.mxu0 0
        %2770 = vmatpush1.bf16.msra.mxu0 0
        %2771 = vmatprep.subr.bf16.mxu0 0
        %2772 = vmatpush1.bf16.msra.mxu0 0
        %2773 = vmatprep.mubr.bf16.mxu0 0
        %2774 = vmatmul.mubr.bf16.gmra.mrb[0].mxu0 %v2667
        %v2775 = vpop.f32.mrb[0].mxu0
        %v2776 = vadd.f32 %v2691, %v2775
        %v2777 = vpop.f32.mrb[0].mxu0
        %v2778 = vpop.f32.mrb[0].mxu0
        %v2779 = vpop.f32.mrb[0].mxu0
        %2780 = vdwg.mxu0
        %v2781 = vadd.f32 %v2551, %v2776
        %s2782 = scalar_lea.vmem %s11, 1
        %v2783 = vld [vmem:[%s2782] sm:$0x1]
        %s2784 = scalar_lea.vmem %s12, 1
        %v2785 = vld [vmem:[%s2784] sm:$0x1]
        %2786 = vadd.xlane.f32.xlu0 %v2781
        %v2787 = vpop.xlane.xlu0 %2786
        %v2788 = vmul.f32 %v2787, %v1411
        %v2789 = vsub.f32 %v2781, %v2788
        %v2790 = vmul.f32 %v2789, %v2789
        %2791 = vadd.xlane.f32.xlu0 %v2790
        %v2792 = vpop.xlane.xlu0 %2791
        %v2793 = vmul.f32 %v2792, %v1411
        %v2794 = vadd.f32 %v2793, 1e-05
        %v2795 = vrsqrt.pop %v2794
        %v2796 = vmul.f32 %v2789, %v2795
        %v2798 = vlaneseq
        %v2799 = vshrl.u32 %v2798, 7
        %v2800 = vsub.s32 0, %v2799
        %v2801 = vrot.slane %v2783, %v2800
        %v2803 = vmul.f32 %v2796, %v2801
        %v2805 = vlaneseq
        %v2806 = vshrl.u32 %v2805, 7
        %v2807 = vsub.s32 0, %v2806
        %v2808 = vrot.slane %v2785, %v2807
        %v2810 = vadd.f32 %v2803, %v2808
        %v2811 = vld [vmem:[%s13] sm:$0x1]
        %v2813 = vlaneseq
        %v2814 = vshrl.u32 %v2813, 7
        %v2815 = vsub.s32 0, %v2814
        %v2816 = vrot.slane %v2811, %v2815
        %v2818 = vmul.f32 %v2810, %v2816
        %2819 = vadd.xlane.f32.xlu0 %v2818
        %v2820 = vpop.xlane.xlu0 %2819
        %v2821 = vld [vmem:[#allocation2] sm:$0x1]
        %2823 = vset.pattern.permute.xlu0 0
        %2824 = vperm.xlu0 %2823, %v2821
        %v2825 = vpop.permute.xlu0 %2824
        %v2827 = vlaneseq
        %v2828 = vshrl.u32 %v2827, 7
        %v2829 = vsub.s32 0, %v2828
        %v2830 = vrot.slane %v2825, %v2829
        %v2831 = vadd.f32 %v2820, %v2830
        %v2833 = vlaneseq
        %v2834 = vand.u32 %v2833, 127
        %v2835 = vlaneseq
        %v2836 = vshrl.u32 %v2835, 7
        %v2837 = vsub.s32 %v2834, %v2836
        %v2838 = vrot.slane %v2831, %v2837
        %vm2840 = vcmask 57344
        %2841 = vst.msk [vmem:[%s568] sm:$0x1] %vm2840, %v2838
        %s2842 = sand.u32 %s364, 1
        %s2843 = scalar_lea.sflag [#allocation5], %s2842
        %s2844 = sand.u32 %s364, 1
        %s2845 = scalar_lea.vmem [#allocation12], %s2844
        // Predicated region
        $region101: #{tpu_custom_call.1} parent=79 // pred_check
          %p2846 = pneg %p374
        $region102: #{tpu_custom_call.1} parent=79 // pred_check_branch
          %2848 = sbr.rel (%p2846) target = $region104
        $region103: #{tpu_custom_call.1} parent=79 // pred_region
          %s2850 = ssub.s32 16, 16
          %2851 = vsyncadd %s2843, %s2850
          %s2852 = smul.addr %s36, 16
          %s2853 = scalar_lea.hbm %s15, %s2852
          %s2855 = sshll.u32 %s2845, 4
          %s2856 = int_to_ptr.vmem [resolvable:$true] %s2855
          %2858 = dma.vmem_to_hbm [thread:$0]  %s2856, 16, %s2853, %s2843
        $region104: #{tpu_custom_call.1} parent=79 // pred_fallthru
          _
      $region80: #{tpu_custom_call.1} parent=5 // pred_fallthru
        _
      %p2859 = scmp.le.s32.totalorder 2, %s31
      // Predicated region
      $region105: #{tpu_custom_call.1} parent=5 // pred_check
        %p2860 = pneg %p2859
      $region106: #{tpu_custom_call.1} parent=5 // pred_check_branch
        %2862 = sbr.rel (%p2860) target = $region108
      $region107: #{tpu_custom_call.1} parent=5 // pred_region
        %s2863 = ssub.s32 %s31, 2
        // Predicated region
        $region109: #{tpu_custom_call.1} parent=107 // pred_check
          %p2864 = pneg %p380
        $region110: #{tpu_custom_call.1} parent=107 // pred_check_branch
          %2866 = sbr.rel (%p2864) target = $region112
        $region111: #{tpu_custom_call.1} parent=107 // pred_region
          %s2867 = sand.u32 %s365, 1
          %s2868 = scalar_lea.sflag [#allocation5], %s2867
          %s2869 = sand.u32 %s365, 1
          %s2870 = scalar_lea.vmem [#allocation12], %s2869
          %2871 = dma.done %s2868, 16
        $region112: #{tpu_custom_call.1} parent=107 // pred_fallthru
          _
      $region108: #{tpu_custom_call.1} parent=5 // pred_fallthru
        _
    $region6: #{tpu_custom_call.1} parent=1 // loop_footer
      %s35 = sadd.s32 1, %s31
    $region7: #{tpu_custom_call.1} parent=1 // loop_footer_branch
      %30 = sbr.rel target = $region3
    $region8: #{tpu_custom_call.1} parent=1 // loop_exit
      _
    %2872 = vsyncpa [#allocation4], 1
    %s2873 = scalar_lea.sflag [#allocation4], 1
    %2874 = vsyncpa %s2873, 1
    %2875 = vsyncpa [#allocation7], 1
    %2876 = vsyncpa [#allocation10], 1
    %2877 = vsyncpa [#allocation5], 1
    %s2878 = scalar_lea.sflag [#allocation5], 1
    %2879 = vsyncpa %s2878, 1

</llo_original>
